<compile_context>
chip_gen: v7x
topology: tpu7x:2x2x1
jax: 0.10.0
libtpu: 0.0.40
codegen_flags: <defaults>
</compile_context>

<pallas_src>
import math
from functools import partial

import jax
import jax.numpy as jnp
from jax.experimental import pallas as pl
from jax.experimental.pallas import tpu as pltpu


# ----------------------------- tiling helpers -------------------------------

def _round_up(x, m):
    return ((x + m - 1) // m) * m


def _tile_lane(dim, target):
    """Largest 128-multiple <= target dividing dim; else the full dim."""
    if dim <= target:
        return dim
    t = (target // 128) * 128
    while t >= 128:
        if dim % t == 0:
            return t
        t -= 128
    return dim


def _tile_sublane(dim, target):
    """Largest 8-multiple <= target dividing dim; else the full dim."""
    if dim <= target:
        return dim
    t = (target // 8) * 8
    while t >= 8:
        if dim % t == 0:
            return t
        t -= 8
    return dim


# ------------------------------ Pallas kernels ------------------------------

def _linear_kernel(x_ref, w_ref, b_ref, o_ref, acc_ref, *, activation):
    """Tiled matmul + bias (+ optional ReLU). bf16 operands, f32 accumulator."""
    k = pl.program_id(2)

    @pl.when(k == 0)
    def _():
        acc_ref[...] = jnp.zeros_like(acc_ref)

    acc_ref[...] += jnp.dot(x_ref[...], w_ref[...],
                            preferred_element_type=jnp.float32)

    @pl.when(k == pl.num_programs(2) - 1)
    def _():
        r = acc_ref[...] + b_ref[...]
        if activation == "relu":
            r = jnp.maximum(r, 0.0)
        o_ref[...] = r.astype(o_ref.dtype)


def linear(x, w, b, activation=None, out_dtype=jnp.bfloat16):
    """x:(M,K) @ w:(K,N) + b:(N,). Pads M to 8-multiple and N to 128-multiple so the
    output stays lane-dense/tiled even for odd vocab sizes (review item)."""
    M, K = x.shape
    N = w.shape[1]
    Mp = _round_up(M, 8)
    Np = _round_up(N, 128)
    if Mp != M:
        x = jnp.pad(x, ((0, Mp - M), (0, 0)))
    if Np != N:
        w = jnp.pad(w, ((0, 0), (0, Np - N)))
        b = jnp.pad(b, ((0, Np - N),))
    TM = _tile_sublane(Mp, 128)
    TN = _tile_lane(Np, 256 if Np >= 512 else 128)   # >=2 N tiles when N is small
    TK = _tile_lane(K, 256)
    grid = (Mp // TM, Np // TN, K // TK)
    out = pl.pallas_call(
        partial(_linear_kernel, activation=activation),
        out_shape=jax.ShapeDtypeStruct((Mp, Np), out_dtype),
        grid=grid,
        in_specs=[pl.BlockSpec((TM, TK), lambda i, j, k: (i, k)),
                  pl.BlockSpec((TK, TN), lambda i, j, k: (k, j)),
                  pl.BlockSpec((1, TN), lambda i, j, k: (0, j))],
        out_specs=pl.BlockSpec((TM, TN), lambda i, j, k: (i, j)),
        scratch_shapes=[pltpu.VMEM((TM, TN), jnp.float32)],
        compiler_params=pltpu.CompilerParams(
            dimension_semantics=("parallel", "parallel", "arbitrary")),
    )(x, w, b.reshape(1, Np))
    if Mp != M or Np != N:
        out = out[:M, :N]
    return out


def _mha_kernel(xq_ref, xkv_ref, kb_ref, wq_ref, bq_ref, wkv_ref, bkv_ref,
                wo_ref, bo_ref, g_ref, be_ref, o_ref, *,
                nheads, scale, causal, eps):
    """Fused: q/kv projections + per-head attention + out-projection + residual + LN.

    Input/output activations are lane-dense (T, D); head slicing is done in-register
    on static lane slices, so no XLA head transposes / HBM round trips are needed.
    """
    xq = xq_ref[0]                                    # (Tq, D) bf16
    xkv = xkv_ref[0]                                  # (Tk, D) bf16
    Tq, D = xq.shape
    Tk = xkv.shape[0]
    dh = D // nheads

    # projections on the MXU, f32 accumulation; 1/sqrt(d) folded into q up front
    q_all = (jnp.dot(xq, wq_ref[...], preferred_element_type=jnp.float32)
             + bq_ref[...]) * scale                   # (Tq, D)
    kv_all = (jnp.dot(xkv, wkv_ref[...], preferred_element_type=jnp.float32)
              + bkv_ref[...])                         # (Tk, 2D)

    kb = kb_ref[0]                                    # (1, Tk) additive key-pad bias
    if causal:
        row = jax.lax.broadcasted_iota(jnp.int32, (Tq, Tk), 0)
        col = jax.lax.broadcasted_iota(jnp.int32, (Tq, Tk), 1)
        peek = col > row

    wo = wo_ref[...]                                  # (D, D) bf16, loaded once
    y = jnp.zeros((Tq, D), jnp.float32)
    for h in range(nheads):                           # static unroll over heads
        q = q_all[:, h * dh:(h + 1) * dh].astype(jnp.bfloat16)          # (Tq, dh)
        k = kv_all[:, h * dh:(h + 1) * dh].astype(jnp.bfloat16)         # (Tk, dh)
        v = kv_all[:, D + h * dh:D + (h + 1) * dh].astype(jnp.bfloat16)  # (Tk, dh)
        s = jax.lax.dot_general(q, k, (((1,), (1,)), ((), ())),
                                preferred_element_type=jnp.float32)     # (Tq, Tk)
        s = s + kb
        if causal:
            s = jnp.where(peek, -1e9, s)
        s = s - jnp.max(s, axis=-1, keepdims=True)
        p = jnp.exp(s)
        p = p * pl.reciprocal(jnp.sum(p, axis=-1, keepdims=True), approx=True)
        ctx = jnp.dot(p.astype(jnp.bfloat16), v,
                      preferred_element_type=jnp.float32)               # (Tq, dh)
        # out-projection accumulated per head: ctx @ wo[h*dh:(h+1)*dh, :]
        y = y + jnp.dot(ctx.astype(jnp.bfloat16), wo[h * dh:(h + 1) * dh, :],
                        preferred_element_type=jnp.float32)             # (Tq, D)

    # residual + LayerNorm in f32, store bf16 (lane-dense (Tq, D) output)
    y = y + bo_ref[...] + xq.astype(jnp.float32)
    mu = jnp.mean(y, axis=-1, keepdims=True)
    var = jnp.mean(jnp.square(y - mu), axis=-1, keepdims=True)
    yhat = (y - mu) * jax.lax.rsqrt(var + eps)
    o_ref[0] = (yhat * g_ref[...] + be_ref[...]).astype(o_ref.dtype)


def mha_ln(x_q, x_kv, key_bias, p, gamma, beta, num_heads, causal, eps=1e-5):
    """x_q:(B,Tq,D), x_kv:(B,Tk,D) bf16; key_bias:(B,1,Tk) f32 additive pad bias.
    Returns LayerNorm(x_q + MHA(x_q, x_kv)) as (B,Tq,D) bf16."""
    B, Tq, D = x_q.shape
    Tk = x_kv.shape[1]
    dh = D // num_heads
    # TODO(synk): B==1 leaves one v7x TensorCore idle; would need a Tq-block grid axis.
    return pl.pallas_call(
        partial(_mha_kernel, nheads=num_heads, scale=1.0 / math.sqrt(dh),
                causal=causal, eps=eps),
        out_shape=jax.ShapeDtypeStruct((B, Tq, D), jnp.bfloat16),
        grid=(B,),
        in_specs=[pl.BlockSpec((1, Tq, D), lambda b: (b, 0, 0)),
                  pl.BlockSpec((1, Tk, D), lambda b: (b, 0, 0)),
                  pl.BlockSpec((1, 1, Tk), lambda b: (b, 0, 0)),
                  pl.BlockSpec((D, D), lambda b: (0, 0)),
                  pl.BlockSpec((1, D), lambda b: (0, 0)),
                  pl.BlockSpec((D, 2 * D), lambda b: (0, 0)),
                  pl.BlockSpec((1, 2 * D), lambda b: (0, 0)),
                  pl.BlockSpec((D, D), lambda b: (0, 0)),
                  pl.BlockSpec((1, D), lambda b: (0, 0)),
                  pl.BlockSpec((1, D), lambda b: (0, 0)),
                  pl.BlockSpec((1, D), lambda b: (0, 0))],
        out_specs=pl.BlockSpec((1, Tq, D), lambda b: (b, 0, 0)),
        compiler_params=pltpu.CompilerParams(dimension_semantics=("parallel",)),
    )(x_q, x_kv, key_bias,
      p["wq"], p["bq"].reshape(1, D),
      p["wkv"], p["bkv"].reshape(1, 2 * D),
      p["wo"], p["bo"].reshape(1, D),
      gamma.reshape(1, D), beta.reshape(1, D))


def _ffn_ln_kernel(x_ref, w1_ref, b1_ref, w2_ref, b2_ref, g_ref, be_ref, o_ref, *, eps):
    """Fused FFN: LN(relu(x @ w1 + b1) @ w2 + b2 + x). bf16 MXU operands, f32 math."""
    x = x_ref[...]                                    # (TM, D) bf16
    h = jnp.dot(x, w1_ref[...], preferred_element_type=jnp.float32) + b1_ref[...]
    h = jnp.maximum(h, 0.0).astype(jnp.bfloat16)      # fused ReLU
    y = jnp.dot(h, w2_ref[...], preferred_element_type=jnp.float32) + b2_ref[...]
    y = y + x.astype(jnp.float32)                     # residual
    mu = jnp.mean(y, axis=-1, keepdims=True)
    var = jnp.mean(jnp.square(y - mu), axis=-1, keepdims=True)
    yhat = (y - mu) * jax.lax.rsqrt(var + eps)
    o_ref[...] = (yhat * g_ref[...] + be_ref[...]).astype(o_ref.dtype)


def ffn_ln(x, w1, b1, w2, b2, gamma, beta, eps=1e-5):
    """x:(B,T,D) bf16 -> (B,T,D) bf16. Whole FFN sub-layer in one pallas_call."""
    B, T, D = x.shape
    M = B * T
    F = w1.shape[1]
    xf = x.reshape(M, D)
    TM = _tile_sublane(M, 256)
    if M // TM < 2:                                   # keep >=2 parallel grid steps
        TM = _tile_sublane(M, max(8, M // 2))
    grid = (M // TM,)
    out = pl.pallas_call(
        partial(_ffn_ln_kernel, eps=eps),
        out_shape=jax.ShapeDtypeStruct((M, D), jnp.bfloat16),
        grid=grid,
        in_specs=[pl.BlockSpec((TM, D), lambda i: (i, 0)),
                  pl.BlockSpec((D, F), lambda i: (0, 0)),
                  pl.BlockSpec((1, F), lambda i: (0, 0)),
                  pl.BlockSpec((F, D), lambda i: (0, 0)),
                  pl.BlockSpec((1, D), lambda i: (0, 0)),
                  pl.BlockSpec((1, D), lambda i: (0, 0)),
                  pl.BlockSpec((1, D), lambda i: (0, 0))],
        out_specs=pl.BlockSpec((TM, D), lambda i: (i, 0)),
        compiler_params=pltpu.CompilerParams(dimension_semantics=("parallel",)),
    )(xf, w1, b1.reshape(1, F), w2, b2.reshape(1, D),
      gamma.reshape(1, D), beta.reshape(1, D))
    return out.reshape(B, T, D)


# --------------------------- model building blocks --------------------------

def encoder_layer(x, src_key_bias, p, num_heads):
    x = mha_ln(x, x, src_key_bias, p["self_attn"], p["ln1_g"], p["ln1_b"],
               num_heads, causal=False)
    x = ffn_ln(x, p["w1"], p["b1"], p["w2"], p["b2"], p["ln2_g"], p["ln2_b"])
    return x


def decoder_layer(y, enc, tgt_key_bias, src_key_bias, p, num_heads):
    y = mha_ln(y, y, tgt_key_bias, p["self_attn"], p["ln1_g"], p["ln1_b"],
               num_heads, causal=True)
    y = mha_ln(y, enc, src_key_bias, p["cross_attn"], p["ln2_g"], p["ln2_b"],
               num_heads, causal=False)
    y = ffn_ln(y, p["w1"], p["b1"], p["w2"], p["b2"], p["ln3_g"], p["ln3_b"])
    return y


def transformer_forward(params, src, tgt, num_heads):
    B, S = src.shape
    T = tgt.shape[1]
    D = params["emb"].shape[1]

    # masks (pad token id == 1): tiny per-batch additive key-pad biases; the causal
    # (no-peek) part of the target mask is generated inside the attention kernel.
    src_key_bias = jnp.where(src == 1, -1e9, 0.0).astype(jnp.float32).reshape(B, 1, S)
    tgt_key_bias = jnp.where(tgt == 1, -1e9, 0.0).astype(jnp.float32).reshape(B, 1, T)

    # embeddings + sinusoidal positional encoding (XLA glue); activations flow in bf16
    pe = params["pos_enc"]
    x = (params["emb"][src] * math.sqrt(D) + pe[:S][None]).astype(jnp.bfloat16)
    y = (params["emb"][tgt] * math.sqrt(D) + pe[:T][None]).astype(jnp.bfloat16)
    # TODO(synk): nn.Dropout after pos-encoding / inside layers omitted (eval mode).

    for lp in params["enc_layers"]:
        x = encoder_layer(x, src_key_bias, lp, num_heads)
    for lp in params["dec_layers"]:
        y = decoder_layer(y, x, tgt_key_bias, src_key_bias, lp, num_heads)

    vocab = params["wout"].shape[1]
    logits = linear(y.reshape(B * T, D), params["wout"], params["bout"],
                    out_dtype=jnp.float32)
    return logits.reshape(B, T, vocab)


# ------------------------------ parameter init ------------------------------

def init_params(key, vocab_size, dim_model, max_seq_len, num_layers, num_heads, ffn_val):
    keys = jax.random.split(key, 1024)
    counter = [0]

    def nxt():
        k = keys[counter[0]]
        counter[0] += 1
        return k

    def w(shape, scale=0.02, dtype=jnp.bfloat16):
        # matmul weights stored in bf16 (MXU operands); accumulation stays f32
        return (jax.random.normal(nxt(), shape, jnp.float32) * scale).astype(dtype)

    def zeros(n):
        return jnp.zeros((n,), jnp.float32)

    def ones(n):
        return jnp.ones((n,), jnp.float32)

    D, F = dim_model, ffn_val

    def attn_params():
        return {"wq": w((D, D)), "bq": zeros(D),
                "wkv": w((D, 2 * D)), "bkv": zeros(2 * D),
                "wo": w((D, D)), "bo": zeros(D)}

    def enc_layer_params():
        return {"self_attn": attn_params(),
                "w1": w((D, F)), "b1": zeros(F),
                "w2": w((F, D)), "b2": zeros(D),
                "ln1_g": ones(D), "ln1_b": zeros(D),
                "ln2_g": ones(D), "ln2_b": zeros(D)}

    def dec_layer_params():
        return {"self_attn": attn_params(),
                "cross_attn": attn_params(),
                "w1": w((D, F)), "b1": zeros(F),
                "w2": w((F, D)), "b2": zeros(D),
                "ln1_g": ones(D), "ln1_b": zeros(D),
                "ln2_g": ones(D), "ln2_b": zeros(D),
                "ln3_g": ones(D), "ln3_b": zeros(D)}

    # sinusoidal positional encoding table
    pos = jnp.arange(max_seq_len, dtype=jnp.float32)[:, None]
    div = jnp.exp(jnp.arange(0, D, 2, dtype=jnp.float32) * (-math.log(10000.0) / D))
    pe = jnp.zeros((max_seq_len, D), jnp.float32)
    pe = pe.at[:, 0::2].set(jnp.sin(pos * div))
    pe = pe.at[:, 1::2].set(jnp.cos(pos * div))

    return {
        "emb": w((vocab_size, D), scale=1.0, dtype=jnp.float32),
        "pos_enc": pe,
        "enc_layers": [enc_layer_params() for _ in range(num_layers)],
        "dec_layers": [dec_layer_params() for _ in range(num_layers)],
        "wout": w((D, vocab_size)),
        "bout": zeros(vocab_size),
    }


# ---------------------------------- main ------------------------------------

if __name__ == "__main__":
    VOCAB = 256     # lane-dense (multiple of 128) output projection
    DIM = 128       # lane-dense model dim
    MAX_SEQ = 16
    LAYERS = 2
    HEADS = 4       # d_head = 32
    FFN = 256
    B = 2
    S = 8           # both src and tgt are (B, S)

    root = jax.random.PRNGKey(0)
    k_params, k_src, k_tgt = jax.random.split(root, 3)

    params = init_params(k_params, VOCAB, DIM, MAX_SEQ, LAYERS, HEADS, FFN)
    src = jax.random.randint(k_src, (B, S), 0, VOCAB, dtype=jnp.int32)
    tgt = jax.random.randint(k_tgt, (B, S), 0, VOCAB, dtype=jnp.int32)

    fwd = jax.jit(partial(transformer_forward, num_heads=HEADS))
    out = jax.block_until_ready(fwd(params, src, tgt))

    assert out.shape == (B, S, VOCAB), out.shape
    assert bool(jnp.all(jnp.isfinite(out)))
    print("KERNEL_OK")
</pallas_src>

<mosaic_0001>
module attributes {stable_mosaic.version = 11 : i64} {
  func.func @_linear_kernel(%arg0: i32, %arg1: i32, %arg2: i32, %arg3: memref<16x128xbf16, #tpu.memory_space<vmem>>, %arg4: memref<128x128xbf16, #tpu.memory_space<vmem>>, %arg5: memref<1x128xf32, #tpu.memory_space<vmem>>, %arg6: memref<16x128xf32, #tpu.memory_space<vmem>>, %arg7: memref<16x128xf32, #tpu.memory_space<vmem>>) attributes {dimension_semantics = [#tpu.dimension_semantics<parallel>, #tpu.dimension_semantics<parallel>, #tpu.dimension_semantics<arbitrary>], iteration_bounds = array<i64: 1, 2, 1>, scalar_prefetch = 0 : i64, scratch_operands = 1 : i64, tpu.core_type = #tpu.core_type<tc>, window_params = [{transform_indices = @transform_0, window_bounds = array<i64: 16, 128>}, {transform_indices = @transform_1, window_bounds = array<i64: 128, 128>}, {transform_indices = @transform_2, window_bounds = array<i64: 1, 128>}, {transform_indices = @transform_3, window_bounds = array<i64: 16, 128>}]} {
    %c0_i32 = arith.constant 0 : i32
    %0 = arith.cmpi eq, %arg2, %c0_i32 : i32
    %1 = arith.extui %0 : i1 to i32
    %c0_i32_0 = arith.constant 0 : i32
    %2 = arith.cmpi ne, %1, %c0_i32_0 : i32
    scf.if %2 {
      %cst_10 = arith.constant 0.000000e+00 : f32
      %12 = vector.broadcast %cst_10 : f32 to vector<16x128xf32>
      %c0_11 = arith.constant 0 : index
      %c0_12 = arith.constant 0 : index
      %13 = vector.load %arg7[%c0_11, %c0_12] : memref<16x128xf32, #tpu.memory_space<vmem>>, vector<16x128xf32>
      tpu.vector_store %arg7[%c0_11, %c0_12], %12 {strides = array<i32>} : memref<16x128xf32, #tpu.memory_space<vmem>>, vector<16x128xf32>,
    } else {
    }
    %c0 = arith.constant 0 : index
    %c0_1 = arith.constant 0 : index
    %3 = vector.load %arg7[%c0, %c0_1] : memref<16x128xf32, #tpu.memory_space<vmem>>, vector<16x128xf32>
    %c0_2 = arith.constant 0 : index
    %c0_3 = arith.constant 0 : index
    %4 = vector.load %arg3[%c0_2, %c0_3] : memref<16x128xbf16, #tpu.memory_space<vmem>>, vector<16x128xbf16>
    %c0_4 = arith.constant 0 : index
    %c0_5 = arith.constant 0 : index
    %5 = vector.load %arg4[%c0_4, %c0_5] : memref<128x128xbf16, #tpu.memory_space<vmem>>, vector<128x128xbf16>
    %cst = arith.constant dense<0.000000e+00> : vector<16x128xf32>
    %6 = tpu.matmul %4, %5, %cst {dimension_numbers = #tpu.dot_dimension_numbers<[1], [0], [0], [1], [0, 0, 1, 1], [], []>} : vector<16x128xbf16>, vector<128x128xbf16>, vector<16x128xf32> -> vector<16x128xf32>
    %7 = arith.addf %3, %6 : vector<16x128xf32>
    %c0_6 = arith.constant 0 : index
    %c0_7 = arith.constant 0 : index
    %8 = vector.load %arg7[%c0_6, %c0_7] : memref<16x128xf32, #tpu.memory_space<vmem>>, vector<16x128xf32>
    tpu.vector_store %arg7[%c0_6, %c0_7], %7 {strides = array<i32>} : memref<16x128xf32, #tpu.memory_space<vmem>>, vector<16x128xf32>,
    %c0_i32_8 = arith.constant 0 : i32
    %9 = arith.cmpi eq, %arg2, %c0_i32_8 : i32
    %10 = arith.extui %9 : i1 to i32
    %c0_i32_9 = arith.constant 0 : i32
    %11 = arith.cmpi ne, %10, %c0_i32_9 : i32
    scf.if %11 {
      %c0_10 = arith.constant 0 : index
      %c0_11 = arith.constant 0 : index
      %12 = vector.load %arg7[%c0_10, %c0_11] : memref<16x128xf32, #tpu.memory_space<vmem>>, vector<16x128xf32>
      %c0_12 = arith.constant 0 : index
      %c0_13 = arith.constant 0 : index
      %13 = vector.load %arg5[%c0_12, %c0_13] : memref<1x128xf32, #tpu.memory_space<vmem>>, vector<1x128xf32>
      %14 = vector.broadcast %13 : vector<1x128xf32> to vector<16x128xf32>
      %15 = arith.addf %12, %14 : vector<16x128xf32>
      %c0_14 = arith.constant 0 : index
      %c0_15 = arith.constant 0 : index
      %16 = vector.load %arg6[%c0_14, %c0_15] : memref<16x128xf32, #tpu.memory_space<vmem>>, vector<16x128xf32>
      tpu.vector_store %arg6[%c0_14, %c0_15], %15 {strides = array<i32>} : memref<16x128xf32, #tpu.memory_space<vmem>>, vector<16x128xf32>,
    } else {
    }
    return
  }
  func.func @transform_0(%arg0: i32, %arg1: i32, %arg2: i32) -> (i32, i32) {
    %c0_i32 = arith.constant 0 : i32
    return %arg0, %arg2 : i32, i32
  }
  func.func @transform_1(%arg0: i32, %arg1: i32, %arg2: i32) -> (i32, i32) {
    %c0_i32 = arith.constant 0 : i32
    return %arg2, %arg1 : i32, i32
  }
  func.func @transform_2(%arg0: i32, %arg1: i32, %arg2: i32) -> (i32, i32) {
    %c0_i32 = arith.constant 0 : i32
    %c0_i32_0 = arith.constant 0 : i32
    return %c0_i32, %arg1 : i32, i32
  }
  func.func @transform_3(%arg0: i32, %arg1: i32, %arg2: i32) -> (i32, i32) {
    %c0_i32 = arith.constant 0 : i32
    return %arg0, %arg1 : i32, i32
  }
}

module attributes {stable_mosaic.version = 11 : i64} {
  func.func @_mha_kernel(%arg0: i32, %arg1: memref<1x8x128xbf16, #tpu.memory_space<vmem>>, %arg2: memref<1x8x128xbf16, #tpu.memory_space<vmem>>, %arg3: memref<1x1x8xf32, #tpu.memory_space<vmem>>, %arg4: memref<128x128xbf16, #tpu.memory_space<vmem>>, %arg5: memref<1x128xf32, #tpu.memory_space<vmem>>, %arg6: memref<128x256xbf16, #tpu.memory_space<vmem>>, %arg7: memref<1x256xf32, #tpu.memory_space<vmem>>, %arg8: memref<128x128xbf16, #tpu.memory_space<vmem>>, %arg9: memref<1x128xf32, #tpu.memory_space<vmem>>, %arg10: memref<1x128xf32, #tpu.memory_space<vmem>>, %arg11: memref<1x128xf32, #tpu.memory_space<vmem>>, %arg12: memref<1x8x128xbf16, #tpu.memory_space<vmem>>) attributes {dimension_semantics = [#tpu.dimension_semantics<parallel>], iteration_bounds = array<i64: 2>, scalar_prefetch = 0 : i64, scratch_operands = 0 : i64, tpu.core_type = #tpu.core_type<tc>, window_params = [{transform_indices = @transform_0, window_bounds = array<i64: 1, 8, 128>}, {transform_indices = @transform_1, window_bounds = array<i64: 1, 8, 128>}, {transform_indices = @transform_2, window_bounds = array<i64: 1, 1, 8>}, {pipeline_mode = #tpu.pipeline_mode<synchronous>, transform_indices = @transform_3, window_bounds = array<i64: 128, 128>}, {pipeline_mode = #tpu.pipeline_mode<synchronous>, transform_indices = @transform_4, window_bounds = array<i64: 1, 128>}, {pipeline_mode = #tpu.pipeline_mode<synchronous>, transform_indices = @transform_5, window_bounds = array<i64: 128, 256>}, {pipeline_mode = #tpu.pipeline_mode<synchronous>, transform_indices = @transform_6, window_bounds = array<i64: 1, 256>}, {pipeline_mode = #tpu.pipeline_mode<synchronous>, transform_indices = @transform_7, window_bounds = array<i64: 128, 128>}, {pipeline_mode = #tpu.pipeline_mode<synchronous>, transform_indices = @transform_8, window_bounds = array<i64: 1, 128>}, {pipeline_mode = #tpu.pipeline_mode<synchronous>, transform_indices = @transform_9, window_bounds = array<i64: 1, 128>}, {pipeline_mode = #tpu.pipeline_mode<synchronous>, transform_indices = @transform_10, window_bounds = array<i64: 1, 128>}, {transform_indices = @transform_11, window_bounds = array<i64: 1, 8, 128>}]} {
    %c0 = arith.constant 0 : index
    %c0_0 = arith.constant 0 : index
    %c0_1 = arith.constant 0 : index
    %0 = vector.load %arg1[%c0, %c0_0, %c0_1] : memref<1x8x128xbf16, #tpu.memory_space<vmem>>, vector<1x8x128xbf16>
    %1 = vector.shape_cast %0 : vector<1x8x128xbf16> to vector<8x128xbf16>
    %c0_2 = arith.constant 0 : index
    %c0_3 = arith.constant 0 : index
    %c0_4 = arith.constant 0 : index
    %2 = vector.load %arg2[%c0_2, %c0_3, %c0_4] : memref<1x8x128xbf16, #tpu.memory_space<vmem>>, vector<1x8x128xbf16>
    %3 = vector.shape_cast %2 : vector<1x8x128xbf16> to vector<8x128xbf16>
    %c0_5 = arith.constant 0 : index
    %c0_6 = arith.constant 0 : index
    %4 = vector.load %arg4[%c0_5, %c0_6] : memref<128x128xbf16, #tpu.memory_space<vmem>>, vector<128x128xbf16>
    %cst = arith.constant dense<0.000000e+00> : vector<8x128xf32>
    %5 = tpu.matmul %1, %4, %cst {dimension_numbers = #tpu.dot_dimension_numbers<[1], [0], [0], [1], [0, 0, 1, 1], [], []>} : vector<8x128xbf16>, vector<128x128xbf16>, vector<8x128xf32> -> vector<8x128xf32>
    %c0_7 = arith.constant 0 : index
    %c0_8 = arith.constant 0 : index
    %6 = vector.load %arg5[%c0_7, %c0_8] : memref<1x128xf32, #tpu.memory_space<vmem>>, vector<1x128xf32>
    %7 = vector.broadcast %6 : vector<1x128xf32> to vector<8x128xf32>
    %8 = arith.addf %5, %7 : vector<8x128xf32>
    %cst_9 = arith.constant 0.176776692 : f32
    %9 = vector.broadcast %cst_9 : f32 to vector<8x128xf32>
    %10 = arith.mulf %8, %9 : vector<8x128xf32>
    %c0_10 = arith.constant 0 : index
    %c0_11 = arith.constant 0 : index
    %11 = vector.load %arg6[%c0_10, %c0_11] : memref<128x256xbf16, #tpu.memory_space<vmem>>, vector<128x256xbf16>
    %cst_12 = arith.constant dense<0.000000e+00> : vector<8x256xf32>
    %12 = tpu.matmul %3, %11, %cst_12 {dimension_numbers = #tpu.dot_dimension_numbers<[1], [0], [0], [1], [0, 0, 1, 1], [], []>} : vector<8x128xbf16>, vector<128x256xbf16>, vector<8x256xf32> -> vector<8x256xf32>
    %c0_13 = arith.constant 0 : index
    %c0_14 = arith.constant 0 : index
    %13 = vector.load %arg7[%c0_13, %c0_14] : memref<1x256xf32, #tpu.memory_space<vmem>>, vector<1x256xf32>
    %14 = vector.broadcast %13 : vector<1x256xf32> to vector<8x256xf32>
    %15 = arith.addf %12, %14 : vector<8x256xf32>
    %c0_15 = arith.constant 0 : index
    %c0_16 = arith.constant 0 : index
    %c0_17 = arith.constant 0 : index
    %16 = vector.load %arg3[%c0_15, %c0_16, %c0_17] : memref<1x1x8xf32, #tpu.memory_space<vmem>>, vector<1x1x8xf32>
    %17 = vector.shape_cast %16 : vector<1x1x8xf32> to vector<1x8xf32>
    %c0_18 = arith.constant 0 : index
    %c0_19 = arith.constant 0 : index
    %18 = vector.load %arg8[%c0_18, %c0_19] : memref<128x128xbf16, #tpu.memory_space<vmem>>, vector<128x128xbf16>
    %cst_20 = arith.constant 0.000000e+00 : f32
    %19 = vector.broadcast %cst_20 : f32 to vector<8x128xf32>
    %20 = vector.extract_strided_slice %10 {offsets = [0, 0], sizes = [8, 32], strides = [1, 1]} : vector<8x128xf32> to vector<8x32xf32>
    %21 = arith.truncf %20 : vector<8x32xf32> to vector<8x32xbf16>
    %22 = vector.extract_strided_slice %15 {offsets = [0, 0], sizes = [8, 32], strides = [1, 1]} : vector<8x256xf32> to vector<8x32xf32>
    %23 = arith.truncf %22 : vector<8x32xf32> to vector<8x32xbf16>
    %24 = vector.extract_strided_slice %15 {offsets = [0, 128], sizes = [8, 32], strides = [1, 1]} : vector<8x256xf32> to vector<8x32xf32>
    %25 = arith.truncf %24 : vector<8x32xf32> to vector<8x32xbf16>
    %cst_21 = arith.constant dense<0.000000e+00> : vector<8x8xf32>
    %26 = tpu.matmul %21, %23, %cst_21 {dimension_numbers = #tpu.dot_dimension_numbers<[1], [1], [0], [0], [0, 0, 1, 0], [], []>} : vector<8x32xbf16>, vector<8x32xbf16>, vector<8x8xf32> -> vector<8x8xf32>
    %27 = vector.broadcast %17 : vector<1x8xf32> to vector<8x8xf32>
    %28 = arith.addf %26, %27 : vector<8x8xf32>
    %cst_22 = arith.constant dense<0xFF800000> : vector<8xf32>
    %29 = vector.multi_reduction <maximumf>, %28, %cst_22 [1] : vector<8x8xf32> to vector<8xf32>
    %30 = vector.shape_cast %29 : vector<8xf32> to vector<8x1xf32>
    %31 = vector.broadcast %30 : vector<8x1xf32> to vector<8x8xf32>
    %32 = arith.subf %28, %31 : vector<8x8xf32>
    %33 = math.exp %32 : vector<8x8xf32>
    %cst_23 = arith.constant dense<0.000000e+00> : vector<8xf32>
    %34 = vector.multi_reduction <add>, %33, %cst_23 [1] : vector<8x8xf32> to vector<8xf32>
    %35 = vector.shape_cast %34 : vector<8xf32> to vector<8x1xf32>
    %36 = tpu.reciprocal %35 {approx = true} : vector<8x1xf32> -> vector<8x1xf32>
    %37 = vector.broadcast %36 : vector<8x1xf32> to vector<8x8xf32>
    %38 = arith.mulf %33, %37 : vector<8x8xf32>
    %39 = arith.truncf %38 : vector<8x8xf32> to vector<8x8xbf16>
    %cst_24 = arith.constant dense<0.000000e+00> : vector<8x32xf32>
    %40 = tpu.matmul %39, %25, %cst_24 {dimension_numbers = #tpu.dot_dimension_numbers<[1], [0], [0], [1], [0, 0, 1, 1], [], []>} : vector<8x8xbf16>, vector<8x32xbf16>, vector<8x32xf32> -> vector<8x32xf32>
    %41 = arith.truncf %40 : vector<8x32xf32> to vector<8x32xbf16>
    %42 = vector.extract_strided_slice %18 {offsets = [0, 0], sizes = [32, 128], strides = [1, 1]} : vector<128x128xbf16> to vector<32x128xbf16>
    %cst_25 = arith.constant dense<0.000000e+00> : vector<8x128xf32>
    %43 = tpu.matmul %41, %42, %cst_25 {dimension_numbers = #tpu.dot_dimension_numbers<[1], [0], [0], [1], [0, 0, 1, 1], [], []>} : vector<8x32xbf16>, vector<32x128xbf16>, vector<8x128xf32> -> vector<8x128xf32>
    %44 = arith.addf %19, %43 : vector<8x128xf32>
    %45 = vector.extract_strided_slice %10 {offsets = [0, 32], sizes = [8, 32], strides = [1, 1]} : vector<8x128xf32> to vector<8x32xf32>
    %46 = arith.truncf %45 : vector<8x32xf32> to vector<8x32xbf16>
    %47 = vector.extract_strided_slice %15 {offsets = [0, 32], sizes = [8, 32], strides = [1, 1]} : vector<8x256xf32> to vector<8x32xf32>
    %48 = arith.truncf %47 : vector<8x32xf32> to vector<8x32xbf16>
    %49 = vector.extract_strided_slice %15 {offsets = [0, 160], sizes = [8, 32], strides = [1, 1]} : vector<8x256xf32> to vector<8x32xf32>
    %50 = arith.truncf %49 : vector<8x32xf32> to vector<8x32xbf16>
    %cst_26 = arith.constant dense<0.000000e+00> : vector<8x8xf32>
    %51 = tpu.matmul %46, %48, %cst_26 {dimension_numbers = #tpu.dot_dimension_numbers<[1], [1], [0], [0], [0, 0, 1, 0], [], []>} : vector<8x32xbf16>, vector<8x32xbf16>, vector<8x8xf32> -> vector<8x8xf32>
    %52 = vector.broadcast %17 : vector<1x8xf32> to vector<8x8xf32>
    %53 = arith.addf %51, %52 : vector<8x8xf32>
    %cst_27 = arith.constant dense<0xFF800000> : vector<8xf32>
    %54 = vector.multi_reduction <maximumf>, %53, %cst_27 [1] : vector<8x8xf32> to vector<8xf32>
    %55 = vector.shape_cast %54 : vector<8xf32> to vector<8x1xf32>
    %56 = vector.broadcast %55 : vector<8x1xf32> to vector<8x8xf32>
    %57 = arith.subf %53, %56 : vector<8x8xf32>
    %58 = math.exp %57 : vector<8x8xf32>
    %cst_28 = arith.constant dense<0.000000e+00> : vector<8xf32>
    %59 = vector.multi_reduction <add>, %58, %cst_28 [1] : vector<8x8xf32> to vector<8xf32>
    %60 = vector.shape_cast %59 : vector<8xf32> to vector<8x1xf32>
    %61 = tpu.reciprocal %60 {approx = true} : vector<8x1xf32> -> vector<8x1xf32>
    %62 = vector.broadcast %61 : vector<8x1xf32> to vector<8x8xf32>
    %63 = arith.mulf %58, %62 : vector<8x8xf32>
    %64 = arith.truncf %63 : vector<8x8xf32> to vector<8x8xbf16>
    %cst_29 = arith.constant dense<0.000000e+00> : vector<8x32xf32>
    %65 = tpu.matmul %64, %50, %cst_29 {dimension_numbers = #tpu.dot_dimension_numbers<[1], [0], [0], [1], [0, 0, 1, 1], [], []>} : vector<8x8xbf16>, vector<8x32xbf16>, vector<8x32xf32> -> vector<8x32xf32>
    %66 = arith.truncf %65 : vector<8x32xf32> to vector<8x32xbf16>
    %67 = vector.extract_strided_slice %18 {offsets = [32, 0], sizes = [32, 128], strides = [1, 1]} : vector<128x128xbf16> to vector<32x128xbf16>
    %cst_30 = arith.constant dense<0.000000e+00> : vector<8x128xf32>
    %68 = tpu.matmul %66, %67, %cst_30 {dimension_numbers = #tpu.dot_dimension_numbers<[1], [0], [0], [1], [0, 0, 1, 1], [], []>} : vector<8x32xbf16>, vector<32x128xbf16>, vector<8x128xf32> -> vector<8x128xf32>
    %69 = arith.addf %44, %68 : vector<8x128xf32>
    %70 = vector.extract_strided_slice %10 {offsets = [0, 64], sizes = [8, 32], strides = [1, 1]} : vector<8x128xf32> to vector<8x32xf32>
    %71 = arith.truncf %70 : vector<8x32xf32> to vector<8x32xbf16>
    %72 = vector.extract_strided_slice %15 {offsets = [0, 64], sizes = [8, 32], strides = [1, 1]} : vector<8x256xf32> to vector<8x32xf32>
    %73 = arith.truncf %72 : vector<8x32xf32> to vector<8x32xbf16>
    %74 = vector.extract_strided_slice %15 {offsets = [0, 192], sizes = [8, 32], strides = [1, 1]} : vector<8x256xf32> to vector<8x32xf32>
    %75 = arith.truncf %74 : vector<8x32xf32> to vector<8x32xbf16>
    %cst_31 = arith.constant dense<0.000000e+00> : vector<8x8xf32>
    %76 = tpu.matmul %71, %73, %cst_31 {dimension_numbers = #tpu.dot_dimension_numbers<[1], [1], [0], [0], [0, 0, 1, 0], [], []>} : vector<8x32xbf16>, vector<8x32xbf16>, vector<8x8xf32> -> vector<8x8xf32>
    %77 = vector.broadcast %17 : vector<1x8xf32> to vector<8x8xf32>
    %78 = arith.addf %76, %77 : vector<8x8xf32>
    %cst_32 = arith.constant dense<0xFF800000> : vector<8xf32>
    %79 = vector.multi_reduction <maximumf>, %78, %cst_32 [1] : vector<8x8xf32> to vector<8xf32>
    %80 = vector.shape_cast %79 : vector<8xf32> to vector<8x1xf32>
    %81 = vector.broadcast %80 : vector<8x1xf32> to vector<8x8xf32>
    %82 = arith.subf %78, %81 : vector<8x8xf32>
    %83 = math.exp %82 : vector<8x8xf32>
    %cst_33 = arith.constant dense<0.000000e+00> : vector<8xf32>
    %84 = vector.multi_reduction <add>, %83, %cst_33 [1] : vector<8x8xf32> to vector<8xf32>
    %85 = vector.shape_cast %84 : vector<8xf32> to vector<8x1xf32>
    %86 = tpu.reciprocal %85 {approx = true} : vector<8x1xf32> -> vector<8x1xf32>
    %87 = vector.broadcast %86 : vector<8x1xf32> to vector<8x8xf32>
    %88 = arith.mulf %83, %87 : vector<8x8xf32>
    %89 = arith.truncf %88 : vector<8x8xf32> to vector<8x8xbf16>
    %cst_34 = arith.constant dense<0.000000e+00> : vector<8x32xf32>
    %90 = tpu.matmul %89, %75, %cst_34 {dimension_numbers = #tpu.dot_dimension_numbers<[1], [0], [0], [1], [0, 0, 1, 1], [], []>} : vector<8x8xbf16>, vector<8x32xbf16>, vector<8x32xf32> -> vector<8x32xf32>
    %91 = arith.truncf %90 : vector<8x32xf32> to vector<8x32xbf16>
    %92 = vector.extract_strided_slice %18 {offsets = [64, 0], sizes = [32, 128], strides = [1, 1]} : vector<128x128xbf16> to vector<32x128xbf16>
    %cst_35 = arith.constant dense<0.000000e+00> : vector<8x128xf32>
    %93 = tpu.matmul %91, %92, %cst_35 {dimension_numbers = #tpu.dot_dimension_numbers<[1], [0], [0], [1], [0, 0, 1, 1], [], []>} : vector<8x32xbf16>, vector<32x128xbf16>, vector<8x128xf32> -> vector<8x128xf32>
    %94 = arith.addf %69, %93 : vector<8x128xf32>
    %95 = vector.extract_strided_slice %10 {offsets = [0, 96], sizes = [8, 32], strides = [1, 1]} : vector<8x128xf32> to vector<8x32xf32>
    %96 = arith.truncf %95 : vector<8x32xf32> to vector<8x32xbf16>
    %97 = vector.extract_strided_slice %15 {offsets = [0, 96], sizes = [8, 32], strides = [1, 1]} : vector<8x256xf32> to vector<8x32xf32>
    %98 = arith.truncf %97 : vector<8x32xf32> to vector<8x32xbf16>
    %99 = vector.extract_strided_slice %15 {offsets = [0, 224], sizes = [8, 32], strides = [1, 1]} : vector<8x256xf32> to vector<8x32xf32>
    %100 = arith.truncf %99 : vector<8x32xf32> to vector<8x32xbf16>
    %cst_36 = arith.constant dense<0.000000e+00> : vector<8x8xf32>
    %101 = tpu.matmul %96, %98, %cst_36 {dimension_numbers = #tpu.dot_dimension_numbers<[1], [1], [0], [0], [0, 0, 1, 0], [], []>} : vector<8x32xbf16>, vector<8x32xbf16>, vector<8x8xf32> -> vector<8x8xf32>
    %102 = vector.broadcast %17 : vector<1x8xf32> to vector<8x8xf32>
    %103 = arith.addf %101, %102 : vector<8x8xf32>
    %cst_37 = arith.constant dense<0xFF800000> : vector<8xf32>
    %104 = vector.multi_reduction <maximumf>, %103, %cst_37 [1] : vector<8x8xf32> to vector<8xf32>
    %105 = vector.shape_cast %104 : vector<8xf32> to vector<8x1xf32>
    %106 = vector.broadcast %105 : vector<8x1xf32> to vector<8x8xf32>
    %107 = arith.subf %103, %106 : vector<8x8xf32>
    %108 = math.exp %107 : vector<8x8xf32>
    %cst_38 = arith.constant dense<0.000000e+00> : vector<8xf32>
    %109 = vector.multi_reduction <add>, %108, %cst_38 [1] : vector<8x8xf32> to vector<8xf32>
    %110 = vector.shape_cast %109 : vector<8xf32> to vector<8x1xf32>
    %111 = tpu.reciprocal %110 {approx = true} : vector<8x1xf32> -> vector<8x1xf32>
    %112 = vector.broadcast %111 : vector<8x1xf32> to vector<8x8xf32>
    %113 = arith.mulf %108, %112 : vector<8x8xf32>
    %114 = arith.truncf %113 : vector<8x8xf32> to vector<8x8xbf16>
    %cst_39 = arith.constant dense<0.000000e+00> : vector<8x32xf32>
    %115 = tpu.matmul %114, %100, %cst_39 {dimension_numbers = #tpu.dot_dimension_numbers<[1], [0], [0], [1], [0, 0, 1, 1], [], []>} : vector<8x8xbf16>, vector<8x32xbf16>, vector<8x32xf32> -> vector<8x32xf32>
    %116 = arith.truncf %115 : vector<8x32xf32> to vector<8x32xbf16>
    %117 = vector.extract_strided_slice %18 {offsets = [96, 0], sizes = [32, 128], strides = [1, 1]} : vector<128x128xbf16> to vector<32x128xbf16>
    %cst_40 = arith.constant dense<0.000000e+00> : vector<8x128xf32>
    %118 = tpu.matmul %116, %117, %cst_40 {dimension_numbers = #tpu.dot_dimension_numbers<[1], [0], [0], [1], [0, 0, 1, 1], [], []>} : vector<8x32xbf16>, vector<32x128xbf16>, vector<8x128xf32> -> vector<8x128xf32>
    %119 = arith.addf %94, %118 : vector<8x128xf32>
    %c0_41 = arith.constant 0 : index
    %c0_42 = arith.constant 0 : index
    %120 = vector.load %arg9[%c0_41, %c0_42] : memref<1x128xf32, #tpu.memory_space<vmem>>, vector<1x128xf32>
    %121 = vector.broadcast %120 : vector<1x128xf32> to vector<8x128xf32>
    %122 = arith.addf %119, %121 : vector<8x128xf32>
    %123 = arith.extf %1 : vector<8x128xbf16> to vector<8x128xf32>
    %124 = arith.addf %122, %123 : vector<8x128xf32>
    %cst_43 = arith.constant dense<0.000000e+00> : vector<8xf32>
    %125 = vector.multi_reduction <add>, %124, %cst_43 [1] : vector<8x128xf32> to vector<8xf32>
    %126 = vector.shape_cast %125 : vector<8xf32> to vector<8x1xf32>
    %cst_44 = arith.constant 1.280000e+02 : f32
    %127 = vector.broadcast %cst_44 : f32 to vector<8x1xf32>
    %128 = arith.divf %126, %127 : vector<8x1xf32>
    %129 = vector.broadcast %128 : vector<8x1xf32> to vector<8x128xf32>
    %130 = arith.subf %124, %129 : vector<8x128xf32>
    %131 = arith.mulf %130, %130 : vector<8x128xf32>
    %cst_45 = arith.constant dense<0.000000e+00> : vector<8xf32>
    %132 = vector.multi_reduction <add>, %131, %cst_45 [1] : vector<8x128xf32> to vector<8xf32>
    %133 = vector.shape_cast %132 : vector<8xf32> to vector<8x1xf32>
    %cst_46 = arith.constant 1.280000e+02 : f32
    %134 = vector.broadcast %cst_46 : f32 to vector<8x1xf32>
    %135 = arith.divf %133, %134 : vector<8x1xf32>
    %136 = vector.broadcast %128 : vector<8x1xf32> to vector<8x128xf32>
    %137 = arith.subf %124, %136 : vector<8x128xf32>
    %cst_47 = arith.constant 9.99999974E-6 : f32
    %138 = vector.broadcast %cst_47 : f32 to vector<8x1xf32>
    %139 = arith.addf %135, %138 : vector<8x1xf32>
    %140 = math.rsqrt %139 : vector<8x1xf32>
    %141 = vector.broadcast %140 : vector<8x1xf32> to vector<8x128xf32>
    %142 = arith.mulf %137, %141 : vector<8x128xf32>
    %c0_48 = arith.constant 0 : index
    %c0_49 = arith.constant 0 : index
    %143 = vector.load %arg10[%c0_48, %c0_49] : memref<1x128xf32, #tpu.memory_space<vmem>>, vector<1x128xf32>
    %144 = vector.broadcast %143 : vector<1x128xf32> to vector<8x128xf32>
    %145 = arith.mulf %142, %144 : vector<8x128xf32>
    %c0_50 = arith.constant 0 : index
    %c0_51 = arith.constant 0 : index
    %146 = vector.load %arg11[%c0_50, %c0_51] : memref<1x128xf32, #tpu.memory_space<vmem>>, vector<1x128xf32>
    %147 = vector.broadcast %146 : vector<1x128xf32> to vector<8x128xf32>
    %148 = arith.addf %145, %147 : vector<8x128xf32>
    %149 = arith.truncf %148 : vector<8x128xf32> to vector<8x128xbf16>
    %c0_52 = arith.constant 0 : index
    %c0_53 = arith.constant 0 : index
    %c0_54 = arith.constant 0 : index
    %150 = vector.load %arg12[%c0_52, %c0_53, %c0_54] : memref<1x8x128xbf16, #tpu.memory_space<vmem>>, vector<1x8x128xbf16>
    %151 = vector.shape_cast %150 : vector<1x8x128xbf16> to vector<8x128xbf16>
    %152 = vector.shape_cast %149 : vector<8x128xbf16> to vector<1x8x128xbf16>
    tpu.vector_store %arg12[%c0_52, %c0_53, %c0_54], %152 {strides = array<i32>} : memref<1x8x128xbf16, #tpu.memory_space<vmem>>, vector<1x8x128xbf16>,
    return
  }
  func.func @transform_0(%arg0: i32) -> (i32, i32, i32) {
    %c0_i32 = arith.constant 0 : i32
    %c0_i32_0 = arith.constant 0 : i32
    %c0_i32_1 = arith.constant 0 : i32
    return %arg0, %c0_i32, %c0_i32_0 : i32, i32, i32
  }
  func.func @transform_1(%arg0: i32) -> (i32, i32, i32) {
    %c0_i32 = arith.constant 0 : i32
    %c0_i32_0 = arith.constant 0 : i32
    %c0_i32_1 = arith.constant 0 : i32
    return %arg0, %c0_i32, %c0_i32_0 : i32, i32, i32
  }
  func.func @transform_2(%arg0: i32) -> (i32, i32, i32) {
    %c0_i32 = arith.constant 0 : i32
    %c0_i32_0 = arith.constant 0 : i32
    %c0_i32_1 = arith.constant 0 : i32
    return %arg0, %c0_i32, %c0_i32_0 : i32, i32, i32
  }
  func.func @transform_3(%arg0: i32) -> (i32, i32) {
    %c0_i32 = arith.constant 0 : i32
    %c0_i32_0 = arith.constant 0 : i32
    %c0_i32_1 = arith.constant 0 : i32
    return %c0_i32, %c0_i32_0 : i32, i32
  }
  func.func @transform_4(%arg0: i32) -> (i32, i32) {
    %c0_i32 = arith.constant 0 : i32
    %c0_i32_0 = arith.constant 0 : i32
    %c0_i32_1 = arith.constant 0 : i32
    return %c0_i32, %c0_i32_0 : i32, i32
  }
  func.func @transform_5(%arg0: i32) -> (i32, i32) {
    %c0_i32 = arith.constant 0 : i32
    %c0_i32_0 = arith.constant 0 : i32
    %c0_i32_1 = arith.constant 0 : i32
    return %c0_i32, %c0_i32_0 : i32, i32
  }
  func.func @transform_6(%arg0: i32) -> (i32, i32) {
    %c0_i32 = arith.constant 0 : i32
    %c0_i32_0 = arith.constant 0 : i32
    %c0_i32_1 = arith.constant 0 : i32
    return %c0_i32, %c0_i32_0 : i32, i32
  }
  func.func @transform_7(%arg0: i32) -> (i32, i32) {
    %c0_i32 = arith.constant 0 : i32
    %c0_i32_0 = arith.constant 0 : i32
    %c0_i32_1 = arith.constant 0 : i32
    return %c0_i32, %c0_i32_0 : i32, i32
  }
  func.func @transform_8(%arg0: i32) -> (i32, i32) {
    %c0_i32 = arith.constant 0 : i32
    %c0_i32_0 = arith.constant 0 : i32
    %c0_i32_1 = arith.constant 0 : i32
    return %c0_i32, %c0_i32_0 : i32, i32
  }
  func.func @transform_9(%arg0: i32) -> (i32, i32) {
    %c0_i32 = arith.constant 0 : i32
    %c0_i32_0 = arith.constant 0 : i32
    %c0_i32_1 = arith.constant 0 : i32
    return %c0_i32, %c0_i32_0 : i32, i32
  }
  func.func @transform_10(%arg0: i32) -> (i32, i32) {
    %c0_i32 = arith.constant 0 : i32
    %c0_i32_0 = arith.constant 0 : i32
    %c0_i32_1 = arith.constant 0 : i32
    return %c0_i32, %c0_i32_0 : i32, i32
  }
  func.func @transform_11(%arg0: i32) -> (i32, i32, i32) {
    %c0_i32 = arith.constant 0 : i32
    %c0_i32_0 = arith.constant 0 : i32
    %c0_i32_1 = arith.constant 0 : i32
    return %arg0, %c0_i32, %c0_i32_0 : i32, i32, i32
  }
}

module attributes {stable_mosaic.version = 11 : i64} {
  func.func @_ffn_ln_kernel(%arg0: i32, %arg1: memref<8x128xbf16, #tpu.memory_space<vmem>>, %arg2: memref<128x256xbf16, #tpu.memory_space<vmem>>, %arg3: memref<1x256xf32, #tpu.memory_space<vmem>>, %arg4: memref<256x128xbf16, #tpu.memory_space<vmem>>, %arg5: memref<1x128xf32, #tpu.memory_space<vmem>>, %arg6: memref<1x128xf32, #tpu.memory_space<vmem>>, %arg7: memref<1x128xf32, #tpu.memory_space<vmem>>, %arg8: memref<8x128xbf16, #tpu.memory_space<vmem>>) attributes {dimension_semantics = [#tpu.dimension_semantics<parallel>], iteration_bounds = array<i64: 2>, scalar_prefetch = 0 : i64, scratch_operands = 0 : i64, tpu.core_type = #tpu.core_type<tc>, window_params = [{transform_indices = @transform_0, window_bounds = array<i64: 8, 128>}, {pipeline_mode = #tpu.pipeline_mode<synchronous>, transform_indices = @transform_1, window_bounds = array<i64: 128, 256>}, {pipeline_mode = #tpu.pipeline_mode<synchronous>, transform_indices = @transform_2, window_bounds = array<i64: 1, 256>}, {pipeline_mode = #tpu.pipeline_mode<synchronous>, transform_indices = @transform_3, window_bounds = array<i64: 256, 128>}, {pipeline_mode = #tpu.pipeline_mode<synchronous>, transform_indices = @transform_4, window_bounds = array<i64: 1, 128>}, {pipeline_mode = #tpu.pipeline_mode<synchronous>, transform_indices = @transform_5, window_bounds = array<i64: 1, 128>}, {pipeline_mode = #tpu.pipeline_mode<synchronous>, transform_indices = @transform_6, window_bounds = array<i64: 1, 128>}, {transform_indices = @transform_7, window_bounds = array<i64: 8, 128>}]} {
    %c0 = arith.constant 0 : index
    %c0_0 = arith.constant 0 : index
    %0 = vector.load %arg1[%c0, %c0_0] : memref<8x128xbf16, #tpu.memory_space<vmem>>, vector<8x128xbf16>
    %c0_1 = arith.constant 0 : index
    %c0_2 = arith.constant 0 : index
    %1 = vector.load %arg2[%c0_1, %c0_2] : memref<128x256xbf16, #tpu.memory_space<vmem>>, vector<128x256xbf16>
    %cst = arith.constant dense<0.000000e+00> : vector<8x256xf32>
    %2 = tpu.matmul %0, %1, %cst {dimension_numbers = #tpu.dot_dimension_numbers<[1], [0], [0], [1], [0, 0, 1, 1], [], []>} : vector<8x128xbf16>, vector<128x256xbf16>, vector<8x256xf32> -> vector<8x256xf32>
    %c0_3 = arith.constant 0 : index
    %c0_4 = arith.constant 0 : index
    %3 = vector.load %arg3[%c0_3, %c0_4] : memref<1x256xf32, #tpu.memory_space<vmem>>, vector<1x256xf32>
    %4 = vector.broadcast %3 : vector<1x256xf32> to vector<8x256xf32>
    %5 = arith.addf %2, %4 : vector<8x256xf32>
    %cst_5 = arith.constant 0.000000e+00 : f32
    %6 = vector.broadcast %cst_5 : f32 to vector<8x256xf32>
    %7 = arith.maximumf %5, %6 : vector<8x256xf32>
    %8 = arith.truncf %7 : vector<8x256xf32> to vector<8x256xbf16>
    %c0_6 = arith.constant 0 : index
    %c0_7 = arith.constant 0 : index
    %9 = vector.load %arg4[%c0_6, %c0_7] : memref<256x128xbf16, #tpu.memory_space<vmem>>, vector<256x128xbf16>
    %cst_8 = arith.constant dense<0.000000e+00> : vector<8x128xf32>
    %10 = tpu.matmul %8, %9, %cst_8 {dimension_numbers = #tpu.dot_dimension_numbers<[1], [0], [0], [1], [0, 0, 1, 1], [], []>} : vector<8x256xbf16>, vector<256x128xbf16>, vector<8x128xf32> -> vector<8x128xf32>
    %c0_9 = arith.constant 0 : index
    %c0_10 = arith.constant 0 : index
    %11 = vector.load %arg5[%c0_9, %c0_10] : memref<1x128xf32, #tpu.memory_space<vmem>>, vector<1x128xf32>
    %12 = vector.broadcast %11 : vector<1x128xf32> to vector<8x128xf32>
    %13 = arith.addf %10, %12 : vector<8x128xf32>
    %14 = arith.extf %0 : vector<8x128xbf16> to vector<8x128xf32>
    %15 = arith.addf %13, %14 : vector<8x128xf32>
    %cst_11 = arith.constant dense<0.000000e+00> : vector<8xf32>
    %16 = vector.multi_reduction <add>, %15, %cst_11 [1] : vector<8x128xf32> to vector<8xf32>
    %17 = vector.shape_cast %16 : vector<8xf32> to vector<8x1xf32>
    %cst_12 = arith.constant 1.280000e+02 : f32
    %18 = vector.broadcast %cst_12 : f32 to vector<8x1xf32>
    %19 = arith.divf %17, %18 : vector<8x1xf32>
    %20 = vector.broadcast %19 : vector<8x1xf32> to vector<8x128xf32>
    %21 = arith.subf %15, %20 : vector<8x128xf32>
    %22 = arith.mulf %21, %21 : vector<8x128xf32>
    %cst_13 = arith.constant dense<0.000000e+00> : vector<8xf32>
    %23 = vector.multi_reduction <add>, %22, %cst_13 [1] : vector<8x128xf32> to vector<8xf32>
    %24 = vector.shape_cast %23 : vector<8xf32> to vector<8x1xf32>
    %cst_14 = arith.constant 1.280000e+02 : f32
    %25 = vector.broadcast %cst_14 : f32 to vector<8x1xf32>
    %26 = arith.divf %24, %25 : vector<8x1xf32>
    %27 = vector.broadcast %19 : vector<8x1xf32> to vector<8x128xf32>
    %28 = arith.subf %15, %27 : vector<8x128xf32>
    %cst_15 = arith.constant 9.99999974E-6 : f32
    %29 = vector.broadcast %cst_15 : f32 to vector<8x1xf32>
    %30 = arith.addf %26, %29 : vector<8x1xf32>
    %31 = math.rsqrt %30 : vector<8x1xf32>
    %32 = vector.broadcast %31 : vector<8x1xf32> to vector<8x128xf32>
    %33 = arith.mulf %28, %32 : vector<8x128xf32>
    %c0_16 = arith.constant 0 : index
    %c0_17 = arith.constant 0 : index
    %34 = vector.load %arg6[%c0_16, %c0_17] : memref<1x128xf32, #tpu.memory_space<vmem>>, vector<1x128xf32>
    %35 = vector.broadcast %34 : vector<1x128xf32> to vector<8x128xf32>
    %36 = arith.mulf %33, %35 : vector<8x128xf32>
    %c0_18 = arith.constant 0 : index
    %c0_19 = arith.constant 0 : index
    %37 = vector.load %arg7[%c0_18, %c0_19] : memref<1x128xf32, #tpu.memory_space<vmem>>, vector<1x128xf32>
    %38 = vector.broadcast %37 : vector<1x128xf32> to vector<8x128xf32>
    %39 = arith.addf %36, %38 : vector<8x128xf32>
    %40 = arith.truncf %39 : vector<8x128xf32> to vector<8x128xbf16>
    %c0_20 = arith.constant 0 : index
    %c0_21 = arith.constant 0 : index
    %41 = vector.load %arg8[%c0_20, %c0_21] : memref<8x128xbf16, #tpu.memory_space<vmem>>, vector<8x128xbf16>
    tpu.vector_store %arg8[%c0_20, %c0_21], %40 {strides = array<i32>} : memref<8x128xbf16, #tpu.memory_space<vmem>>, vector<8x128xbf16>,
    return
  }
  func.func @transform_0(%arg0: i32) -> (i32, i32) {
    %c0_i32 = arith.constant 0 : i32
    %c0_i32_0 = arith.constant 0 : i32
    return %arg0, %c0_i32 : i32, i32
  }
  func.func @transform_1(%arg0: i32) -> (i32, i32) {
    %c0_i32 = arith.constant 0 : i32
    %c0_i32_0 = arith.constant 0 : i32
    %c0_i32_1 = arith.constant 0 : i32
    return %c0_i32, %c0_i32_0 : i32, i32
  }
  func.func @transform_2(%arg0: i32) -> (i32, i32) {
    %c0_i32 = arith.constant 0 : i32
    %c0_i32_0 = arith.constant 0 : i32
    %c0_i32_1 = arith.constant 0 : i32
    return %c0_i32, %c0_i32_0 : i32, i32
  }
  func.func @transform_3(%arg0: i32) -> (i32, i32) {
    %c0_i32 = arith.constant 0 : i32
    %c0_i32_0 = arith.constant 0 : i32
    %c0_i32_1 = arith.constant 0 : i32
    return %c0_i32, %c0_i32_0 : i32, i32
  }
  func.func @transform_4(%arg0: i32) -> (i32, i32) {
    %c0_i32 = arith.constant 0 : i32
    %c0_i32_0 = arith.constant 0 : i32
    %c0_i32_1 = arith.constant 0 : i32
    return %c0_i32, %c0_i32_0 : i32, i32
  }
  func.func @transform_5(%arg0: i32) -> (i32, i32) {
    %c0_i32 = arith.constant 0 : i32
    %c0_i32_0 = arith.constant 0 : i32
    %c0_i32_1 = arith.constant 0 : i32
    return %c0_i32, %c0_i32_0 : i32, i32
  }
  func.func @transform_6(%arg0: i32) -> (i32, i32) {
    %c0_i32 = arith.constant 0 : i32
    %c0_i32_0 = arith.constant 0 : i32
    %c0_i32_1 = arith.constant 0 : i32
    return %c0_i32, %c0_i32_0 : i32, i32
  }
  func.func @transform_7(%arg0: i32) -> (i32, i32) {
    %c0_i32 = arith.constant 0 : i32
    %c0_i32_0 = arith.constant 0 : i32
    return %arg0, %c0_i32 : i32, i32
  }
}

module attributes {stable_mosaic.version = 11 : i64} {
  func.func @_mha_kernel(%arg0: i32, %arg1: memref<1x8x128xbf16, #tpu.memory_space<vmem>>, %arg2: memref<1x8x128xbf16, #tpu.memory_space<vmem>>, %arg3: memref<1x1x8xf32, #tpu.memory_space<vmem>>, %arg4: memref<128x128xbf16, #tpu.memory_space<vmem>>, %arg5: memref<1x128xf32, #tpu.memory_space<vmem>>, %arg6: memref<128x256xbf16, #tpu.memory_space<vmem>>, %arg7: memref<1x256xf32, #tpu.memory_space<vmem>>, %arg8: memref<128x128xbf16, #tpu.memory_space<vmem>>, %arg9: memref<1x128xf32, #tpu.memory_space<vmem>>, %arg10: memref<1x128xf32, #tpu.memory_space<vmem>>, %arg11: memref<1x128xf32, #tpu.memory_space<vmem>>, %arg12: memref<1x8x128xbf16, #tpu.memory_space<vmem>>) attributes {dimension_semantics = [#tpu.dimension_semantics<parallel>], iteration_bounds = array<i64: 2>, scalar_prefetch = 0 : i64, scratch_operands = 0 : i64, tpu.core_type = #tpu.core_type<tc>, window_params = [{transform_indices = @transform_0, window_bounds = array<i64: 1, 8, 128>}, {transform_indices = @transform_1, window_bounds = array<i64: 1, 8, 128>}, {transform_indices = @transform_2, window_bounds = array<i64: 1, 1, 8>}, {pipeline_mode = #tpu.pipeline_mode<synchronous>, transform_indices = @transform_3, window_bounds = array<i64: 128, 128>}, {pipeline_mode = #tpu.pipeline_mode<synchronous>, transform_indices = @transform_4, window_bounds = array<i64: 1, 128>}, {pipeline_mode = #tpu.pipeline_mode<synchronous>, transform_indices = @transform_5, window_bounds = array<i64: 128, 256>}, {pipeline_mode = #tpu.pipeline_mode<synchronous>, transform_indices = @transform_6, window_bounds = array<i64: 1, 256>}, {pipeline_mode = #tpu.pipeline_mode<synchronous>, transform_indices = @transform_7, window_bounds = array<i64: 128, 128>}, {pipeline_mode = #tpu.pipeline_mode<synchronous>, transform_indices = @transform_8, window_bounds = array<i64: 1, 128>}, {pipeline_mode = #tpu.pipeline_mode<synchronous>, transform_indices = @transform_9, window_bounds = array<i64: 1, 128>}, {pipeline_mode = #tpu.pipeline_mode<synchronous>, transform_indices = @transform_10, window_bounds = array<i64: 1, 128>}, {transform_indices = @transform_11, window_bounds = array<i64: 1, 8, 128>}]} {
    %c0 = arith.constant 0 : index
    %c0_0 = arith.constant 0 : index
    %c0_1 = arith.constant 0 : index
    %0 = vector.load %arg1[%c0, %c0_0, %c0_1] : memref<1x8x128xbf16, #tpu.memory_space<vmem>>, vector<1x8x128xbf16>
    %1 = vector.shape_cast %0 : vector<1x8x128xbf16> to vector<8x128xbf16>
    %c0_2 = arith.constant 0 : index
    %c0_3 = arith.constant 0 : index
    %c0_4 = arith.constant 0 : index
    %2 = vector.load %arg2[%c0_2, %c0_3, %c0_4] : memref<1x8x128xbf16, #tpu.memory_space<vmem>>, vector<1x8x128xbf16>
    %3 = vector.shape_cast %2 : vector<1x8x128xbf16> to vector<8x128xbf16>
    %c0_5 = arith.constant 0 : index
    %c0_6 = arith.constant 0 : index
    %4 = vector.load %arg4[%c0_5, %c0_6] : memref<128x128xbf16, #tpu.memory_space<vmem>>, vector<128x128xbf16>
    %cst = arith.constant dense<0.000000e+00> : vector<8x128xf32>
    %5 = tpu.matmul %1, %4, %cst {dimension_numbers = #tpu.dot_dimension_numbers<[1], [0], [0], [1], [0, 0, 1, 1], [], []>} : vector<8x128xbf16>, vector<128x128xbf16>, vector<8x128xf32> -> vector<8x128xf32>
    %c0_7 = arith.constant 0 : index
    %c0_8 = arith.constant 0 : index
    %6 = vector.load %arg5[%c0_7, %c0_8] : memref<1x128xf32, #tpu.memory_space<vmem>>, vector<1x128xf32>
    %7 = vector.broadcast %6 : vector<1x128xf32> to vector<8x128xf32>
    %8 = arith.addf %5, %7 : vector<8x128xf32>
    %cst_9 = arith.constant 0.176776692 : f32
    %9 = vector.broadcast %cst_9 : f32 to vector<8x128xf32>
    %10 = arith.mulf %8, %9 : vector<8x128xf32>
    %c0_10 = arith.constant 0 : index
    %c0_11 = arith.constant 0 : index
    %11 = vector.load %arg6[%c0_10, %c0_11] : memref<128x256xbf16, #tpu.memory_space<vmem>>, vector<128x256xbf16>
    %cst_12 = arith.constant dense<0.000000e+00> : vector<8x256xf32>
    %12 = tpu.matmul %3, %11, %cst_12 {dimension_numbers = #tpu.dot_dimension_numbers<[1], [0], [0], [1], [0, 0, 1, 1], [], []>} : vector<8x128xbf16>, vector<128x256xbf16>, vector<8x256xf32> -> vector<8x256xf32>
    %c0_13 = arith.constant 0 : index
    %c0_14 = arith.constant 0 : index
    %13 = vector.load %arg7[%c0_13, %c0_14] : memref<1x256xf32, #tpu.memory_space<vmem>>, vector<1x256xf32>
    %14 = vector.broadcast %13 : vector<1x256xf32> to vector<8x256xf32>
    %15 = arith.addf %12, %14 : vector<8x256xf32>
    %c0_15 = arith.constant 0 : index
    %c0_16 = arith.constant 0 : index
    %c0_17 = arith.constant 0 : index
    %16 = vector.load %arg3[%c0_15, %c0_16, %c0_17] : memref<1x1x8xf32, #tpu.memory_space<vmem>>, vector<1x1x8xf32>
    %17 = vector.shape_cast %16 : vector<1x1x8xf32> to vector<1x8xf32>
    %18 = tpu.iota {dimensions = array<i32: 0>} : vector<8x8xi32>
    %19 = tpu.iota {dimensions = array<i32: 1>} : vector<8x8xi32>
    %20 = arith.cmpi sgt, %19, %18 : vector<8x8xi32>
    %c0_18 = arith.constant 0 : index
    %c0_19 = arith.constant 0 : index
    %21 = vector.load %arg8[%c0_18, %c0_19] : memref<128x128xbf16, #tpu.memory_space<vmem>>, vector<128x128xbf16>
    %cst_20 = arith.constant 0.000000e+00 : f32
    %22 = vector.broadcast %cst_20 : f32 to vector<8x128xf32>
    %23 = vector.extract_strided_slice %10 {offsets = [0, 0], sizes = [8, 32], strides = [1, 1]} : vector<8x128xf32> to vector<8x32xf32>
    %24 = arith.truncf %23 : vector<8x32xf32> to vector<8x32xbf16>
    %25 = vector.extract_strided_slice %15 {offsets = [0, 0], sizes = [8, 32], strides = [1, 1]} : vector<8x256xf32> to vector<8x32xf32>
    %26 = arith.truncf %25 : vector<8x32xf32> to vector<8x32xbf16>
    %27 = vector.extract_strided_slice %15 {offsets = [0, 128], sizes = [8, 32], strides = [1, 1]} : vector<8x256xf32> to vector<8x32xf32>
    %28 = arith.truncf %27 : vector<8x32xf32> to vector<8x32xbf16>
    %cst_21 = arith.constant dense<0.000000e+00> : vector<8x8xf32>
    %29 = tpu.matmul %24, %26, %cst_21 {dimension_numbers = #tpu.dot_dimension_numbers<[1], [1], [0], [0], [0, 0, 1, 0], [], []>} : vector<8x32xbf16>, vector<8x32xbf16>, vector<8x8xf32> -> vector<8x8xf32>
    %30 = vector.broadcast %17 : vector<1x8xf32> to vector<8x8xf32>
    %31 = arith.addf %29, %30 : vector<8x8xf32>
    %cst_22 = arith.constant -1.000000e+09 : f32
    %32 = vector.broadcast %cst_22 : f32 to vector<8x8xf32>
    %33 = arith.select %20, %32, %31 : vector<8x8xi1>, vector<8x8xf32>
    %cst_23 = arith.constant dense<0xFF800000> : vector<8xf32>
    %34 = vector.multi_reduction <maximumf>, %33, %cst_23 [1] : vector<8x8xf32> to vector<8xf32>
    %35 = vector.shape_cast %34 : vector<8xf32> to vector<8x1xf32>
    %36 = vector.broadcast %35 : vector<8x1xf32> to vector<8x8xf32>
    %37 = arith.subf %33, %36 : vector<8x8xf32>
    %38 = math.exp %37 : vector<8x8xf32>
    %cst_24 = arith.constant dense<0.000000e+00> : vector<8xf32>
    %39 = vector.multi_reduction <add>, %38, %cst_24 [1] : vector<8x8xf32> to vector<8xf32>
    %40 = vector.shape_cast %39 : vector<8xf32> to vector<8x1xf32>
    %41 = tpu.reciprocal %40 {approx = true} : vector<8x1xf32> -> vector<8x1xf32>
    %42 = vector.broadcast %41 : vector<8x1xf32> to vector<8x8xf32>
    %43 = arith.mulf %38, %42 : vector<8x8xf32>
    %44 = arith.truncf %43 : vector<8x8xf32> to vector<8x8xbf16>
    %cst_25 = arith.constant dense<0.000000e+00> : vector<8x32xf32>
    %45 = tpu.matmul %44, %28, %cst_25 {dimension_numbers = #tpu.dot_dimension_numbers<[1], [0], [0], [1], [0, 0, 1, 1], [], []>} : vector<8x8xbf16>, vector<8x32xbf16>, vector<8x32xf32> -> vector<8x32xf32>
    %46 = arith.truncf %45 : vector<8x32xf32> to vector<8x32xbf16>
    %47 = vector.extract_strided_slice %21 {offsets = [0, 0], sizes = [32, 128], strides = [1, 1]} : vector<128x128xbf16> to vector<32x128xbf16>
    %cst_26 = arith.constant dense<0.000000e+00> : vector<8x128xf32>
    %48 = tpu.matmul %46, %47, %cst_26 {dimension_numbers = #tpu.dot_dimension_numbers<[1], [0], [0], [1], [0, 0, 1, 1], [], []>} : vector<8x32xbf16>, vector<32x128xbf16>, vector<8x128xf32> -> vector<8x128xf32>
    %49 = arith.addf %22, %48 : vector<8x128xf32>
    %50 = vector.extract_strided_slice %10 {offsets = [0, 32], sizes = [8, 32], strides = [1, 1]} : vector<8x128xf32> to vector<8x32xf32>
    %51 = arith.truncf %50 : vector<8x32xf32> to vector<8x32xbf16>
    %52 = vector.extract_strided_slice %15 {offsets = [0, 32], sizes = [8, 32], strides = [1, 1]} : vector<8x256xf32> to vector<8x32xf32>
    %53 = arith.truncf %52 : vector<8x32xf32> to vector<8x32xbf16>
    %54 = vector.extract_strided_slice %15 {offsets = [0, 160], sizes = [8, 32], strides = [1, 1]} : vector<8x256xf32> to vector<8x32xf32>
    %55 = arith.truncf %54 : vector<8x32xf32> to vector<8x32xbf16>
    %cst_27 = arith.constant dense<0.000000e+00> : vector<8x8xf32>
    %56 = tpu.matmul %51, %53, %cst_27 {dimension_numbers = #tpu.dot_dimension_numbers<[1], [1], [0], [0], [0, 0, 1, 0], [], []>} : vector<8x32xbf16>, vector<8x32xbf16>, vector<8x8xf32> -> vector<8x8xf32>
    %57 = vector.broadcast %17 : vector<1x8xf32> to vector<8x8xf32>
    %58 = arith.addf %56, %57 : vector<8x8xf32>
    %cst_28 = arith.constant -1.000000e+09 : f32
    %59 = vector.broadcast %cst_28 : f32 to vector<8x8xf32>
    %60 = arith.select %20, %59, %58 : vector<8x8xi1>, vector<8x8xf32>
    %cst_29 = arith.constant dense<0xFF800000> : vector<8xf32>
    %61 = vector.multi_reduction <maximumf>, %60, %cst_29 [1] : vector<8x8xf32> to vector<8xf32>
    %62 = vector.shape_cast %61 : vector<8xf32> to vector<8x1xf32>
    %63 = vector.broadcast %62 : vector<8x1xf32> to vector<8x8xf32>
    %64 = arith.subf %60, %63 : vector<8x8xf32>
    %65 = math.exp %64 : vector<8x8xf32>
    %cst_30 = arith.constant dense<0.000000e+00> : vector<8xf32>
    %66 = vector.multi_reduction <add>, %65, %cst_30 [1] : vector<8x8xf32> to vector<8xf32>
    %67 = vector.shape_cast %66 : vector<8xf32> to vector<8x1xf32>
    %68 = tpu.reciprocal %67 {approx = true} : vector<8x1xf32> -> vector<8x1xf32>
    %69 = vector.broadcast %68 : vector<8x1xf32> to vector<8x8xf32>
    %70 = arith.mulf %65, %69 : vector<8x8xf32>
    %71 = arith.truncf %70 : vector<8x8xf32> to vector<8x8xbf16>
    %cst_31 = arith.constant dense<0.000000e+00> : vector<8x32xf32>
    %72 = tpu.matmul %71, %55, %cst_31 {dimension_numbers = #tpu.dot_dimension_numbers<[1], [0], [0], [1], [0, 0, 1, 1], [], []>} : vector<8x8xbf16>, vector<8x32xbf16>, vector<8x32xf32> -> vector<8x32xf32>
    %73 = arith.truncf %72 : vector<8x32xf32> to vector<8x32xbf16>
    %74 = vector.extract_strided_slice %21 {offsets = [32, 0], sizes = [32, 128], strides = [1, 1]} : vector<128x128xbf16> to vector<32x128xbf16>
    %cst_32 = arith.constant dense<0.000000e+00> : vector<8x128xf32>
    %75 = tpu.matmul %73, %74, %cst_32 {dimension_numbers = #tpu.dot_dimension_numbers<[1], [0], [0], [1], [0, 0, 1, 1], [], []>} : vector<8x32xbf16>, vector<32x128xbf16>, vector<8x128xf32> -> vector<8x128xf32>
    %76 = arith.addf %49, %75 : vector<8x128xf32>
    %77 = vector.extract_strided_slice %10 {offsets = [0, 64], sizes = [8, 32], strides = [1, 1]} : vector<8x128xf32> to vector<8x32xf32>
    %78 = arith.truncf %77 : vector<8x32xf32> to vector<8x32xbf16>
    %79 = vector.extract_strided_slice %15 {offsets = [0, 64], sizes = [8, 32], strides = [1, 1]} : vector<8x256xf32> to vector<8x32xf32>
    %80 = arith.truncf %79 : vector<8x32xf32> to vector<8x32xbf16>
    %81 = vector.extract_strided_slice %15 {offsets = [0, 192], sizes = [8, 32], strides = [1, 1]} : vector<8x256xf32> to vector<8x32xf32>
    %82 = arith.truncf %81 : vector<8x32xf32> to vector<8x32xbf16>
    %cst_33 = arith.constant dense<0.000000e+00> : vector<8x8xf32>
    %83 = tpu.matmul %78, %80, %cst_33 {dimension_numbers = #tpu.dot_dimension_numbers<[1], [1], [0], [0], [0, 0, 1, 0], [], []>} : vector<8x32xbf16>, vector<8x32xbf16>, vector<8x8xf32> -> vector<8x8xf32>
    %84 = vector.broadcast %17 : vector<1x8xf32> to vector<8x8xf32>
    %85 = arith.addf %83, %84 : vector<8x8xf32>
    %cst_34 = arith.constant -1.000000e+09 : f32
    %86 = vector.broadcast %cst_34 : f32 to vector<8x8xf32>
    %87 = arith.select %20, %86, %85 : vector<8x8xi1>, vector<8x8xf32>
    %cst_35 = arith.constant dense<0xFF800000> : vector<8xf32>
    %88 = vector.multi_reduction <maximumf>, %87, %cst_35 [1] : vector<8x8xf32> to vector<8xf32>
    %89 = vector.shape_cast %88 : vector<8xf32> to vector<8x1xf32>
    %90 = vector.broadcast %89 : vector<8x1xf32> to vector<8x8xf32>
    %91 = arith.subf %87, %90 : vector<8x8xf32>
    %92 = math.exp %91 : vector<8x8xf32>
    %cst_36 = arith.constant dense<0.000000e+00> : vector<8xf32>
    %93 = vector.multi_reduction <add>, %92, %cst_36 [1] : vector<8x8xf32> to vector<8xf32>
    %94 = vector.shape_cast %93 : vector<8xf32> to vector<8x1xf32>
    %95 = tpu.reciprocal %94 {approx = true} : vector<8x1xf32> -> vector<8x1xf32>
    %96 = vector.broadcast %95 : vector<8x1xf32> to vector<8x8xf32>
    %97 = arith.mulf %92, %96 : vector<8x8xf32>
    %98 = arith.truncf %97 : vector<8x8xf32> to vector<8x8xbf16>
    %cst_37 = arith.constant dense<0.000000e+00> : vector<8x32xf32>
    %99 = tpu.matmul %98, %82, %cst_37 {dimension_numbers = #tpu.dot_dimension_numbers<[1], [0], [0], [1], [0, 0, 1, 1], [], []>} : vector<8x8xbf16>, vector<8x32xbf16>, vector<8x32xf32> -> vector<8x32xf32>
    %100 = arith.truncf %99 : vector<8x32xf32> to vector<8x32xbf16>
    %101 = vector.extract_strided_slice %21 {offsets = [64, 0], sizes = [32, 128], strides = [1, 1]} : vector<128x128xbf16> to vector<32x128xbf16>
    %cst_38 = arith.constant dense<0.000000e+00> : vector<8x128xf32>
    %102 = tpu.matmul %100, %101, %cst_38 {dimension_numbers = #tpu.dot_dimension_numbers<[1], [0], [0], [1], [0, 0, 1, 1], [], []>} : vector<8x32xbf16>, vector<32x128xbf16>, vector<8x128xf32> -> vector<8x128xf32>
    %103 = arith.addf %76, %102 : vector<8x128xf32>
    %104 = vector.extract_strided_slice %10 {offsets = [0, 96], sizes = [8, 32], strides = [1, 1]} : vector<8x128xf32> to vector<8x32xf32>
    %105 = arith.truncf %104 : vector<8x32xf32> to vector<8x32xbf16>
    %106 = vector.extract_strided_slice %15 {offsets = [0, 96], sizes = [8, 32], strides = [1, 1]} : vector<8x256xf32> to vector<8x32xf32>
    %107 = arith.truncf %106 : vector<8x32xf32> to vector<8x32xbf16>
    %108 = vector.extract_strided_slice %15 {offsets = [0, 224], sizes = [8, 32], strides = [1, 1]} : vector<8x256xf32> to vector<8x32xf32>
    %109 = arith.truncf %108 : vector<8x32xf32> to vector<8x32xbf16>
    %cst_39 = arith.constant dense<0.000000e+00> : vector<8x8xf32>
    %110 = tpu.matmul %105, %107, %cst_39 {dimension_numbers = #tpu.dot_dimension_numbers<[1], [1], [0], [0], [0, 0, 1, 0], [], []>} : vector<8x32xbf16>, vector<8x32xbf16>, vector<8x8xf32> -> vector<8x8xf32>
    %111 = vector.broadcast %17 : vector<1x8xf32> to vector<8x8xf32>
    %112 = arith.addf %110, %111 : vector<8x8xf32>
    %cst_40 = arith.constant -1.000000e+09 : f32
    %113 = vector.broadcast %cst_40 : f32 to vector<8x8xf32>
    %114 = arith.select %20, %113, %112 : vector<8x8xi1>, vector<8x8xf32>
    %cst_41 = arith.constant dense<0xFF800000> : vector<8xf32>
    %115 = vector.multi_reduction <maximumf>, %114, %cst_41 [1] : vector<8x8xf32> to vector<8xf32>
    %116 = vector.shape_cast %115 : vector<8xf32> to vector<8x1xf32>
    %117 = vector.broadcast %116 : vector<8x1xf32> to vector<8x8xf32>
    %118 = arith.subf %114, %117 : vector<8x8xf32>
    %119 = math.exp %118 : vector<8x8xf32>
    %cst_42 = arith.constant dense<0.000000e+00> : vector<8xf32>
    %120 = vector.multi_reduction <add>, %119, %cst_42 [1] : vector<8x8xf32> to vector<8xf32>
    %121 = vector.shape_cast %120 : vector<8xf32> to vector<8x1xf32>
    %122 = tpu.reciprocal %121 {approx = true} : vector<8x1xf32> -> vector<8x1xf32>
    %123 = vector.broadcast %122 : vector<8x1xf32> to vector<8x8xf32>
    %124 = arith.mulf %119, %123 : vector<8x8xf32>
    %125 = arith.truncf %124 : vector<8x8xf32> to vector<8x8xbf16>
    %cst_43 = arith.constant dense<0.000000e+00> : vector<8x32xf32>
    %126 = tpu.matmul %125, %109, %cst_43 {dimension_numbers = #tpu.dot_dimension_numbers<[1], [0], [0], [1], [0, 0, 1, 1], [], []>} : vector<8x8xbf16>, vector<8x32xbf16>, vector<8x32xf32> -> vector<8x32xf32>
    %127 = arith.truncf %126 : vector<8x32xf32> to vector<8x32xbf16>
    %128 = vector.extract_strided_slice %21 {offsets = [96, 0], sizes = [32, 128], strides = [1, 1]} : vector<128x128xbf16> to vector<32x128xbf16>
    %cst_44 = arith.constant dense<0.000000e+00> : vector<8x128xf32>
    %129 = tpu.matmul %127, %128, %cst_44 {dimension_numbers = #tpu.dot_dimension_numbers<[1], [0], [0], [1], [0, 0, 1, 1], [], []>} : vector<8x32xbf16>, vector<32x128xbf16>, vector<8x128xf32> -> vector<8x128xf32>
    %130 = arith.addf %103, %129 : vector<8x128xf32>
    %c0_45 = arith.constant 0 : index
    %c0_46 = arith.constant 0 : index
    %131 = vector.load %arg9[%c0_45, %c0_46] : memref<1x128xf32, #tpu.memory_space<vmem>>, vector<1x128xf32>
    %132 = vector.broadcast %131 : vector<1x128xf32> to vector<8x128xf32>
    %133 = arith.addf %130, %132 : vector<8x128xf32>
    %134 = arith.extf %1 : vector<8x128xbf16> to vector<8x128xf32>
    %135 = arith.addf %133, %134 : vector<8x128xf32>
    %cst_47 = arith.constant dense<0.000000e+00> : vector<8xf32>
    %136 = vector.multi_reduction <add>, %135, %cst_47 [1] : vector<8x128xf32> to vector<8xf32>
    %137 = vector.shape_cast %136 : vector<8xf32> to vector<8x1xf32>
    %cst_48 = arith.constant 1.280000e+02 : f32
    %138 = vector.broadcast %cst_48 : f32 to vector<8x1xf32>
    %139 = arith.divf %137, %138 : vector<8x1xf32>
    %140 = vector.broadcast %139 : vector<8x1xf32> to vector<8x128xf32>
    %141 = arith.subf %135, %140 : vector<8x128xf32>
    %142 = arith.mulf %141, %141 : vector<8x128xf32>
    %cst_49 = arith.constant dense<0.000000e+00> : vector<8xf32>
    %143 = vector.multi_reduction <add>, %142, %cst_49 [1] : vector<8x128xf32> to vector<8xf32>
    %144 = vector.shape_cast %143 : vector<8xf32> to vector<8x1xf32>
    %cst_50 = arith.constant 1.280000e+02 : f32
    %145 = vector.broadcast %cst_50 : f32 to vector<8x1xf32>
    %146 = arith.divf %144, %145 : vector<8x1xf32>
    %147 = vector.broadcast %139 : vector<8x1xf32> to vector<8x128xf32>
    %148 = arith.subf %135, %147 : vector<8x128xf32>
    %cst_51 = arith.constant 9.99999974E-6 : f32
    %149 = vector.broadcast %cst_51 : f32 to vector<8x1xf32>
    %150 = arith.addf %146, %149 : vector<8x1xf32>
    %151 = math.rsqrt %150 : vector<8x1xf32>
    %152 = vector.broadcast %151 : vector<8x1xf32> to vector<8x128xf32>
    %153 = arith.mulf %148, %152 : vector<8x128xf32>
    %c0_52 = arith.constant 0 : index
    %c0_53 = arith.constant 0 : index
    %154 = vector.load %arg10[%c0_52, %c0_53] : memref<1x128xf32, #tpu.memory_space<vmem>>, vector<1x128xf32>
    %155 = vector.broadcast %154 : vector<1x128xf32> to vector<8x128xf32>
    %156 = arith.mulf %153, %155 : vector<8x128xf32>
    %c0_54 = arith.constant 0 : index
    %c0_55 = arith.constant 0 : index
    %157 = vector.load %arg11[%c0_54, %c0_55] : memref<1x128xf32, #tpu.memory_space<vmem>>, vector<1x128xf32>
    %158 = vector.broadcast %157 : vector<1x128xf32> to vector<8x128xf32>
    %159 = arith.addf %156, %158 : vector<8x128xf32>
    %160 = arith.truncf %159 : vector<8x128xf32> to vector<8x128xbf16>
    %c0_56 = arith.constant 0 : index
    %c0_57 = arith.constant 0 : index
    %c0_58 = arith.constant 0 : index
    %161 = vector.load %arg12[%c0_56, %c0_57, %c0_58] : memref<1x8x128xbf16, #tpu.memory_space<vmem>>, vector<1x8x128xbf16>
    %162 = vector.shape_cast %161 : vector<1x8x128xbf16> to vector<8x128xbf16>
    %163 = vector.shape_cast %160 : vector<8x128xbf16> to vector<1x8x128xbf16>
    tpu.vector_store %arg12[%c0_56, %c0_57, %c0_58], %163 {strides = array<i32>} : memref<1x8x128xbf16, #tpu.memory_space<vmem>>, vector<1x8x128xbf16>,
    return
  }
  func.func @transform_0(%arg0: i32) -> (i32, i32, i32) {
    %c0_i32 = arith.constant 0 : i32
    %c0_i32_0 = arith.constant 0 : i32
    %c0_i32_1 = arith.constant 0 : i32
    return %arg0, %c0_i32, %c0_i32_0 : i32, i32, i32
  }
  func.func @transform_1(%arg0: i32) -> (i32, i32, i32) {
    %c0_i32 = arith.constant 0 : i32
    %c0_i32_0 = arith.constant 0 : i32
    %c0_i32_1 = arith.constant 0 : i32
    return %arg0, %c0_i32, %c0_i32_0 : i32, i32, i32
  }
  func.func @transform_2(%arg0: i32) -> (i32, i32, i32) {
    %c0_i32 = arith.constant 0 : i32
    %c0_i32_0 = arith.constant 0 : i32
    %c0_i32_1 = arith.constant 0 : i32
    return %arg0, %c0_i32, %c0_i32_0 : i32, i32, i32
  }
  func.func @transform_3(%arg0: i32) -> (i32, i32) {
    %c0_i32 = arith.constant 0 : i32
    %c0_i32_0 = arith.constant 0 : i32
    %c0_i32_1 = arith.constant 0 : i32
    return %c0_i32, %c0_i32_0 : i32, i32
  }
  func.func @transform_4(%arg0: i32) -> (i32, i32) {
    %c0_i32 = arith.constant 0 : i32
    %c0_i32_0 = arith.constant 0 : i32
    %c0_i32_1 = arith.constant 0 : i32
    return %c0_i32, %c0_i32_0 : i32, i32
  }
  func.func @transform_5(%arg0: i32) -> (i32, i32) {
    %c0_i32 = arith.constant 0 : i32
    %c0_i32_0 = arith.constant 0 : i32
    %c0_i32_1 = arith.constant 0 : i32
    return %c0_i32, %c0_i32_0 : i32, i32
  }
  func.func @transform_6(%arg0: i32) -> (i32, i32) {
    %c0_i32 = arith.constant 0 : i32
    %c0_i32_0 = arith.constant 0 : i32
    %c0_i32_1 = arith.constant 0 : i32
    return %c0_i32, %c0_i32_0 : i32, i32
  }
  func.func @transform_7(%arg0: i32) -> (i32, i32) {
    %c0_i32 = arith.constant 0 : i32
    %c0_i32_0 = arith.constant 0 : i32
    %c0_i32_1 = arith.constant 0 : i32
    return %c0_i32, %c0_i32_0 : i32, i32
  }
  func.func @transform_8(%arg0: i32) -> (i32, i32) {
    %c0_i32 = arith.constant 0 : i32
    %c0_i32_0 = arith.constant 0 : i32
    %c0_i32_1 = arith.constant 0 : i32
    return %c0_i32, %c0_i32_0 : i32, i32
  }
  func.func @transform_9(%arg0: i32) -> (i32, i32) {
    %c0_i32 = arith.constant 0 : i32
    %c0_i32_0 = arith.constant 0 : i32
    %c0_i32_1 = arith.constant 0 : i32
    return %c0_i32, %c0_i32_0 : i32, i32
  }
  func.func @transform_10(%arg0: i32) -> (i32, i32) {
    %c0_i32 = arith.constant 0 : i32
    %c0_i32_0 = arith.constant 0 : i32
    %c0_i32_1 = arith.constant 0 : i32
    return %c0_i32, %c0_i32_0 : i32, i32
  }
  func.func @transform_11(%arg0: i32) -> (i32, i32, i32) {
    %c0_i32 = arith.constant 0 : i32
    %c0_i32_0 = arith.constant 0 : i32
    %c0_i32_1 = arith.constant 0 : i32
    return %arg0, %c0_i32, %c0_i32_0 : i32, i32, i32
  }
}

</mosaic_0001>

<llo_original>
// kernel: transformer_forward.21
$region0: #{transformer_forward.21}
  #allocation0 [shape = 'u32[]', space=smem, size = 0x4, offset = 0x4, fixed_abs, tag = 'smem constant byte address 0x4 - core index']
  #allocation1 [shape = 'u32[144,128]{1,0:T(1,128)}', space=vmem, size = 0x12000, scoped, tag = 'internal scratch']
  #allocation2 [shape = 'f32[16,128]{1,0:T(8,128)}', space=vmem, size = 0x2000, scoped, tag = 'scratch operand']
  %s0 = inlined_call_operand.vmem [shape: bf16[16,128], index: 0, kind: input, shape index: {}]
  %s1 = inlined_call_operand.vmem [shape: bf16[128,256], index: 1, kind: input, shape index: {}]
  %s2 = inlined_call_operand.vmem [shape: f32[1,256], index: 2, kind: input, shape index: {}]
  %s3 = inlined_call_operand.hbm [shape: f32[16,256], index: 3, kind: output, shape index: {}]
  %s4 = sld [smem:[#allocation0]]
  $region94: #{transformer_forward.21} parent=0
    _
  %s6 = ssub.s32 1, %s4
  %s7 = scalar_select 0, %s6, %s4
  $region1: #{transformer_forward.21} parent=0
    #allocation3 [shape = 'u8[65536]{0}', space=vmem, size = 0x10000, scoped, tag = 'input window, operand 1']
    #allocation4 [shape = 'u8[16384]{0}', space=vmem, size = 0x4000, scoped, tag = 'output window, operand 0']
    #allocation5 [shape = 's32[2]{0}', space=sflag, size = 0x8, scoped, tag = 'scoped memory for transformer_forward.21']
    %8 = vsyncpa [#allocation5], 0
    %s9 = scalar_lea.sflag [#allocation5], 1
    %10 = vsyncpa %s9, 0
    loop: start=0, step=1, limit=4
    $region2: #{transformer_forward.21} parent=1 // loop_pre_header
      _
    $region3: #{transformer_forward.21} parent=1 // loop_header
      %s12 = sphi 0, %s16
      %p13 = scmp.ge.s32.totalorder %s12, 4
      %s19 = sphi 0, %s38
      %s20 = sphi 0, %s34
      %s21 = sphi 0, %s30
      %s22 = sphi 0, %s19
      %s23 = sphi 0, %s20
      %s24 = sphi 0, %s21
      %s25 = sphi 0, %s22
      %s26 = sphi 0, %s23
      %s27 = sphi 0, %s24
      %s43 = sphi 0, %s45
      %s46 = sphi 0, %s43
      %s47 = sphi 0, %s46
      %s63 = sphi 0, %s47
      %s71 = sphi 0, %s73
      %s74 = sphi 0, %s71
      %s75 = sphi 0, %s74
      %s91 = sphi 0, %s75
      %s97 = sphi 0, %s99
      %s100 = sphi 0, %s97
      %s101 = sphi 0, %s100
      %s117 = sphi 0, %s101
      %s125 = sphi 0, %s127
      %s128 = sphi 0, %s125
      %s129 = sphi 0, %s128
      %s145 = sphi 0, %s129
    $region4: #{transformer_forward.21} parent=1 // loop_header_branch
      %15 = sbr.rel (%p13) target = $region8
    $region5: #{transformer_forward.21} parent=1 // loop_body
      %s17 = ssub.s32 %s12, 1
      %s18 = ssub.s32 %s12, 2
      %s28 = sadd.s32 1, %s21
      %p29 = scmp.ge.s32.totalorder %s28, 1
      %s30 = scalar_select %p29, 0, %s28
      %s31 = sadd.s32 1, %s20
      %s32 = scalar_select %p29, %s31, %s20
      %p33 = scmp.ge.s32.totalorder %s32, 2
      %s34 = scalar_select %p33, 0, %s32
      %s35 = sadd.s32 1, %s19
      %s36 = scalar_select %p33, %s35, %s19
      %p37 = scmp.ge.s32.totalorder %s36, 1
      %s38 = scalar_select %p37, 0, %s36
      %s39 = ssub.s32 %s19, %s38
      %s40 = ssub.s32 %s21, %s30
      %s41 = sor.u32 %s39, %s40
      %p42 = scmp.eq.s32.totalorder %s41, 0
      %s44 = sadd.s32 %s43, 1
      %s45 = scalar_select %p42, %s43, %s44
      %p48 = pneg %p42
      %p49 = scmp.eq.s32.totalorder %s12, 1
      %p50 = por %p48, %p49
      %p51 = scmp.ne.s32.totalorder %s43, %s46
      %p52 = scmp.eq.s32.totalorder %s12, 0
      %p53 = por %p51, %p52
      %p54 = scmp.ne.s32.totalorder %s43, %s46
      %p55 = scmp.eq.s32.totalorder %s17, 1
      %p56 = por %p54, %p55
      %p57 = scmp.ne.s32.totalorder %s46, %s47
      %p58 = scmp.eq.s32.totalorder %s17, 0
      %p59 = por %p57, %p58
      %p60 = scmp.ne.s32.totalorder %s46, %s47
      %p61 = scmp.eq.s32.totalorder %s18, 1
      %p62 = por %p60, %p61
      %p64 = scmp.ne.s32.totalorder %s47, %s63
      %p65 = scmp.eq.s32.totalorder %s18, 0
      %p66 = por %p64, %p65
      %s67 = ssub.s32 %s21, %s30
      %s68 = ssub.s32 %s20, %s34
      %s69 = sor.u32 %s67, %s68
      %p70 = scmp.eq.s32.totalorder %s69, 0
      %s72 = sadd.s32 %s71, 1
      %s73 = scalar_select %p70, %s71, %s72
      %p76 = pneg %p70
      %p77 = scmp.eq.s32.totalorder %s12, 1
      %p78 = por %p76, %p77
      %p79 = scmp.ne.s32.totalorder %s71, %s74
      %p80 = scmp.eq.s32.totalorder %s12, 0
      %p81 = por %p79, %p80
      %p82 = scmp.ne.s32.totalorder %s71, %s74
      %p83 = scmp.eq.s32.totalorder %s17, 1
      %p84 = por %p82, %p83
      %p85 = scmp.ne.s32.totalorder %s74, %s75
      %p86 = scmp.eq.s32.totalorder %s17, 0
      %p87 = por %p85, %p86
      %p88 = scmp.ne.s32.totalorder %s74, %s75
      %p89 = scmp.eq.s32.totalorder %s18, 1
      %p90 = por %p88, %p89
      %p92 = scmp.ne.s32.totalorder %s75, %s91
      %p93 = scmp.eq.s32.totalorder %s18, 0
      %p94 = por %p92, %p93
      %s95 = ssub.s32 %s20, %s34
      %p96 = scmp.eq.s32.totalorder %s95, 0
      %s98 = sadd.s32 %s97, 1
      %s99 = scalar_select %p96, %s97, %s98
      %p102 = pneg %p96
      %p103 = scmp.eq.s32.totalorder %s12, 1
      %p104 = por %p102, %p103
      %p105 = scmp.ne.s32.totalorder %s97, %s100
      %p106 = scmp.eq.s32.totalorder %s12, 0
      %p107 = por %p105, %p106
      %p108 = scmp.ne.s32.totalorder %s97, %s100
      %p109 = scmp.eq.s32.totalorder %s17, 1
      %p110 = por %p108, %p109
      %p111 = scmp.ne.s32.totalorder %s100, %s101
      %p112 = scmp.eq.s32.totalorder %s17, 0
      %p113 = por %p111, %p112
      %p114 = scmp.ne.s32.totalorder %s100, %s101
      %p115 = scmp.eq.s32.totalorder %s18, 1
      %p116 = por %p114, %p115
      %p118 = scmp.ne.s32.totalorder %s101, %s117
      %p119 = scmp.eq.s32.totalorder %s18, 0
      %p120 = por %p118, %p119
      %s121 = ssub.s32 %s19, %s38
      %s122 = ssub.s32 %s20, %s34
      %s123 = sor.u32 %s121, %s122
      %p124 = scmp.eq.s32.totalorder %s123, 0
      %s126 = sadd.s32 %s125, 1
      %s127 = scalar_select %p124, %s125, %s126
      %p130 = pneg %p124
      %p131 = scmp.eq.s32.totalorder %s12, 1
      %p132 = por %p130, %p131
      %p133 = scmp.ne.s32.totalorder %s125, %s128
      %p134 = scmp.eq.s32.totalorder %s12, 0
      %p135 = por %p133, %p134
      %p136 = scmp.ne.s32.totalorder %s125, %s128
      %p137 = scmp.eq.s32.totalorder %s17, 1
      %p138 = por %p136, %p137
      %p139 = scmp.ne.s32.totalorder %s128, %s129
      %p140 = scmp.eq.s32.totalorder %s17, 0
      %p141 = por %p139, %p140
      %p142 = scmp.ne.s32.totalorder %s128, %s129
      %p143 = scmp.eq.s32.totalorder %s18, 1
      %p144 = por %p142, %p143
      %p146 = scmp.ne.s32.totalorder %s129, %s145
      %p147 = scmp.eq.s32.totalorder %s18, 0
      %p148 = por %p146, %p147
      %p149 = scmp.le.s32.totalorder 1, %s12
      %p150 = scmp.lt.s32.totalorder %s12, 3
      %p151 = pnand %p149, %p150
      %p152 = pneg %p151
      // Predicated region
      $region9: #{transformer_forward.21} parent=5 // pred_check
        _
      $region10: #{transformer_forward.21} parent=5 // pred_check_branch
        %154 = sbr.rel (%p151) target = $region12
      $region11: #{transformer_forward.21} parent=5 // pred_region
        %s155 = ssub.s32 %s12, 1
        // Predicated region
        $region13: #{transformer_forward.21} parent=11 // pred_check
          %p156 = pneg %p59
        $region14: #{transformer_forward.21} parent=11 // pred_check_branch
          %158 = sbr.rel (%p156) target = $region16
        $region15: #{transformer_forward.21} parent=11 // pred_region
          %s159 = smul.u32 2, %s22
          %p160 = scmp.lt.s32.totalorder %s159, 1
          %s161 = scalar_select %p160, %s159, 1
          %p162 = scmp.lt.s32.totalorder %s24, 0
          %s163 = scalar_select %p162, %s24, 0
          %s164 = sadd.s32 %s163, %s161
          %s165 = smul.addr %s164, 4
          %s166 = scalar_lea.vmem %s0, %s165
          %s167 = smul.u32 2, %s22
        $region16: #{transformer_forward.21} parent=11 // pred_fallthru
          _
      $region12: #{transformer_forward.21} parent=5 // pred_fallthru
        _
      %p168 = scmp.lt.s32.totalorder %s12, 2
      // Predicated region
      $region17: #{transformer_forward.21} parent=5 // pred_check
        %p169 = pneg %p168
      $region18: #{transformer_forward.21} parent=5 // pred_check_branch
        %171 = sbr.rel (%p169) target = $region20
      $region19: #{transformer_forward.21} parent=5 // pred_region
        // Predicated region
        $region21: #{transformer_forward.21} parent=19 // pred_check
          %p172 = pneg %p81
        $region22: #{transformer_forward.21} parent=19 // pred_check_branch
          %174 = sbr.rel (%p172) target = $region24
        $region23: #{transformer_forward.21} parent=19 // pred_region
          %s175 = sand.u32 %s71, 1
          %s176 = sand.u32 %s71, 1
          %s177 = smul.addr %s176, 64
          %s178 = scalar_lea.vmem [#allocation3], %s177
          %s179 = smul.u32 16, %s21
          %s180 = smul.addr %s179, 2
          %s181 = sadd.s32 %s20, %s180
          %s182 = smul.addr %s181, 4
          %s183 = scalar_lea.vmem %s1, %s182
          // Predicated region
          $region25: #{transformer_forward.21} parent=23 // pred_check
            _
          $region26: #{transformer_forward.21} parent=23 // pred_check_branch
            %185 = sbr.rel (0) target = $region28
          $region27: #{transformer_forward.21} parent=23 // pred_region
            // Predicated region
            $region29: #{transformer_forward.21} parent=27 // pred_check
              _
            $region30: #{transformer_forward.21} parent=27 // pred_check_branch
              %187 = sbr.rel target = $region32
            $region31: #{transformer_forward.21} parent=27 // pred_region
              // Predicated region
              $region44: #{transformer_forward.21} parent=31 // pred_check
                _
              $region45: #{transformer_forward.21} parent=31 // pred_check_branch
                %232 = sbr.rel (0) target = $region47
              $region46: #{transformer_forward.21} parent=31 // pred_region
                loop: start=0, step=1, limit=1
                $region48: #{transformer_forward.21} parent=46 // loop_pre_header
                  _
                $region49: #{transformer_forward.21} parent=46 // loop_header
                  %s234 = sphi 0, %s238
                  %p235 = scmp.ge.s32.totalorder %s234, 1
                  %s239 = sphi %s183, %s183
                  %s240 = sphi %s178, %s178
                $region50: #{transformer_forward.21} parent=46 // loop_header_branch
                  %237 = sbr.rel (%p235) target = $region54
                $region51: #{transformer_forward.21} parent=46 // loop_body
                  _
                $region52: #{transformer_forward.21} parent=46 // loop_footer
                  %s238 = sadd.s32 1, %s234
                $region53: #{transformer_forward.21} parent=46 // loop_footer_branch
                  %233 = sbr.rel target = $region49
                $region54: #{transformer_forward.21} parent=46 // loop_exit
                  _
                loop: start=0, step=1, limit=1
                $region55: #{transformer_forward.21} parent=46 // loop_pre_header
                  _
                $region56: #{transformer_forward.21} parent=46 // loop_header
                  %s243 = sphi 0, %s247
                  %p244 = scmp.ge.s32.totalorder %s243, 1
                  %s248 = sphi %s183, %s183
                  %s249 = sphi %s178, %s178
                $region57: #{transformer_forward.21} parent=46 // loop_header_branch
                  %246 = sbr.rel (%p244) target = $region61
                $region58: #{transformer_forward.21} parent=46 // loop_body
                  %v250 = vld [vmem:[%s248] sm:$0xf]
                  %251 = vst [vmem:[%s249] sm:$0xf] %v250
                  %v252 = vld [vmem:[%s248 + $0x8] sm:$0xf]
                  %253 = vst [vmem:[%s249 + $0x4] sm:$0xf] %v252
                  %v254 = vld [vmem:[%s248 + $0x10] sm:$0xf]
                  %255 = vst [vmem:[%s249 + $0x8] sm:$0xf] %v254
                  %v256 = vld [vmem:[%s248 + $0x18] sm:$0xf]
                  %257 = vst [vmem:[%s249 + $0xc] sm:$0xf] %v256
                  %v258 = vld [vmem:[%s248 + $0x20] sm:$0xf]
                  %259 = vst [vmem:[%s249 + $0x10] sm:$0xf] %v258
                  %v260 = vld [vmem:[%s248 + $0x28] sm:$0xf]
                  %261 = vst [vmem:[%s249 + $0x14] sm:$0xf] %v260
                  %v262 = vld [vmem:[%s248 + $0x30] sm:$0xf]
                  %263 = vst [vmem:[%s249 + $0x18] sm:$0xf] %v262
                  %v264 = vld [vmem:[%s248 + $0x38] sm:$0xf]
                  %265 = vst [vmem:[%s249 + $0x1c] sm:$0xf] %v264
                  %v266 = vld [vmem:[%s248 + $0x40] sm:$0xf]
                  %267 = vst [vmem:[%s249 + $0x20] sm:$0xf] %v266
                  %v268 = vld [vmem:[%s248 + $0x48] sm:$0xf]
                  %269 = vst [vmem:[%s249 + $0x24] sm:$0xf] %v268
                  %v270 = vld [vmem:[%s248 + $0x50] sm:$0xf]
                  %271 = vst [vmem:[%s249 + $0x28] sm:$0xf] %v270
                  %v272 = vld [vmem:[%s248 + $0x58] sm:$0xf]
                  %273 = vst [vmem:[%s249 + $0x2c] sm:$0xf] %v272
                  %v274 = vld [vmem:[%s248 + $0x60] sm:$0xf]
                  %275 = vst [vmem:[%s249 + $0x30] sm:$0xf] %v274
                  %v276 = vld [vmem:[%s248 + $0x68] sm:$0xf]
                  %277 = vst [vmem:[%s249 + $0x34] sm:$0xf] %v276
                  %v278 = vld [vmem:[%s248 + $0x70] sm:$0xf]
                  %279 = vst [vmem:[%s249 + $0x38] sm:$0xf] %v278
                  %v280 = vld [vmem:[%s248 + $0x78] sm:$0xf]
                  %281 = vst [vmem:[%s249 + $0x3c] sm:$0xf] %v280
                $region59: #{transformer_forward.21} parent=46 // loop_footer
                  %s247 = sadd.s32 1, %s243
                $region60: #{transformer_forward.21} parent=46 // loop_footer_branch
                  %242 = sbr.rel target = $region56
                $region61: #{transformer_forward.21} parent=46 // loop_exit
                  _
              $region47: #{transformer_forward.21} parent=31 // pred_fallthru
                _
            $region32: #{transformer_forward.21} parent=27 // pred_fallthru
              _
            // Predicated region
            $region33: #{transformer_forward.21} parent=27 // pred_check
              _
            $region34: #{transformer_forward.21} parent=27 // pred_check_branch
              %189 = sbr.rel (0) target = $region36
            $region35: #{transformer_forward.21} parent=27 // pred_region
              loop: start=0, step=1, limit=1
              $region37: #{transformer_forward.21} parent=35 // loop_pre_header
                _
              $region38: #{transformer_forward.21} parent=35 // loop_header
                %s192 = sphi 0, %s196
                %p193 = scmp.ge.s32.totalorder %s192, 1
                %s197 = sphi %s183, %s183
                %s198 = sphi %s178, %s178
              $region39: #{transformer_forward.21} parent=35 // loop_header_branch
                %195 = sbr.rel (%p193) target = $region43
              $region40: #{transformer_forward.21} parent=35 // loop_body
                %v199 = vld [vmem:[%s197] sm:$0xf]
                %200 = vst [vmem:[%s198] sm:$0xf] %v199
                %v201 = vld [vmem:[%s197 + $0x8] sm:$0xf]
                %202 = vst [vmem:[%s198 + $0x4] sm:$0xf] %v201
                %v203 = vld [vmem:[%s197 + $0x10] sm:$0xf]
                %204 = vst [vmem:[%s198 + $0x8] sm:$0xf] %v203
                %v205 = vld [vmem:[%s197 + $0x18] sm:$0xf]
                %206 = vst [vmem:[%s198 + $0xc] sm:$0xf] %v205
                %v207 = vld [vmem:[%s197 + $0x20] sm:$0xf]
                %208 = vst [vmem:[%s198 + $0x10] sm:$0xf] %v207
                %v209 = vld [vmem:[%s197 + $0x28] sm:$0xf]
                %210 = vst [vmem:[%s198 + $0x14] sm:$0xf] %v209
                %v211 = vld [vmem:[%s197 + $0x30] sm:$0xf]
                %212 = vst [vmem:[%s198 + $0x18] sm:$0xf] %v211
                %v213 = vld [vmem:[%s197 + $0x38] sm:$0xf]
                %214 = vst [vmem:[%s198 + $0x1c] sm:$0xf] %v213
                %v215 = vld [vmem:[%s197 + $0x40] sm:$0xf]
                %216 = vst [vmem:[%s198 + $0x20] sm:$0xf] %v215
                %v217 = vld [vmem:[%s197 + $0x48] sm:$0xf]
                %218 = vst [vmem:[%s198 + $0x24] sm:$0xf] %v217
                %v219 = vld [vmem:[%s197 + $0x50] sm:$0xf]
                %220 = vst [vmem:[%s198 + $0x28] sm:$0xf] %v219
                %v221 = vld [vmem:[%s197 + $0x58] sm:$0xf]
                %222 = vst [vmem:[%s198 + $0x2c] sm:$0xf] %v221
                %v223 = vld [vmem:[%s197 + $0x60] sm:$0xf]
                %224 = vst [vmem:[%s198 + $0x30] sm:$0xf] %v223
                %v225 = vld [vmem:[%s197 + $0x68] sm:$0xf]
                %226 = vst [vmem:[%s198 + $0x34] sm:$0xf] %v225
                %v227 = vld [vmem:[%s197 + $0x70] sm:$0xf]
                %228 = vst [vmem:[%s198 + $0x38] sm:$0xf] %v227
                %v229 = vld [vmem:[%s197 + $0x78] sm:$0xf]
                %230 = vst [vmem:[%s198 + $0x3c] sm:$0xf] %v229
              $region41: #{transformer_forward.21} parent=35 // loop_footer
                %s196 = sadd.s32 1, %s192
              $region42: #{transformer_forward.21} parent=35 // loop_footer_branch
                %191 = sbr.rel target = $region38
              $region43: #{transformer_forward.21} parent=35 // loop_exit
                _
            $region36: #{transformer_forward.21} parent=27 // pred_fallthru
              _
          $region28: #{transformer_forward.21} parent=23 // pred_fallthru
            _
          %282 = vnop
        $region24: #{transformer_forward.21} parent=19 // pred_fallthru
          _
        // Predicated region
        $region62: #{transformer_forward.21} parent=19 // pred_check
          %p283 = pneg %p107
        $region63: #{transformer_forward.21} parent=19 // pred_check_branch
          %285 = sbr.rel (%p283) target = $region65
        $region64: #{transformer_forward.21} parent=19 // pred_region
          %p286 = scmp.lt.s32.totalorder %s20, 1
          %s287 = scalar_select %p286, %s20, 1
          %s288 = scalar_lea.vmem %s2, %s287
        $region65: #{transformer_forward.21} parent=19 // pred_fallthru
          _
      $region20: #{transformer_forward.21} parent=5 // pred_fallthru
        _
      %p289 = scmp.le.s32.totalorder 1, %s12
      %p290 = scmp.lt.s32.totalorder %s12, 3
      %p291 = pnand %p289, %p290
      %p292 = pneg %p291
      // Predicated region
      $region66: #{transformer_forward.21} parent=5 // pred_check
        _
      $region67: #{transformer_forward.21} parent=5 // pred_check_branch
        %294 = sbr.rel (%p291) target = $region69
      $region68: #{transformer_forward.21} parent=5 // pred_region
        %s295 = ssub.s32 %s12, 1
        %s296 = sand.u32 %s74, 1
        %s297 = sand.u32 %s74, 1
        %s298 = smul.addr %s297, 64
        %s299 = scalar_lea.vmem [#allocation3], %s298
        // Predicated region
        $region70: #{transformer_forward.21} parent=68 // pred_check
          %p300 = pneg %p87
        $region71: #{transformer_forward.21} parent=68 // pred_check_branch
          %302 = sbr.rel (%p300) target = $region73
        $region72: #{transformer_forward.21} parent=68 // pred_region
          _
        $region73: #{transformer_forward.21} parent=68 // pred_fallthru
          _
        %s303 = smul.u32 2, %s22
        %p304 = scmp.lt.s32.totalorder %s303, 1
        %s305 = scalar_select %p304, %s303, 1
        %p306 = scmp.lt.s32.totalorder %s24, 0
        %s307 = scalar_select %p306, %s24, 0
        %s308 = sadd.s32 %s307, %s305
        %s309 = smul.addr %s308, 4
        %s310 = scalar_lea.vmem %s0, %s309
        %p311 = pneg %p59
        %p312 = pneg %p56
        %s313 = sand.u32 %s74, 1
        %s314 = sand.u32 %s74, 1
        %s315 = smul.addr %s314, 64
        %s316 = scalar_lea.vmem [#allocation3], %s315
        %p317 = pneg %p87
        %p318 = pneg %p84
        %p319 = scmp.lt.s32.totalorder %s23, 1
        %s320 = scalar_select %p319, %s23, 1
        %s321 = scalar_lea.vmem %s2, %s320
        %p322 = pneg %p113
        %p323 = pneg %p110
        %p324 = pneg %p141
        %p325 = pneg %p138
        %s326 = sand.u32 %s128, 1
        %s327 = scalar_lea.sflag [#allocation5], %s326
        %s328 = sand.u32 %s128, 1
        %s329 = smul.addr %s328, 16
        %s330 = scalar_lea.vmem [#allocation4], %s329
        %s331 = smul.u32 2, %s22
        %p332 = scmp.lt.s32.totalorder %s331, 1
        %s333 = scalar_select %p332, %s331, 1
        %p334 = scmp.lt.s32.totalorder %s24, 0
        %s335 = scalar_select %p334, %s24, 0
        %s336 = sadd.s32 %s335, %s333
        %s337 = smul.addr %s336, 4
        %s338 = scalar_lea.vmem %s0, %s337
        %s339 = smul.u32 2, %s22
        %s340 = smul.u32 16, %s24
        %p341 = scmp.lt.s32.totalorder %s23, 1
        %s342 = scalar_select %p341, %s23, 1
        %s343 = scalar_lea.vmem %s2, %s342
        %s344 = smul.u32 2, %s22
        %p346 = scmp.eq.s32.totalorder %s24, 0
        // Predicated region
        $region74: #{transformer_forward.21} parent=68 // pred_check
          %p347 = pneg %p346
        $region75: #{transformer_forward.21} parent=68 // pred_check_branch
          %349 = sbr.rel (%p347) target = $region77
        $region76: #{transformer_forward.21} parent=68 // pred_region
          %350 = vst [vmem:[#allocation2] sm:$0xff] 0.0
          %351 = vst [vmem:[#allocation2 + $0x8] sm:$0xff] 0.0
        $region77: #{transformer_forward.21} parent=68 // pred_fallthru
          _
        %v352 = vld [vmem:[#allocation2] sm:$0xff]
        %v353 = vld [vmem:[#allocation2 + $0x8] sm:$0xff]
        %v354 = vld [vmem:[%s338] sm:$0xf]
        %v355 = vld [vmem:[%s338 + $0x4] sm:$0xf]
        %v356 = vld [vmem:[%s299] sm:$0xf]
        %v357 = vld [vmem:[%s299 + $0x4] sm:$0xf]
        %v358 = vld [vmem:[%s299 + $0x8] sm:$0xf]
        %v359 = vld [vmem:[%s299 + $0xc] sm:$0xf]
        %v360 = vld [vmem:[%s299 + $0x10] sm:$0xf]
        %v361 = vld [vmem:[%s299 + $0x14] sm:$0xf]
        %v362 = vld [vmem:[%s299 + $0x18] sm:$0xf]
        %v363 = vld [vmem:[%s299 + $0x1c] sm:$0xf]
        %v364 = vld [vmem:[%s299 + $0x20] sm:$0xf]
        %v365 = vld [vmem:[%s299 + $0x24] sm:$0xf]
        %v366 = vld [vmem:[%s299 + $0x28] sm:$0xf]
        %v367 = vld [vmem:[%s299 + $0x2c] sm:$0xf]
        %v368 = vld [vmem:[%s299 + $0x30] sm:$0xf]
        %v369 = vld [vmem:[%s299 + $0x34] sm:$0xf]
        %v370 = vld [vmem:[%s299 + $0x38] sm:$0xf]
        %v371 = vld [vmem:[%s299 + $0x3c] sm:$0xf]
        %v374 = vunpack.c.l.b16 %v354
        %v375 = vunpack.c.l.b16 %v355
        %v376 = vpack.c.b16 %v375, %v374
        %v394 = vunpack.c.l.b16 %v356
        %v395 = vunpack.c.l.b16 %v357
        %v396 = vunpack.c.l.b16 %v358
        %v397 = vunpack.c.l.b16 %v359
        %v398 = vunpack.c.l.b16 %v360
        %v399 = vunpack.c.l.b16 %v361
        %v400 = vunpack.c.l.b16 %v362
        %v401 = vunpack.c.l.b16 %v363
        %v402 = vunpack.c.l.b16 %v364
        %v403 = vunpack.c.l.b16 %v365
        %v404 = vunpack.c.l.b16 %v366
        %v405 = vunpack.c.l.b16 %v367
        %v406 = vunpack.c.l.b16 %v368
        %v407 = vunpack.c.l.b16 %v369
        %v408 = vunpack.c.l.b16 %v370
        %v409 = vunpack.c.l.b16 %v371
        %v410 = vpack.c.b16 %v395, %v394
        %v411 = vpack.c.b16 %v397, %v396
        %v412 = vpack.c.b16 %v399, %v398
        %v413 = vpack.c.b16 %v401, %v400
        %v414 = vpack.c.b16 %v403, %v402
        %v415 = vpack.c.b16 %v405, %v404
        %v416 = vpack.c.b16 %v407, %v406
        %v417 = vpack.c.b16 %v409, %v408
        %426 = vmatprep.subr.bf16.mxu0 0
        %427 = vmatpush1.bf16.msra.mxu0 %v410
        %428 = vmatprep.subr.bf16.mxu0 0
        %429 = vmatpush1.bf16.msra.mxu0 %v411
        %430 = vmatprep.subr.bf16.mxu0 0
        %431 = vmatpush1.bf16.msra.mxu0 %v412
        %432 = vmatprep.subr.bf16.mxu0 0
        %433 = vmatpush1.bf16.msra.mxu0 %v413
        %434 = vmatprep.subr.bf16.mxu0 0
        %435 = vmatpush1.bf16.msra.mxu0 %v414
        %436 = vmatprep.subr.bf16.mxu0 0
        %437 = vmatpush1.bf16.msra.mxu0 %v415
        %438 = vmatprep.subr.bf16.mxu0 0
        %439 = vmatpush1.bf16.msra.mxu0 %v416
        %440 = vmatprep.subr.bf16.mxu0 0
        %441 = vmatpush1.bf16.msra.mxu0 %v417
        %442 = vmatprep.subr.bf16.mxu0 0
        %443 = vmatpush1.bf16.msra.mxu0 0
        %444 = vmatprep.subr.bf16.mxu0 0
        %445 = vmatpush1.bf16.msra.mxu0 0
        %446 = vmatprep.subr.bf16.mxu0 0
        %447 = vmatpush1.bf16.msra.mxu0 0
        %448 = vmatprep.subr.bf16.mxu0 0
        %449 = vmatpush1.bf16.msra.mxu0 0
        %450 = vmatprep.subr.bf16.mxu0 0
        %451 = vmatpush1.bf16.msra.mxu0 0
        %452 = vmatprep.subr.bf16.mxu0 0
        %453 = vmatpush1.bf16.msra.mxu0 0
        %454 = vmatprep.subr.bf16.mxu0 0
        %455 = vmatpush1.bf16.msra.mxu0 0
        %456 = vmatprep.subr.bf16.mxu0 0
        %457 = vmatpush1.bf16.msra.mxu0 0
        %458 = vmatprep.mubr.bf16.mxu0 0
        %459 = vmatmul.mubr.bf16.gmra.mrb[0].mxu0 %v376
        %v460 = vpop.f32.mrb[0].mxu0
        %v461 = vadd.f32 0.0, %v460
        %v462 = vpop.f32.mrb[0].mxu0
        %v463 = vpop.f32.mrb[0].mxu0
        %v464 = vadd.f32 0.0, %v463
        %v465 = vpop.f32.mrb[0].mxu0
        %466 = vdwg.mxu0
        %v467 = vadd.f32 %v352, %v461
        %v468 = vadd.f32 %v353, %v464
        %469 = vst [vmem:[#allocation2] sm:$0xff] %v467
        %470 = vst [vmem:[#allocation2 + $0x8] sm:$0xff] %v468
        // Predicated region
        $region78: #{transformer_forward.21} parent=68 // pred_check
          %p471 = pneg %p346
        $region79: #{transformer_forward.21} parent=68 // pred_check_branch
          %473 = sbr.rel (%p471) target = $region81
        $region80: #{transformer_forward.21} parent=68 // pred_region
          %v474 = vld [vmem:[#allocation2] sm:$0xff]
          %v475 = vld [vmem:[#allocation2 + $0x8] sm:$0xff]
          %v476 = vld [vmem:[%s343] sm:$0x1]
          %v478 = vlaneseq
          %v479 = vshrl.u32 %v478, 7
          %v480 = vsub.s32 0, %v479
          %v481 = vrot.slane %v476, %v480
          %v483 = vadd.f32 %v474, %v481
          %v484 = vadd.f32 %v475, %v481
          %485 = vst [vmem:[%s330] sm:$0xff] %v483
          %486 = vst [vmem:[%s330 + $0x8] sm:$0xff] %v484
        $region81: #{transformer_forward.21} parent=68 // pred_fallthru
          _
        %s487 = sand.u32 %s128, 1
        %s488 = scalar_lea.sflag [#allocation5], %s487
        %s489 = sand.u32 %s128, 1
        %s490 = smul.addr %s489, 16
        %s491 = scalar_lea.vmem [#allocation4], %s490
        // Predicated region
        $region82: #{transformer_forward.21} parent=68 // pred_check
          %p492 = pneg %p138
        $region83: #{transformer_forward.21} parent=68 // pred_check_branch
          %494 = sbr.rel (%p492) target = $region85
        $region84: #{transformer_forward.21} parent=68 // pred_region
          %s495 = smul.u32 2, %s22
          %s497 = ssub.s32 256, 256
          %498 = vsyncadd %s488, %s497
          %s499 = smul.addr %s495, 2
          %s500 = sadd.s32 %s23, %s499
          %s501 = smul.addr %s500, 128
          %s502 = scalar_lea.hbm %s3, %s501
          %s503 = sshll.u32 %s491, 4
          %s504 = int_to_ptr.vmem [resolvable:$true] %s503
          %509 = dma.vmem_to_hbm [thread:$0]  %s504, 256, %s502, %s488, 128, 256, 8
        $region85: #{transformer_forward.21} parent=68 // pred_fallthru
          _
      $region69: #{transformer_forward.21} parent=5 // pred_fallthru
        _
      %p510 = scmp.le.s32.totalorder 2, %s12
      // Predicated region
      $region86: #{transformer_forward.21} parent=5 // pred_check
        %p511 = pneg %p510
      $region87: #{transformer_forward.21} parent=5 // pred_check_branch
        %513 = sbr.rel (%p511) target = $region89
      $region88: #{transformer_forward.21} parent=5 // pred_region
        %s514 = ssub.s32 %s12, 2
        // Predicated region
        $region90: #{transformer_forward.21} parent=88 // pred_check
          %p515 = pneg %p144
        $region91: #{transformer_forward.21} parent=88 // pred_check_branch
          %517 = sbr.rel (%p515) target = $region93
        $region92: #{transformer_forward.21} parent=88 // pred_region
          %s518 = sand.u32 %s129, 1
          %s519 = scalar_lea.sflag [#allocation5], %s518
          %s520 = sand.u32 %s129, 1
          %s521 = smul.addr %s520, 16
          %s522 = scalar_lea.vmem [#allocation4], %s521
          %523 = dma.done %s519, 256
        $region93: #{transformer_forward.21} parent=88 // pred_fallthru
          _
      $region89: #{transformer_forward.21} parent=5 // pred_fallthru
        _
    $region6: #{transformer_forward.21} parent=1 // loop_footer
      %s16 = sadd.s32 1, %s12
    $region7: #{transformer_forward.21} parent=1 // loop_footer_branch
      %11 = sbr.rel target = $region3
    $region8: #{transformer_forward.21} parent=1 // loop_exit
      _
    %524 = vsyncpa [#allocation5], 1
    %s525 = scalar_lea.sflag [#allocation5], 1
    %526 = vsyncpa %s525, 1

// kernel: transformer_forward.12
$region0: #{transformer_forward.12}
  #allocation0 [shape = 'u32[]', space=smem, size = 0x4, offset = 0x4, fixed_abs, tag = 'smem constant byte address 0x4 - core index']
  #allocation1 [shape = 'u32[144,128]{1,0:T(1,128)}', space=vmem, size = 0x12000, scoped, tag = 'internal scratch']
  %s0 = inlined_call_operand.vmem [shape: bf16[16,128], index: 0, kind: input, shape index: {}]
  %s1 = inlined_call_operand.vmem [shape: bf16[128,256], index: 1, kind: input, shape index: {}]
  %s2 = inlined_call_operand.vmem [shape: f32[1,256], index: 2, kind: input, shape index: {}]
  %s3 = inlined_call_operand.vmem [shape: bf16[256,128], index: 3, kind: input, shape index: {}]
  %s4 = inlined_call_operand.vmem [shape: f32[1,128], index: 4, kind: input, shape index: {}]
  %s5 = inlined_call_operand.vmem [shape: f32[1,128], index: 5, kind: input, shape index: {}]
  %s6 = inlined_call_operand.vmem [shape: f32[1,128], index: 6, kind: input, shape index: {}]
  %s7 = inlined_call_operand.vmem [shape: bf16[16,128], index: 7, kind: output, shape index: {}]
  %s8 = sld [smem:[#allocation0]]
  $region61: #{transformer_forward.12} parent=0
    _
  %s10 = ssub.s32 1, %s8
  %s11 = scalar_select 0, %s10, %s8
  loop: start=0, step=1, limit=4
  $region2: #{transformer_forward.12} parent=0 // loop_pre_header
    _
  $region3: #{transformer_forward.12} parent=0 // loop_header
    %s13 = sphi 0, %s17
    %p14 = scmp.ge.s32.totalorder %s13, 4
    %s23 = sphi 0, %s25
    %s26 = sphi 0, %s23
    %s27 = sphi 0, %s26
    %s43 = sphi 0, %s27
    %s47 = sphi 0, %s47
    %s49 = sphi 0, %s47
    %s50 = sphi 0, %s49
    %s64 = sphi 0, %s50
    %s68 = sphi 0, %s68
    %s70 = sphi 0, %s68
    %s71 = sphi 0, %s70
    %s85 = sphi 0, %s71
    %s89 = sphi 0, %s89
    %s91 = sphi 0, %s89
    %s92 = sphi 0, %s91
    %s106 = sphi 0, %s92
    %s110 = sphi 0, %s110
    %s112 = sphi 0, %s110
    %s113 = sphi 0, %s112
    %s127 = sphi 0, %s113
    %s131 = sphi 0, %s131
    %s133 = sphi 0, %s131
    %s134 = sphi 0, %s133
    %s148 = sphi 0, %s134
    %s152 = sphi 0, %s152
    %s154 = sphi 0, %s152
    %s155 = sphi 0, %s154
    %s169 = sphi 0, %s155
    %s175 = sphi 0, %s177
    %s178 = sphi 0, %s175
    %s179 = sphi 0, %s178
    %s195 = sphi 0, %s179
  $region4: #{transformer_forward.12} parent=0 // loop_header_branch
    %16 = sbr.rel (%p14) target = $region8
  $region5: #{transformer_forward.12} parent=0 // loop_body
    %s18 = ssub.s32 %s13, 1
    %s19 = ssub.s32 %s13, 2
    %s20 = sadd.s32 %s13, 1
    %s21 = ssub.s32 %s13, %s20
    %p22 = scmp.eq.s32.totalorder %s21, 0
    %s24 = sadd.s32 %s23, 1
    %s25 = scalar_select %p22, %s23, %s24
    %p28 = pneg %p22
    %p29 = scmp.eq.s32.totalorder %s13, 1
    %p30 = por %p28, %p29
    %p31 = scmp.ne.s32.totalorder %s23, %s26
    %p32 = scmp.eq.s32.totalorder %s13, 0
    %p33 = por %p31, %p32
    %p34 = scmp.ne.s32.totalorder %s23, %s26
    %p35 = scmp.eq.s32.totalorder %s18, 1
    %p36 = por %p34, %p35
    %p37 = scmp.ne.s32.totalorder %s26, %s27
    %p38 = scmp.eq.s32.totalorder %s18, 0
    %p39 = por %p37, %p38
    %p40 = scmp.ne.s32.totalorder %s26, %s27
    %p41 = scmp.eq.s32.totalorder %s19, 1
    %p42 = por %p40, %p41
    %p44 = scmp.ne.s32.totalorder %s27, %s43
    %p45 = scmp.eq.s32.totalorder %s19, 0
    %p46 = por %p44, %p45
    %s48 = sadd.s32 %s47, 1
    %p51 = scmp.eq.s32.totalorder %s13, 1
    %p52 = scmp.ne.s32.totalorder %s47, %s49
    %p53 = scmp.eq.s32.totalorder %s13, 0
    %p54 = por %p52, %p53
    %p55 = scmp.ne.s32.totalorder %s47, %s49
    %p56 = scmp.eq.s32.totalorder %s18, 1
    %p57 = por %p55, %p56
    %p58 = scmp.ne.s32.totalorder %s49, %s50
    %p59 = scmp.eq.s32.totalorder %s18, 0
    %p60 = por %p58, %p59
    %p61 = scmp.ne.s32.totalorder %s49, %s50
    %p62 = scmp.eq.s32.totalorder %s19, 1
    %p63 = por %p61, %p62
    %p65 = scmp.ne.s32.totalorder %s50, %s64
    %p66 = scmp.eq.s32.totalorder %s19, 0
    %p67 = por %p65, %p66
    %s69 = sadd.s32 %s68, 1
    %p72 = scmp.eq.s32.totalorder %s13, 1
    %p73 = scmp.ne.s32.totalorder %s68, %s70
    %p74 = scmp.eq.s32.totalorder %s13, 0
    %p75 = por %p73, %p74
    %p76 = scmp.ne.s32.totalorder %s68, %s70
    %p77 = scmp.eq.s32.totalorder %s18, 1
    %p78 = por %p76, %p77
    %p79 = scmp.ne.s32.totalorder %s70, %s71
    %p80 = scmp.eq.s32.totalorder %s18, 0
    %p81 = por %p79, %p80
    %p82 = scmp.ne.s32.totalorder %s70, %s71
    %p83 = scmp.eq.s32.totalorder %s19, 1
    %p84 = por %p82, %p83
    %p86 = scmp.ne.s32.totalorder %s71, %s85
    %p87 = scmp.eq.s32.totalorder %s19, 0
    %p88 = por %p86, %p87
    %s90 = sadd.s32 %s89, 1
    %p93 = scmp.eq.s32.totalorder %s13, 1
    %p94 = scmp.ne.s32.totalorder %s89, %s91
    %p95 = scmp.eq.s32.totalorder %s13, 0
    %p96 = por %p94, %p95
    %p97 = scmp.ne.s32.totalorder %s89, %s91
    %p98 = scmp.eq.s32.totalorder %s18, 1
    %p99 = por %p97, %p98
    %p100 = scmp.ne.s32.totalorder %s91, %s92
    %p101 = scmp.eq.s32.totalorder %s18, 0
    %p102 = por %p100, %p101
    %p103 = scmp.ne.s32.totalorder %s91, %s92
    %p104 = scmp.eq.s32.totalorder %s19, 1
    %p105 = por %p103, %p104
    %p107 = scmp.ne.s32.totalorder %s92, %s106
    %p108 = scmp.eq.s32.totalorder %s19, 0
    %p109 = por %p107, %p108
    %s111 = sadd.s32 %s110, 1
    %p114 = scmp.eq.s32.totalorder %s13, 1
    %p115 = scmp.ne.s32.totalorder %s110, %s112
    %p116 = scmp.eq.s32.totalorder %s13, 0
    %p117 = por %p115, %p116
    %p118 = scmp.ne.s32.totalorder %s110, %s112
    %p119 = scmp.eq.s32.totalorder %s18, 1
    %p120 = por %p118, %p119
    %p121 = scmp.ne.s32.totalorder %s112, %s113
    %p122 = scmp.eq.s32.totalorder %s18, 0
    %p123 = por %p121, %p122
    %p124 = scmp.ne.s32.totalorder %s112, %s113
    %p125 = scmp.eq.s32.totalorder %s19, 1
    %p126 = por %p124, %p125
    %p128 = scmp.ne.s32.totalorder %s113, %s127
    %p129 = scmp.eq.s32.totalorder %s19, 0
    %p130 = por %p128, %p129
    %s132 = sadd.s32 %s131, 1
    %p135 = scmp.eq.s32.totalorder %s13, 1
    %p136 = scmp.ne.s32.totalorder %s131, %s133
    %p137 = scmp.eq.s32.totalorder %s13, 0
    %p138 = por %p136, %p137
    %p139 = scmp.ne.s32.totalorder %s131, %s133
    %p140 = scmp.eq.s32.totalorder %s18, 1
    %p141 = por %p139, %p140
    %p142 = scmp.ne.s32.totalorder %s133, %s134
    %p143 = scmp.eq.s32.totalorder %s18, 0
    %p144 = por %p142, %p143
    %p145 = scmp.ne.s32.totalorder %s133, %s134
    %p146 = scmp.eq.s32.totalorder %s19, 1
    %p147 = por %p145, %p146
    %p149 = scmp.ne.s32.totalorder %s134, %s148
    %p150 = scmp.eq.s32.totalorder %s19, 0
    %p151 = por %p149, %p150
    %s153 = sadd.s32 %s152, 1
    %p156 = scmp.eq.s32.totalorder %s13, 1
    %p157 = scmp.ne.s32.totalorder %s152, %s154
    %p158 = scmp.eq.s32.totalorder %s13, 0
    %p159 = por %p157, %p158
    %p160 = scmp.ne.s32.totalorder %s152, %s154
    %p161 = scmp.eq.s32.totalorder %s18, 1
    %p162 = por %p160, %p161
    %p163 = scmp.ne.s32.totalorder %s154, %s155
    %p164 = scmp.eq.s32.totalorder %s18, 0
    %p165 = por %p163, %p164
    %p166 = scmp.ne.s32.totalorder %s154, %s155
    %p167 = scmp.eq.s32.totalorder %s19, 1
    %p168 = por %p166, %p167
    %p170 = scmp.ne.s32.totalorder %s155, %s169
    %p171 = scmp.eq.s32.totalorder %s19, 0
    %p172 = por %p170, %p171
    %s173 = ssub.s32 %s13, %s20
    %p174 = scmp.eq.s32.totalorder %s173, 0
    %s176 = sadd.s32 %s175, 1
    %s177 = scalar_select %p174, %s175, %s176
    %p180 = pneg %p174
    %p181 = scmp.eq.s32.totalorder %s13, 1
    %p182 = por %p180, %p181
    %p183 = scmp.ne.s32.totalorder %s175, %s178
    %p184 = scmp.eq.s32.totalorder %s13, 0
    %p185 = por %p183, %p184
    %p186 = scmp.ne.s32.totalorder %s175, %s178
    %p187 = scmp.eq.s32.totalorder %s18, 1
    %p188 = por %p186, %p187
    %p189 = scmp.ne.s32.totalorder %s178, %s179
    %p190 = scmp.eq.s32.totalorder %s18, 0
    %p191 = por %p189, %p190
    %p192 = scmp.ne.s32.totalorder %s178, %s179
    %p193 = scmp.eq.s32.totalorder %s19, 1
    %p194 = por %p192, %p193
    %p196 = scmp.ne.s32.totalorder %s179, %s195
    %p197 = scmp.eq.s32.totalorder %s19, 0
    %p198 = por %p196, %p197
    %p199 = scmp.le.s32.totalorder 1, %s13
    %p200 = scmp.lt.s32.totalorder %s13, 3
    %p201 = pnand %p199, %p200
    %p202 = pneg %p201
    // Predicated region
    $region9: #{transformer_forward.12} parent=5 // pred_check
      _
    $region10: #{transformer_forward.12} parent=5 // pred_check_branch
      %204 = sbr.rel (%p201) target = $region12
    $region11: #{transformer_forward.12} parent=5 // pred_region
      %s205 = ssub.s32 %s13, 1
      // Predicated region
      $region13: #{transformer_forward.12} parent=11 // pred_check
        %p206 = pneg %p60
      $region14: #{transformer_forward.12} parent=11 // pred_check_branch
        %208 = sbr.rel (%p206) target = $region16
      $region15: #{transformer_forward.12} parent=11 // pred_region
        _
      $region16: #{transformer_forward.12} parent=11 // pred_fallthru
        _
      // Predicated region
      $region17: #{transformer_forward.12} parent=11 // pred_check
        %p209 = pneg %p81
      $region18: #{transformer_forward.12} parent=11 // pred_check_branch
        %211 = sbr.rel (%p209) target = $region20
      $region19: #{transformer_forward.12} parent=11 // pred_region
        _
      $region20: #{transformer_forward.12} parent=11 // pred_fallthru
        _
      // Predicated region
      $region21: #{transformer_forward.12} parent=11 // pred_check
        %p212 = pneg %p102
      $region22: #{transformer_forward.12} parent=11 // pred_check_branch
        %214 = sbr.rel (%p212) target = $region24
      $region23: #{transformer_forward.12} parent=11 // pred_region
        _
      $region24: #{transformer_forward.12} parent=11 // pred_fallthru
        _
      // Predicated region
      $region25: #{transformer_forward.12} parent=11 // pred_check
        %p215 = pneg %p123
      $region26: #{transformer_forward.12} parent=11 // pred_check_branch
        %217 = sbr.rel (%p215) target = $region28
      $region27: #{transformer_forward.12} parent=11 // pred_region
        _
      $region28: #{transformer_forward.12} parent=11 // pred_fallthru
        _
      // Predicated region
      $region29: #{transformer_forward.12} parent=11 // pred_check
        %p218 = pneg %p144
      $region30: #{transformer_forward.12} parent=11 // pred_check_branch
        %220 = sbr.rel (%p218) target = $region32
      $region31: #{transformer_forward.12} parent=11 // pred_region
        _
      $region32: #{transformer_forward.12} parent=11 // pred_fallthru
        _
      // Predicated region
      $region33: #{transformer_forward.12} parent=11 // pred_check
        %p221 = pneg %p165
      $region34: #{transformer_forward.12} parent=11 // pred_check_branch
        %223 = sbr.rel (%p221) target = $region36
      $region35: #{transformer_forward.12} parent=11 // pred_region
        _
      $region36: #{transformer_forward.12} parent=11 // pred_fallthru
        _
    $region12: #{transformer_forward.12} parent=5 // pred_fallthru
      _
    %p224 = scmp.lt.s32.totalorder %s13, 2
    // Predicated region
    $region37: #{transformer_forward.12} parent=5 // pred_check
      %p225 = pneg %p224
    $region38: #{transformer_forward.12} parent=5 // pred_check_branch
      %227 = sbr.rel (%p225) target = $region40
    $region39: #{transformer_forward.12} parent=5 // pred_region
      // Predicated region
      $region41: #{transformer_forward.12} parent=39 // pred_check
        %p228 = pneg %p33
      $region42: #{transformer_forward.12} parent=39 // pred_check_branch
        %230 = sbr.rel (%p228) target = $region44
      $region43: #{transformer_forward.12} parent=39 // pred_region
        %p231 = scmp.lt.s32.totalorder %s13, 1
        %s232 = scalar_select %p231, %s13, 1
        %s233 = smul.addr %s232, 4
        %s234 = scalar_lea.vmem %s0, %s233
      $region44: #{transformer_forward.12} parent=39 // pred_fallthru
        _
    $region40: #{transformer_forward.12} parent=5 // pred_fallthru
      _
    %p235 = scmp.le.s32.totalorder 1, %s13
    %p236 = scmp.lt.s32.totalorder %s13, 3
    %p237 = pnand %p235, %p236
    %p238 = pneg %p237
    // Predicated region
    $region45: #{transformer_forward.12} parent=5 // pred_check
      _
    $region46: #{transformer_forward.12} parent=5 // pred_check_branch
      %240 = sbr.rel (%p237) target = $region48
    $region47: #{transformer_forward.12} parent=5 // pred_region
      %s241 = ssub.s32 %s13, 1
      %p242 = scmp.lt.s32.totalorder %s18, 1
      %s243 = scalar_select %p242, %s18, 1
      %s244 = smul.addr %s243, 4
      %s245 = scalar_lea.vmem %s0, %s244
      %p246 = pneg %p39
      %p247 = pneg %p36
      %p248 = pneg %p60
      %p249 = pneg %p57
      %p250 = pneg %p81
      %p251 = pneg %p78
      %p252 = pneg %p102
      %p253 = pneg %p99
      %p254 = pneg %p123
      %p255 = pneg %p120
      %p256 = pneg %p144
      %p257 = pneg %p141
      %p258 = pneg %p165
      %p259 = pneg %p162
      %p260 = pneg %p191
      %p261 = pneg %p188
      %p262 = scmp.lt.s32.totalorder %s18, 1
      %s263 = scalar_select %p262, %s18, 1
      %s264 = smul.addr %s263, 4
      %s265 = scalar_lea.vmem %s7, %s264
      %p266 = scmp.lt.s32.totalorder %s18, 1
      %s267 = scalar_select %p266, %s18, 1
      %s268 = smul.addr %s267, 4
      %s269 = scalar_lea.vmem %s0, %s268
      %p270 = scmp.lt.s32.totalorder %s18, 1
      %s271 = scalar_select %p270, %s18, 1
      %s272 = smul.addr %s271, 4
      %s273 = scalar_lea.vmem %s7, %s272
      %v275 = vld [vmem:[%s269] sm:$0xf]
      %v276 = vld [vmem:[%s1] sm:$0xff]
      %v277 = vld [vmem:[%s1 + $0x8] sm:$0xff]
      %v278 = vld [vmem:[%s1 + $0x10] sm:$0xff]
      %v279 = vld [vmem:[%s1 + $0x18] sm:$0xff]
      %v280 = vld [vmem:[%s1 + $0x20] sm:$0xff]
      %v281 = vld [vmem:[%s1 + $0x28] sm:$0xff]
      %v282 = vld [vmem:[%s1 + $0x30] sm:$0xff]
      %v283 = vld [vmem:[%s1 + $0x38] sm:$0xff]
      %v284 = vld [vmem:[%s1 + $0x40] sm:$0xff]
      %v285 = vld [vmem:[%s1 + $0x48] sm:$0xff]
      %v286 = vld [vmem:[%s1 + $0x50] sm:$0xff]
      %v287 = vld [vmem:[%s1 + $0x58] sm:$0xff]
      %v288 = vld [vmem:[%s1 + $0x60] sm:$0xff]
      %v289 = vld [vmem:[%s1 + $0x68] sm:$0xff]
      %v290 = vld [vmem:[%s1 + $0x70] sm:$0xff]
      %v291 = vld [vmem:[%s1 + $0x78] sm:$0xff]
      %v292 = vld [vmem:[%s2] sm:$0x3]
      %v294 = vlaneseq
      %v295 = vshrl.u32 %v294, 7
      %v296 = vsub.s32 0, %v295
      %v297 = vrot.slane %v292, %v296
      %v298 = vlaneseq
      %v299 = vshrl.u32 %v298, 7
      %v300 = vsub.s32 1, %v299
      %v301 = vrot.slane %v292, %v300
      %v320 = vunpack.c.l.b16 %v276
      %v321 = vunpack.c.h.b16 %v276
      %v322 = vunpack.c.l.b16 %v277
      %v323 = vunpack.c.h.b16 %v277
      %v324 = vunpack.c.l.b16 %v278
      %v325 = vunpack.c.h.b16 %v278
      %v326 = vunpack.c.l.b16 %v279
      %v327 = vunpack.c.h.b16 %v279
      %v328 = vunpack.c.l.b16 %v280
      %v329 = vunpack.c.h.b16 %v280
      %v330 = vunpack.c.l.b16 %v281
      %v331 = vunpack.c.h.b16 %v281
      %v332 = vunpack.c.l.b16 %v282
      %v333 = vunpack.c.h.b16 %v282
      %v334 = vunpack.c.l.b16 %v283
      %v335 = vunpack.c.h.b16 %v283
      %v336 = vunpack.c.l.b16 %v284
      %v337 = vunpack.c.h.b16 %v284
      %v338 = vunpack.c.l.b16 %v285
      %v339 = vunpack.c.h.b16 %v285
      %v340 = vunpack.c.l.b16 %v286
      %v341 = vunpack.c.h.b16 %v286
      %v342 = vunpack.c.l.b16 %v287
      %v343 = vunpack.c.h.b16 %v287
      %v344 = vunpack.c.l.b16 %v288
      %v345 = vunpack.c.h.b16 %v288
      %v346 = vunpack.c.l.b16 %v289
      %v347 = vunpack.c.h.b16 %v289
      %v348 = vunpack.c.l.b16 %v290
      %v349 = vunpack.c.h.b16 %v290
      %v350 = vunpack.c.l.b16 %v291
      %v351 = vunpack.c.h.b16 %v291
      %v352 = vpack.c.b16 %v322, %v320
      %v353 = vpack.c.b16 %v323, %v321
      %v354 = vpack.c.b16 %v326, %v324
      %v355 = vpack.c.b16 %v327, %v325
      %v356 = vpack.c.b16 %v330, %v328
      %v357 = vpack.c.b16 %v331, %v329
      %v358 = vpack.c.b16 %v334, %v332
      %v359 = vpack.c.b16 %v335, %v333
      %v360 = vpack.c.b16 %v338, %v336
      %v361 = vpack.c.b16 %v339, %v337
      %v362 = vpack.c.b16 %v342, %v340
      %v363 = vpack.c.b16 %v343, %v341
      %v364 = vpack.c.b16 %v346, %v344
      %v365 = vpack.c.b16 %v347, %v345
      %v366 = vpack.c.b16 %v350, %v348
      %v367 = vpack.c.b16 %v351, %v349
      %384 = vmatprep.subr.bf16.mxu0 %v353
      %385 = vmatpush1.bf16.msra.mxu0 %v352
      %386 = vmatprep.subr.bf16.mxu0 %v355
      %387 = vmatpush1.bf16.msra.mxu0 %v354
      %388 = vmatprep.subr.bf16.mxu0 %v357
      %389 = vmatpush1.bf16.msra.mxu0 %v356
      %390 = vmatprep.subr.bf16.mxu0 %v359
      %391 = vmatpush1.bf16.msra.mxu0 %v358
      %392 = vmatprep.subr.bf16.mxu0 %v361
      %393 = vmatpush1.bf16.msra.mxu0 %v360
      %394 = vmatprep.subr.bf16.mxu0 %v363
      %395 = vmatpush1.bf16.msra.mxu0 %v362
      %396 = vmatprep.subr.bf16.mxu0 %v365
      %397 = vmatpush1.bf16.msra.mxu0 %v364
      %398 = vmatprep.subr.bf16.mxu0 %v367
      %399 = vmatpush1.bf16.msra.mxu0 %v366
      %400 = vmatprep.subr.bf16.mxu0 0
      %401 = vmatpush1.bf16.msra.mxu0 0
      %402 = vmatprep.subr.bf16.mxu0 0
      %403 = vmatpush1.bf16.msra.mxu0 0
      %404 = vmatprep.subr.bf16.mxu0 0
      %405 = vmatpush1.bf16.msra.mxu0 0
      %406 = vmatprep.subr.bf16.mxu0 0
      %407 = vmatpush1.bf16.msra.mxu0 0
      %408 = vmatprep.subr.bf16.mxu0 0
      %409 = vmatpush1.bf16.msra.mxu0 0
      %410 = vmatprep.subr.bf16.mxu0 0
      %411 = vmatpush1.bf16.msra.mxu0 0
      %412 = vmatprep.subr.bf16.mxu0 0
      %413 = vmatpush1.bf16.msra.mxu0 0
      %414 = vmatprep.subr.bf16.mxu0 0
      %415 = vmatpush1.bf16.msra.mxu0 0
      %416 = vmatprep.mubr.bf16.mxu0 0
      %417 = vmatmul.mubr.bf16.gmra.mrb[0].mxu0 %v275
      %v418 = vpop.f32.mrb[0].mxu0
      %v419 = vadd.f32 %v297, %v418
      %v420 = vpop.f32.mrb[0].mxu0
      %v421 = vadd.f32 %v301, %v420
      %v422 = vpop.f32.mrb[0].mxu0
      %v423 = vpop.f32.mrb[0].mxu0
      %424 = vdwg.mxu0
      %v425 = vmax.f32 %v419, 0.0
      %v426 = vmax.f32 %v421, 0.0
      %v427 = vpack.c.bf16 %v425, %v425
      %v428 = vpack.c.bf16 %v426, %v426
      %v429 = vld [vmem:[%s3] sm:$0xf]
      %v430 = vld [vmem:[%s3 + $0x4] sm:$0xf]
      %v431 = vld [vmem:[%s3 + $0x8] sm:$0xf]
      %v432 = vld [vmem:[%s3 + $0xc] sm:$0xf]
      %v433 = vld [vmem:[%s3 + $0x10] sm:$0xf]
      %v434 = vld [vmem:[%s3 + $0x14] sm:$0xf]
      %v435 = vld [vmem:[%s3 + $0x18] sm:$0xf]
      %v436 = vld [vmem:[%s3 + $0x1c] sm:$0xf]
      %v437 = vld [vmem:[%s3 + $0x20] sm:$0xf]
      %v438 = vld [vmem:[%s3 + $0x24] sm:$0xf]
      %v439 = vld [vmem:[%s3 + $0x28] sm:$0xf]
      %v440 = vld [vmem:[%s3 + $0x2c] sm:$0xf]
      %v441 = vld [vmem:[%s3 + $0x30] sm:$0xf]
      %v442 = vld [vmem:[%s3 + $0x34] sm:$0xf]
      %v443 = vld [vmem:[%s3 + $0x38] sm:$0xf]
      %v444 = vld [vmem:[%s3 + $0x3c] sm:$0xf]
      %v445 = vld [vmem:[%s3 + $0x40] sm:$0xf]
      %v446 = vld [vmem:[%s3 + $0x44] sm:$0xf]
      %v447 = vld [vmem:[%s3 + $0x48] sm:$0xf]
      %v448 = vld [vmem:[%s3 + $0x4c] sm:$0xf]
      %v449 = vld [vmem:[%s3 + $0x50] sm:$0xf]
      %v450 = vld [vmem:[%s3 + $0x54] sm:$0xf]
      %v451 = vld [vmem:[%s3 + $0x58] sm:$0xf]
      %v452 = vld [vmem:[%s3 + $0x5c] sm:$0xf]
      %v453 = vld [vmem:[%s3 + $0x60] sm:$0xf]
      %v454 = vld [vmem:[%s3 + $0x64] sm:$0xf]
      %v455 = vld [vmem:[%s3 + $0x68] sm:$0xf]
      %v456 = vld [vmem:[%s3 + $0x6c] sm:$0xf]
      %v457 = vld [vmem:[%s3 + $0x70] sm:$0xf]
      %v458 = vld [vmem:[%s3 + $0x74] sm:$0xf]
      %v459 = vld [vmem:[%s3 + $0x78] sm:$0xf]
      %v460 = vld [vmem:[%s3 + $0x7c] sm:$0xf]
      %v461 = vld [vmem:[%s4] sm:$0x1]
      %v463 = vlaneseq
      %v464 = vshrl.u32 %v463, 7
      %v465 = vsub.s32 0, %v464
      %v466 = vrot.slane %v461, %v465
      %v500 = vunpack.c.l.b16 %v429
      %v501 = vunpack.c.l.b16 %v430
      %v502 = vunpack.c.l.b16 %v431
      %v503 = vunpack.c.l.b16 %v432
      %v504 = vunpack.c.l.b16 %v433
      %v505 = vunpack.c.l.b16 %v434
      %v506 = vunpack.c.l.b16 %v435
      %v507 = vunpack.c.l.b16 %v436
      %v508 = vunpack.c.l.b16 %v437
      %v509 = vunpack.c.l.b16 %v438
      %v510 = vunpack.c.l.b16 %v439
      %v511 = vunpack.c.l.b16 %v440
      %v512 = vunpack.c.l.b16 %v441
      %v513 = vunpack.c.l.b16 %v442
      %v514 = vunpack.c.l.b16 %v443
      %v515 = vunpack.c.l.b16 %v444
      %v516 = vunpack.c.l.b16 %v445
      %v517 = vunpack.c.l.b16 %v446
      %v518 = vunpack.c.l.b16 %v447
      %v519 = vunpack.c.l.b16 %v448
      %v520 = vunpack.c.l.b16 %v449
      %v521 = vunpack.c.l.b16 %v450
      %v522 = vunpack.c.l.b16 %v451
      %v523 = vunpack.c.l.b16 %v452
      %v524 = vunpack.c.l.b16 %v453
      %v525 = vunpack.c.l.b16 %v454
      %v526 = vunpack.c.l.b16 %v455
      %v527 = vunpack.c.l.b16 %v456
      %v528 = vunpack.c.l.b16 %v457
      %v529 = vunpack.c.l.b16 %v458
      %v530 = vunpack.c.l.b16 %v459
      %v531 = vunpack.c.l.b16 %v460
      %v532 = vpack.c.b16 %v501, %v500
      %v533 = vpack.c.b16 %v503, %v502
      %v534 = vpack.c.b16 %v505, %v504
      %v535 = vpack.c.b16 %v507, %v506
      %v536 = vpack.c.b16 %v509, %v508
      %v537 = vpack.c.b16 %v511, %v510
      %v538 = vpack.c.b16 %v513, %v512
      %v539 = vpack.c.b16 %v515, %v514
      %v540 = vpack.c.b16 %v517, %v516
      %v541 = vpack.c.b16 %v519, %v518
      %v542 = vpack.c.b16 %v521, %v520
      %v543 = vpack.c.b16 %v523, %v522
      %v544 = vpack.c.b16 %v525, %v524
      %v545 = vpack.c.b16 %v527, %v526
      %v546 = vpack.c.b16 %v529, %v528
      %v547 = vpack.c.b16 %v531, %v530
      %564 = vmatprep.subr.bf16.mxu0 0
      %565 = vmatpush1.bf16.msra.mxu0 %v532
      %566 = vmatprep.subr.bf16.mxu0 0
      %567 = vmatpush1.bf16.msra.mxu0 %v533
      %568 = vmatprep.subr.bf16.mxu0 0
      %569 = vmatpush1.bf16.msra.mxu0 %v534
      %570 = vmatprep.subr.bf16.mxu0 0
      %571 = vmatpush1.bf16.msra.mxu0 %v535
      %572 = vmatprep.subr.bf16.mxu0 0
      %573 = vmatpush1.bf16.msra.mxu0 %v536
      %574 = vmatprep.subr.bf16.mxu0 0
      %575 = vmatpush1.bf16.msra.mxu0 %v537
      %576 = vmatprep.subr.bf16.mxu0 0
      %577 = vmatpush1.bf16.msra.mxu0 %v538
      %578 = vmatprep.subr.bf16.mxu0 0
      %579 = vmatpush1.bf16.msra.mxu0 %v539
      %580 = vmatprep.subr.bf16.mxu0 0
      %581 = vmatpush1.bf16.msra.mxu0 %v540
      %582 = vmatprep.subr.bf16.mxu0 0
      %583 = vmatpush1.bf16.msra.mxu0 %v541
      %584 = vmatprep.subr.bf16.mxu0 0
      %585 = vmatpush1.bf16.msra.mxu0 %v542
      %586 = vmatprep.subr.bf16.mxu0 0
      %587 = vmatpush1.bf16.msra.mxu0 %v543
      %588 = vmatprep.subr.bf16.mxu0 0
      %589 = vmatpush1.bf16.msra.mxu0 %v544
      %590 = vmatprep.subr.bf16.mxu0 0
      %591 = vmatpush1.bf16.msra.mxu0 %v545
      %592 = vmatprep.subr.bf16.mxu0 0
      %593 = vmatpush1.bf16.msra.mxu0 %v546
      %594 = vmatprep.subr.bf16.mxu0 0
      %595 = vmatpush1.bf16.msra.mxu0 %v547
      %596 = vmatprep.mubr.bf16.mxu0 %v428
      %597 = vmatmul.mubr.bf16.gmra.mrb[0].mxu0 %v427
      %v598 = vpop.f32.mrb[0].mxu0
      %v599 = vadd.f32 %v466, %v598
      %v600 = vpop.f32.mrb[0].mxu0
      %v601 = vpop.f32.mrb[0].mxu0
      %v602 = vpop.f32.mrb[0].mxu0
      %603 = vdwg.mxu0
      %v604 = vunpack.c.l.bf16 %v275
      %v605 = vadd.f32 %v599, %v604
      %606 = vadd.xlane.f32.xlu0 %v605
      %v607 = vpop.xlane.xlu0 %606
      %v608 = vrcp.pop 128.0
      %v609 = vmul.f32 %v607, %v608
      %v610 = vsub.f32 %v605, %v609
      %v611 = vmul.f32 %v610, %v610
      %612 = vadd.xlane.f32.xlu0 %v611
      %v613 = vpop.xlane.xlu0 %612
      %v614 = vmul.f32 %v613, %v608
      %v615 = vadd.f32 %v614, 1e-05
      %v616 = vrsqrt.pop %v615
      %v617 = vmul.f32 %v610, %v616
      %v618 = vld [vmem:[%s5] sm:$0x1]
      %v620 = vlaneseq
      %v621 = vshrl.u32 %v620, 7
      %v622 = vsub.s32 0, %v621
      %v623 = vrot.slane %v618, %v622
      %v625 = vmul.f32 %v617, %v623
      %v626 = vld [vmem:[%s6] sm:$0x1]
      %v628 = vlaneseq
      %v629 = vshrl.u32 %v628, 7
      %v630 = vsub.s32 0, %v629
      %v631 = vrot.slane %v626, %v630
      %v633 = vadd.f32 %v625, %v631
      %v634 = vpack.c.bf16 %v633, %v633
      %635 = vst [vmem:[%s273] sm:$0xf] %v634
      %p636 = scmp.lt.s32.totalorder %s18, 1
      %s637 = scalar_select %p636, %s18, 1
      %s638 = smul.addr %s637, 4
      %s639 = scalar_lea.vmem %s7, %s638
      // Predicated region
      $region49: #{transformer_forward.12} parent=47 // pred_check
        %p640 = pneg %p188
      $region50: #{transformer_forward.12} parent=47 // pred_check_branch
        %642 = sbr.rel (%p640) target = $region52
      $region51: #{transformer_forward.12} parent=47 // pred_region
        _
      $region52: #{transformer_forward.12} parent=47 // pred_fallthru
        _
    $region48: #{transformer_forward.12} parent=5 // pred_fallthru
      _
    %p643 = scmp.le.s32.totalorder 2, %s13
    // Predicated region
    $region53: #{transformer_forward.12} parent=5 // pred_check
      %p644 = pneg %p643
    $region54: #{transformer_forward.12} parent=5 // pred_check_branch
      %646 = sbr.rel (%p644) target = $region56
    $region55: #{transformer_forward.12} parent=5 // pred_region
      %s647 = ssub.s32 %s13, 2
      // Predicated region
      $region57: #{transformer_forward.12} parent=55 // pred_check
        %p648 = pneg %p194
      $region58: #{transformer_forward.12} parent=55 // pred_check_branch
        %650 = sbr.rel (%p648) target = $region60
      $region59: #{transformer_forward.12} parent=55 // pred_region
        %p651 = scmp.lt.s32.totalorder %s19, 1
        %s652 = scalar_select %p651, %s19, 1
        %s653 = smul.addr %s652, 4
        %s654 = scalar_lea.vmem %s7, %s653
      $region60: #{transformer_forward.12} parent=55 // pred_fallthru
        _
    $region56: #{transformer_forward.12} parent=5 // pred_fallthru
      _
  $region6: #{transformer_forward.12} parent=0 // loop_footer
    %s17 = sadd.s32 1, %s13
  $region7: #{transformer_forward.12} parent=0 // loop_footer_branch
    %12 = sbr.rel target = $region3
  $region8: #{transformer_forward.12} parent=0 // loop_exit
    _

// kernel: transformer_forward.11
$region0: #{transformer_forward.11}
  #allocation0 [shape = 'u32[]', space=smem, size = 0x4, offset = 0x4, fixed_abs, tag = 'smem constant byte address 0x4 - core index']
  #allocation1 [shape = 'u32[144,128]{1,0:T(1,128)}', space=vmem, size = 0x12000, scoped, tag = 'internal scratch']
  %s0 = inlined_call_operand.vmem [shape: bf16[2,8,128], index: 0, kind: input, shape index: {}, may-alias: {0,1}]
  %s1 = inlined_call_operand.vmem [shape: bf16[2,8,128], index: 1, kind: input, shape index: {}, may-alias: {0,1}]
  %s2 = inlined_call_operand.vmem [shape: f32[2,1,8], index: 2, kind: input, shape index: {}]
  %s3 = inlined_call_operand.vmem [shape: bf16[128,128], index: 3, kind: input, shape index: {}]
  %s4 = inlined_call_operand.vmem [shape: f32[1,128], index: 4, kind: input, shape index: {}]
  %s5 = inlined_call_operand.vmem [shape: bf16[128,256], index: 5, kind: input, shape index: {}]
  %s6 = inlined_call_operand.vmem [shape: f32[1,256], index: 6, kind: input, shape index: {}]
  %s7 = inlined_call_operand.vmem [shape: bf16[128,128], index: 7, kind: input, shape index: {}]
  %s8 = inlined_call_operand.vmem [shape: f32[1,128], index: 8, kind: input, shape index: {}]
  %s9 = inlined_call_operand.vmem [shape: f32[1,128], index: 9, kind: input, shape index: {}]
  %s10 = inlined_call_operand.vmem [shape: f32[1,128], index: 10, kind: input, shape index: {}]
  %s11 = inlined_call_operand.vmem [shape: bf16[2,8,128], index: 11, kind: output, shape index: {}]
  %s12 = sld [smem:[#allocation0]]
  $region77: #{transformer_forward.11} parent=0
    _
  %s14 = ssub.s32 1, %s12
  %s15 = scalar_select 0, %s14, %s12
  loop: start=0, step=1, limit=4
  $region2: #{transformer_forward.11} parent=0 // loop_pre_header
    _
  $region3: #{transformer_forward.11} parent=0 // loop_header
    %s17 = sphi 0, %s21
    %p18 = scmp.ge.s32.totalorder %s17, 4
    %s27 = sphi 0, %s29
    %s30 = sphi 0, %s27
    %s31 = sphi 0, %s30
    %s47 = sphi 0, %s31
    %s53 = sphi 0, %s55
    %s56 = sphi 0, %s53
    %s57 = sphi 0, %s56
    %s73 = sphi 0, %s57
    %s79 = sphi 0, %s81
    %s82 = sphi 0, %s79
    %s83 = sphi 0, %s82
    %s99 = sphi 0, %s83
    %s103 = sphi 0, %s103
    %s105 = sphi 0, %s103
    %s106 = sphi 0, %s105
    %s120 = sphi 0, %s106
    %s124 = sphi 0, %s124
    %s126 = sphi 0, %s124
    %s127 = sphi 0, %s126
    %s141 = sphi 0, %s127
    %s145 = sphi 0, %s145
    %s147 = sphi 0, %s145
    %s148 = sphi 0, %s147
    %s162 = sphi 0, %s148
    %s166 = sphi 0, %s166
    %s168 = sphi 0, %s166
    %s169 = sphi 0, %s168
    %s183 = sphi 0, %s169
    %s187 = sphi 0, %s187
    %s189 = sphi 0, %s187
    %s190 = sphi 0, %s189
    %s204 = sphi 0, %s190
    %s208 = sphi 0, %s208
    %s210 = sphi 0, %s208
    %s211 = sphi 0, %s210
    %s225 = sphi 0, %s211
    %s229 = sphi 0, %s229
    %s231 = sphi 0, %s229
    %s232 = sphi 0, %s231
    %s246 = sphi 0, %s232
    %s250 = sphi 0, %s250
    %s252 = sphi 0, %s250
    %s253 = sphi 0, %s252
    %s267 = sphi 0, %s253
    %s273 = sphi 0, %s275
    %s276 = sphi 0, %s273
    %s277 = sphi 0, %s276
    %s293 = sphi 0, %s277
  $region4: #{transformer_forward.11} parent=0 // loop_header_branch
    %20 = sbr.rel (%p18) target = $region8
  $region5: #{transformer_forward.11} parent=0 // loop_body
    %s22 = ssub.s32 %s17, 1
    %s23 = ssub.s32 %s17, 2
    %s24 = sadd.s32 %s17, 1
    %s25 = ssub.s32 %s17, %s24
    %p26 = scmp.eq.s32.totalorder %s25, 0
    %s28 = sadd.s32 %s27, 1
    %s29 = scalar_select %p26, %s27, %s28
    %p32 = pneg %p26
    %p33 = scmp.eq.s32.totalorder %s17, 1
    %p34 = por %p32, %p33
    %p35 = scmp.ne.s32.totalorder %s27, %s30
    %p36 = scmp.eq.s32.totalorder %s17, 0
    %p37 = por %p35, %p36
    %p38 = scmp.ne.s32.totalorder %s27, %s30
    %p39 = scmp.eq.s32.totalorder %s22, 1
    %p40 = por %p38, %p39
    %p41 = scmp.ne.s32.totalorder %s30, %s31
    %p42 = scmp.eq.s32.totalorder %s22, 0
    %p43 = por %p41, %p42
    %p44 = scmp.ne.s32.totalorder %s30, %s31
    %p45 = scmp.eq.s32.totalorder %s23, 1
    %p46 = por %p44, %p45
    %p48 = scmp.ne.s32.totalorder %s31, %s47
    %p49 = scmp.eq.s32.totalorder %s23, 0
    %p50 = por %p48, %p49
    %s51 = ssub.s32 %s17, %s24
    %p52 = scmp.eq.s32.totalorder %s51, 0
    %s54 = sadd.s32 %s53, 1
    %s55 = scalar_select %p52, %s53, %s54
    %p58 = pneg %p52
    %p59 = scmp.eq.s32.totalorder %s17, 1
    %p60 = por %p58, %p59
    %p61 = scmp.ne.s32.totalorder %s53, %s56
    %p62 = scmp.eq.s32.totalorder %s17, 0
    %p63 = por %p61, %p62
    %p64 = scmp.ne.s32.totalorder %s53, %s56
    %p65 = scmp.eq.s32.totalorder %s22, 1
    %p66 = por %p64, %p65
    %p67 = scmp.ne.s32.totalorder %s56, %s57
    %p68 = scmp.eq.s32.totalorder %s22, 0
    %p69 = por %p67, %p68
    %p70 = scmp.ne.s32.totalorder %s56, %s57
    %p71 = scmp.eq.s32.totalorder %s23, 1
    %p72 = por %p70, %p71
    %p74 = scmp.ne.s32.totalorder %s57, %s73
    %p75 = scmp.eq.s32.totalorder %s23, 0
    %p76 = por %p74, %p75
    %s77 = ssub.s32 %s17, %s24
    %p78 = scmp.eq.s32.totalorder %s77, 0
    %s80 = sadd.s32 %s79, 1
    %s81 = scalar_select %p78, %s79, %s80
    %p84 = pneg %p78
    %p85 = scmp.eq.s32.totalorder %s17, 1
    %p86 = por %p84, %p85
    %p87 = scmp.ne.s32.totalorder %s79, %s82
    %p88 = scmp.eq.s32.totalorder %s17, 0
    %p89 = por %p87, %p88
    %p90 = scmp.ne.s32.totalorder %s79, %s82
    %p91 = scmp.eq.s32.totalorder %s22, 1
    %p92 = por %p90, %p91
    %p93 = scmp.ne.s32.totalorder %s82, %s83
    %p94 = scmp.eq.s32.totalorder %s22, 0
    %p95 = por %p93, %p94
    %p96 = scmp.ne.s32.totalorder %s82, %s83
    %p97 = scmp.eq.s32.totalorder %s23, 1
    %p98 = por %p96, %p97
    %p100 = scmp.ne.s32.totalorder %s83, %s99
    %p101 = scmp.eq.s32.totalorder %s23, 0
    %p102 = por %p100, %p101
    %s104 = sadd.s32 %s103, 1
    %p107 = scmp.eq.s32.totalorder %s17, 1
    %p108 = scmp.ne.s32.totalorder %s103, %s105
    %p109 = scmp.eq.s32.totalorder %s17, 0
    %p110 = por %p108, %p109
    %p111 = scmp.ne.s32.totalorder %s103, %s105
    %p112 = scmp.eq.s32.totalorder %s22, 1
    %p113 = por %p111, %p112
    %p114 = scmp.ne.s32.totalorder %s105, %s106
    %p115 = scmp.eq.s32.totalorder %s22, 0
    %p116 = por %p114, %p115
    %p117 = scmp.ne.s32.totalorder %s105, %s106
    %p118 = scmp.eq.s32.totalorder %s23, 1
    %p119 = por %p117, %p118
    %p121 = scmp.ne.s32.totalorder %s106, %s120
    %p122 = scmp.eq.s32.totalorder %s23, 0
    %p123 = por %p121, %p122
    %s125 = sadd.s32 %s124, 1
    %p128 = scmp.eq.s32.totalorder %s17, 1
    %p129 = scmp.ne.s32.totalorder %s124, %s126
    %p130 = scmp.eq.s32.totalorder %s17, 0
    %p131 = por %p129, %p130
    %p132 = scmp.ne.s32.totalorder %s124, %s126
    %p133 = scmp.eq.s32.totalorder %s22, 1
    %p134 = por %p132, %p133
    %p135 = scmp.ne.s32.totalorder %s126, %s127
    %p136 = scmp.eq.s32.totalorder %s22, 0
    %p137 = por %p135, %p136
    %p138 = scmp.ne.s32.totalorder %s126, %s127
    %p139 = scmp.eq.s32.totalorder %s23, 1
    %p140 = por %p138, %p139
    %p142 = scmp.ne.s32.totalorder %s127, %s141
    %p143 = scmp.eq.s32.totalorder %s23, 0
    %p144 = por %p142, %p143
    %s146 = sadd.s32 %s145, 1
    %p149 = scmp.eq.s32.totalorder %s17, 1
    %p150 = scmp.ne.s32.totalorder %s145, %s147
    %p151 = scmp.eq.s32.totalorder %s17, 0
    %p152 = por %p150, %p151
    %p153 = scmp.ne.s32.totalorder %s145, %s147
    %p154 = scmp.eq.s32.totalorder %s22, 1
    %p155 = por %p153, %p154
    %p156 = scmp.ne.s32.totalorder %s147, %s148
    %p157 = scmp.eq.s32.totalorder %s22, 0
    %p158 = por %p156, %p157
    %p159 = scmp.ne.s32.totalorder %s147, %s148
    %p160 = scmp.eq.s32.totalorder %s23, 1
    %p161 = por %p159, %p160
    %p163 = scmp.ne.s32.totalorder %s148, %s162
    %p164 = scmp.eq.s32.totalorder %s23, 0
    %p165 = por %p163, %p164
    %s167 = sadd.s32 %s166, 1
    %p170 = scmp.eq.s32.totalorder %s17, 1
    %p171 = scmp.ne.s32.totalorder %s166, %s168
    %p172 = scmp.eq.s32.totalorder %s17, 0
    %p173 = por %p171, %p172
    %p174 = scmp.ne.s32.totalorder %s166, %s168
    %p175 = scmp.eq.s32.totalorder %s22, 1
    %p176 = por %p174, %p175
    %p177 = scmp.ne.s32.totalorder %s168, %s169
    %p178 = scmp.eq.s32.totalorder %s22, 0
    %p179 = por %p177, %p178
    %p180 = scmp.ne.s32.totalorder %s168, %s169
    %p181 = scmp.eq.s32.totalorder %s23, 1
    %p182 = por %p180, %p181
    %p184 = scmp.ne.s32.totalorder %s169, %s183
    %p185 = scmp.eq.s32.totalorder %s23, 0
    %p186 = por %p184, %p185
    %s188 = sadd.s32 %s187, 1
    %p191 = scmp.eq.s32.totalorder %s17, 1
    %p192 = scmp.ne.s32.totalorder %s187, %s189
    %p193 = scmp.eq.s32.totalorder %s17, 0
    %p194 = por %p192, %p193
    %p195 = scmp.ne.s32.totalorder %s187, %s189
    %p196 = scmp.eq.s32.totalorder %s22, 1
    %p197 = por %p195, %p196
    %p198 = scmp.ne.s32.totalorder %s189, %s190
    %p199 = scmp.eq.s32.totalorder %s22, 0
    %p200 = por %p198, %p199
    %p201 = scmp.ne.s32.totalorder %s189, %s190
    %p202 = scmp.eq.s32.totalorder %s23, 1
    %p203 = por %p201, %p202
    %p205 = scmp.ne.s32.totalorder %s190, %s204
    %p206 = scmp.eq.s32.totalorder %s23, 0
    %p207 = por %p205, %p206
    %s209 = sadd.s32 %s208, 1
    %p212 = scmp.eq.s32.totalorder %s17, 1
    %p213 = scmp.ne.s32.totalorder %s208, %s210
    %p214 = scmp.eq.s32.totalorder %s17, 0
    %p215 = por %p213, %p214
    %p216 = scmp.ne.s32.totalorder %s208, %s210
    %p217 = scmp.eq.s32.totalorder %s22, 1
    %p218 = por %p216, %p217
    %p219 = scmp.ne.s32.totalorder %s210, %s211
    %p220 = scmp.eq.s32.totalorder %s22, 0
    %p221 = por %p219, %p220
    %p222 = scmp.ne.s32.totalorder %s210, %s211
    %p223 = scmp.eq.s32.totalorder %s23, 1
    %p224 = por %p222, %p223
    %p226 = scmp.ne.s32.totalorder %s211, %s225
    %p227 = scmp.eq.s32.totalorder %s23, 0
    %p228 = por %p226, %p227
    %s230 = sadd.s32 %s229, 1
    %p233 = scmp.eq.s32.totalorder %s17, 1
    %p234 = scmp.ne.s32.totalorder %s229, %s231
    %p235 = scmp.eq.s32.totalorder %s17, 0
    %p236 = por %p234, %p235
    %p237 = scmp.ne.s32.totalorder %s229, %s231
    %p238 = scmp.eq.s32.totalorder %s22, 1
    %p239 = por %p237, %p238
    %p240 = scmp.ne.s32.totalorder %s231, %s232
    %p241 = scmp.eq.s32.totalorder %s22, 0
    %p242 = por %p240, %p241
    %p243 = scmp.ne.s32.totalorder %s231, %s232
    %p244 = scmp.eq.s32.totalorder %s23, 1
    %p245 = por %p243, %p244
    %p247 = scmp.ne.s32.totalorder %s232, %s246
    %p248 = scmp.eq.s32.totalorder %s23, 0
    %p249 = por %p247, %p248
    %s251 = sadd.s32 %s250, 1
    %p254 = scmp.eq.s32.totalorder %s17, 1
    %p255 = scmp.ne.s32.totalorder %s250, %s252
    %p256 = scmp.eq.s32.totalorder %s17, 0
    %p257 = por %p255, %p256
    %p258 = scmp.ne.s32.totalorder %s250, %s252
    %p259 = scmp.eq.s32.totalorder %s22, 1
    %p260 = por %p258, %p259
    %p261 = scmp.ne.s32.totalorder %s252, %s253
    %p262 = scmp.eq.s32.totalorder %s22, 0
    %p263 = por %p261, %p262
    %p264 = scmp.ne.s32.totalorder %s252, %s253
    %p265 = scmp.eq.s32.totalorder %s23, 1
    %p266 = por %p264, %p265
    %p268 = scmp.ne.s32.totalorder %s253, %s267
    %p269 = scmp.eq.s32.totalorder %s23, 0
    %p270 = por %p268, %p269
    %s271 = ssub.s32 %s17, %s24
    %p272 = scmp.eq.s32.totalorder %s271, 0
    %s274 = sadd.s32 %s273, 1
    %s275 = scalar_select %p272, %s273, %s274
    %p278 = pneg %p272
    %p279 = scmp.eq.s32.totalorder %s17, 1
    %p280 = por %p278, %p279
    %p281 = scmp.ne.s32.totalorder %s273, %s276
    %p282 = scmp.eq.s32.totalorder %s17, 0
    %p283 = por %p281, %p282
    %p284 = scmp.ne.s32.totalorder %s273, %s276
    %p285 = scmp.eq.s32.totalorder %s22, 1
    %p286 = por %p284, %p285
    %p287 = scmp.ne.s32.totalorder %s276, %s277
    %p288 = scmp.eq.s32.totalorder %s22, 0
    %p289 = por %p287, %p288
    %p290 = scmp.ne.s32.totalorder %s276, %s277
    %p291 = scmp.eq.s32.totalorder %s23, 1
    %p292 = por %p290, %p291
    %p294 = scmp.ne.s32.totalorder %s277, %s293
    %p295 = scmp.eq.s32.totalorder %s23, 0
    %p296 = por %p294, %p295
    %p297 = scmp.le.s32.totalorder 1, %s17
    %p298 = scmp.lt.s32.totalorder %s17, 3
    %p299 = pnand %p297, %p298
    %p300 = pneg %p299
    // Predicated region
    $region9: #{transformer_forward.11} parent=5 // pred_check
      _
    $region10: #{transformer_forward.11} parent=5 // pred_check_branch
      %302 = sbr.rel (%p299) target = $region12
    $region11: #{transformer_forward.11} parent=5 // pred_region
      %s303 = ssub.s32 %s17, 1
      // Predicated region
      $region13: #{transformer_forward.11} parent=11 // pred_check
        %p304 = pneg %p116
      $region14: #{transformer_forward.11} parent=11 // pred_check_branch
        %306 = sbr.rel (%p304) target = $region16
      $region15: #{transformer_forward.11} parent=11 // pred_region
        _
      $region16: #{transformer_forward.11} parent=11 // pred_fallthru
        _
      // Predicated region
      $region17: #{transformer_forward.11} parent=11 // pred_check
        %p307 = pneg %p137
      $region18: #{transformer_forward.11} parent=11 // pred_check_branch
        %309 = sbr.rel (%p307) target = $region20
      $region19: #{transformer_forward.11} parent=11 // pred_region
        _
      $region20: #{transformer_forward.11} parent=11 // pred_fallthru
        _
      // Predicated region
      $region21: #{transformer_forward.11} parent=11 // pred_check
        %p310 = pneg %p158
      $region22: #{transformer_forward.11} parent=11 // pred_check_branch
        %312 = sbr.rel (%p310) target = $region24
      $region23: #{transformer_forward.11} parent=11 // pred_region
        _
      $region24: #{transformer_forward.11} parent=11 // pred_fallthru
        _
      // Predicated region
      $region25: #{transformer_forward.11} parent=11 // pred_check
        %p313 = pneg %p179
      $region26: #{transformer_forward.11} parent=11 // pred_check_branch
        %315 = sbr.rel (%p313) target = $region28
      $region27: #{transformer_forward.11} parent=11 // pred_region
        _
      $region28: #{transformer_forward.11} parent=11 // pred_fallthru
        _
      // Predicated region
      $region29: #{transformer_forward.11} parent=11 // pred_check
        %p316 = pneg %p200
      $region30: #{transformer_forward.11} parent=11 // pred_check_branch
        %318 = sbr.rel (%p316) target = $region32
      $region31: #{transformer_forward.11} parent=11 // pred_region
        _
      $region32: #{transformer_forward.11} parent=11 // pred_fallthru
        _
      // Predicated region
      $region33: #{transformer_forward.11} parent=11 // pred_check
        %p319 = pneg %p221
      $region34: #{transformer_forward.11} parent=11 // pred_check_branch
        %321 = sbr.rel (%p319) target = $region36
      $region35: #{transformer_forward.11} parent=11 // pred_region
        _
      $region36: #{transformer_forward.11} parent=11 // pred_fallthru
        _
      // Predicated region
      $region37: #{transformer_forward.11} parent=11 // pred_check
        %p322 = pneg %p242
      $region38: #{transformer_forward.11} parent=11 // pred_check_branch
        %324 = sbr.rel (%p322) target = $region40
      $region39: #{transformer_forward.11} parent=11 // pred_region
        _
      $region40: #{transformer_forward.11} parent=11 // pred_fallthru
        _
      // Predicated region
      $region41: #{transformer_forward.11} parent=11 // pred_check
        %p325 = pneg %p263
      $region42: #{transformer_forward.11} parent=11 // pred_check_branch
        %327 = sbr.rel (%p325) target = $region44
      $region43: #{transformer_forward.11} parent=11 // pred_region
        _
      $region44: #{transformer_forward.11} parent=11 // pred_fallthru
        _
    $region12: #{transformer_forward.11} parent=5 // pred_fallthru
      _
    %p328 = scmp.lt.s32.totalorder %s17, 2
    // Predicated region
    $region45: #{transformer_forward.11} parent=5 // pred_check
      %p329 = pneg %p328
    $region46: #{transformer_forward.11} parent=5 // pred_check_branch
      %331 = sbr.rel (%p329) target = $region48
    $region47: #{transformer_forward.11} parent=5 // pred_region
      // Predicated region
      $region49: #{transformer_forward.11} parent=47 // pred_check
        %p332 = pneg %p37
      $region50: #{transformer_forward.11} parent=47 // pred_check_branch
        %334 = sbr.rel (%p332) target = $region52
      $region51: #{transformer_forward.11} parent=47 // pred_region
        %p335 = scmp.lt.s32.totalorder %s17, 1
        %s336 = scalar_select %p335, %s17, 1
        %s337 = smul.addr %s336, 4
        %s338 = scalar_lea.vmem %s0, %s337
      $region52: #{transformer_forward.11} parent=47 // pred_fallthru
        _
      // Predicated region
      $region53: #{transformer_forward.11} parent=47 // pred_check
        %p339 = pneg %p63
      $region54: #{transformer_forward.11} parent=47 // pred_check_branch
        %341 = sbr.rel (%p339) target = $region56
      $region55: #{transformer_forward.11} parent=47 // pred_region
        %p342 = scmp.lt.s32.totalorder %s17, 1
        %s343 = scalar_select %p342, %s17, 1
        %s344 = smul.addr %s343, 4
        %s345 = scalar_lea.vmem %s1, %s344
      $region56: #{transformer_forward.11} parent=47 // pred_fallthru
        _
      // Predicated region
      $region57: #{transformer_forward.11} parent=47 // pred_check
        %p346 = pneg %p89
      $region58: #{transformer_forward.11} parent=47 // pred_check_branch
        %348 = sbr.rel (%p346) target = $region60
      $region59: #{transformer_forward.11} parent=47 // pred_region
        %p349 = scmp.lt.s32.totalorder %s17, 1
        %s350 = scalar_select %p349, %s17, 1
        %s351 = scalar_lea.vmem %s2, %s350
      $region60: #{transformer_forward.11} parent=47 // pred_fallthru
        _
    $region48: #{transformer_forward.11} parent=5 // pred_fallthru
      _
    %p352 = scmp.le.s32.totalorder 1, %s17
    %p353 = scmp.lt.s32.totalorder %s17, 3
    %p354 = pnand %p352, %p353
    %p355 = pneg %p354
    // Predicated region
    $region61: #{transformer_forward.11} parent=5 // pred_check
      _
    $region62: #{transformer_forward.11} parent=5 // pred_check_branch
      %357 = sbr.rel (%p354) target = $region64
    $region63: #{transformer_forward.11} parent=5 // pred_region
      %s358 = ssub.s32 %s17, 1
      %p359 = scmp.lt.s32.totalorder %s22, 1
      %s360 = scalar_select %p359, %s22, 1
      %s361 = smul.addr %s360, 4
      %s362 = scalar_lea.vmem %s0, %s361
      %p363 = pneg %p43
      %p364 = pneg %p40
      %p365 = scmp.lt.s32.totalorder %s22, 1
      %s366 = scalar_select %p365, %s22, 1
      %s367 = smul.addr %s366, 4
      %s368 = scalar_lea.vmem %s1, %s367
      %p369 = pneg %p69
      %p370 = pneg %p66
      %p371 = scmp.lt.s32.totalorder %s22, 1
      %s372 = scalar_select %p371, %s22, 1
      %s373 = scalar_lea.vmem %s2, %s372
      %p374 = pneg %p95
      %p375 = pneg %p92
      %p376 = pneg %p116
      %p377 = pneg %p113
      %p378 = pneg %p137
      %p379 = pneg %p134
      %p380 = pneg %p158
      %p381 = pneg %p155
      %p382 = pneg %p179
      %p383 = pneg %p176
      %p384 = pneg %p200
      %p385 = pneg %p197
      %p386 = pneg %p221
      %p387 = pneg %p218
      %p388 = pneg %p242
      %p389 = pneg %p239
      %p390 = pneg %p263
      %p391 = pneg %p260
      %p392 = pneg %p289
      %p393 = pneg %p286
      %p394 = scmp.lt.s32.totalorder %s22, 1
      %s395 = scalar_select %p394, %s22, 1
      %s396 = smul.addr %s395, 4
      %s397 = scalar_lea.vmem %s11, %s396
      %p398 = scmp.lt.s32.totalorder %s22, 1
      %s399 = scalar_select %p398, %s22, 1
      %s400 = smul.addr %s399, 4
      %s401 = scalar_lea.vmem %s0, %s400
      %p402 = scmp.lt.s32.totalorder %s22, 1
      %s403 = scalar_select %p402, %s22, 1
      %s404 = smul.addr %s403, 4
      %s405 = scalar_lea.vmem %s1, %s404
      %p406 = scmp.lt.s32.totalorder %s22, 1
      %s407 = scalar_select %p406, %s22, 1
      %s408 = scalar_lea.vmem %s2, %s407
      %p409 = scmp.lt.s32.totalorder %s22, 1
      %s410 = scalar_select %p409, %s22, 1
      %s411 = smul.addr %s410, 4
      %s412 = scalar_lea.vmem %s11, %s411
      %v414 = vld [vmem:[%s401] sm:$0xf]
      %v415 = vld [vmem:[%s405] sm:$0xf]
      %v416 = vld [vmem:[%s3] sm:$0xf]
      %v417 = vld [vmem:[%s3 + $0x4] sm:$0xf]
      %v418 = vld [vmem:[%s3 + $0x8] sm:$0xf]
      %v419 = vld [vmem:[%s3 + $0xc] sm:$0xf]
      %v420 = vld [vmem:[%s3 + $0x10] sm:$0xf]
      %v421 = vld [vmem:[%s3 + $0x14] sm:$0xf]
      %v422 = vld [vmem:[%s3 + $0x18] sm:$0xf]
      %v423 = vld [vmem:[%s3 + $0x1c] sm:$0xf]
      %v424 = vld [vmem:[%s3 + $0x20] sm:$0xf]
      %v425 = vld [vmem:[%s3 + $0x24] sm:$0xf]
      %v426 = vld [vmem:[%s3 + $0x28] sm:$0xf]
      %v427 = vld [vmem:[%s3 + $0x2c] sm:$0xf]
      %v428 = vld [vmem:[%s3 + $0x30] sm:$0xf]
      %v429 = vld [vmem:[%s3 + $0x34] sm:$0xf]
      %v430 = vld [vmem:[%s3 + $0x38] sm:$0xf]
      %v431 = vld [vmem:[%s3 + $0x3c] sm:$0xf]
      %v432 = vld [vmem:[%s4] sm:$0x1]
      %v434 = vlaneseq
      %v435 = vshrl.u32 %v434, 7
      %v436 = vsub.s32 0, %v435
      %v437 = vrot.slane %v432, %v436
      %v455 = vunpack.c.l.b16 %v416
      %v456 = vunpack.c.l.b16 %v417
      %v457 = vunpack.c.l.b16 %v418
      %v458 = vunpack.c.l.b16 %v419
      %v459 = vunpack.c.l.b16 %v420
      %v460 = vunpack.c.l.b16 %v421
      %v461 = vunpack.c.l.b16 %v422
      %v462 = vunpack.c.l.b16 %v423
      %v463 = vunpack.c.l.b16 %v424
      %v464 = vunpack.c.l.b16 %v425
      %v465 = vunpack.c.l.b16 %v426
      %v466 = vunpack.c.l.b16 %v427
      %v467 = vunpack.c.l.b16 %v428
      %v468 = vunpack.c.l.b16 %v429
      %v469 = vunpack.c.l.b16 %v430
      %v470 = vunpack.c.l.b16 %v431
      %v471 = vpack.c.b16 %v456, %v455
      %v472 = vpack.c.b16 %v458, %v457
      %v473 = vpack.c.b16 %v460, %v459
      %v474 = vpack.c.b16 %v462, %v461
      %v475 = vpack.c.b16 %v464, %v463
      %v476 = vpack.c.b16 %v466, %v465
      %v477 = vpack.c.b16 %v468, %v467
      %v478 = vpack.c.b16 %v470, %v469
      %487 = vmatprep.subr.bf16.mxu0 0
      %488 = vmatpush1.bf16.msra.mxu0 %v471
      %489 = vmatprep.subr.bf16.mxu0 0
      %490 = vmatpush1.bf16.msra.mxu0 %v472
      %491 = vmatprep.subr.bf16.mxu0 0
      %492 = vmatpush1.bf16.msra.mxu0 %v473
      %493 = vmatprep.subr.bf16.mxu0 0
      %494 = vmatpush1.bf16.msra.mxu0 %v474
      %495 = vmatprep.subr.bf16.mxu0 0
      %496 = vmatpush1.bf16.msra.mxu0 %v475
      %497 = vmatprep.subr.bf16.mxu0 0
      %498 = vmatpush1.bf16.msra.mxu0 %v476
      %499 = vmatprep.subr.bf16.mxu0 0
      %500 = vmatpush1.bf16.msra.mxu0 %v477
      %501 = vmatprep.subr.bf16.mxu0 0
      %502 = vmatpush1.bf16.msra.mxu0 %v478
      %503 = vmatprep.subr.bf16.mxu0 0
      %504 = vmatpush1.bf16.msra.mxu0 0
      %505 = vmatprep.subr.bf16.mxu0 0
      %506 = vmatpush1.bf16.msra.mxu0 0
      %507 = vmatprep.subr.bf16.mxu0 0
      %508 = vmatpush1.bf16.msra.mxu0 0
      %509 = vmatprep.subr.bf16.mxu0 0
      %510 = vmatpush1.bf16.msra.mxu0 0
      %511 = vmatprep.subr.bf16.mxu0 0
      %512 = vmatpush1.bf16.msra.mxu0 0
      %513 = vmatprep.subr.bf16.mxu0 0
      %514 = vmatpush1.bf16.msra.mxu0 0
      %515 = vmatprep.subr.bf16.mxu0 0
      %516 = vmatpush1.bf16.msra.mxu0 0
      %517 = vmatprep.subr.bf16.mxu0 0
      %518 = vmatpush1.bf16.msra.mxu0 0
      %519 = vmatprep.mubr.bf16.mxu0 0
      %520 = vmatmul.mubr.bf16.gmra.mrb[0].mxu0 %v414
      %v521 = vpop.f32.mrb[0].mxu0
      %v522 = vadd.f32 %v437, %v521
      %v523 = vpop.f32.mrb[0].mxu0
      %v524 = vpop.f32.mrb[0].mxu0
      %v525 = vpop.f32.mrb[0].mxu0
      %526 = vdwg.mxu0
      %v527 = vmul.f32 %v522, 0.17677669
      %v528 = vld [vmem:[%s5] sm:$0xff]
      %v529 = vld [vmem:[%s5 + $0x8] sm:$0xff]
      %v530 = vld [vmem:[%s5 + $0x10] sm:$0xff]
      %v531 = vld [vmem:[%s5 + $0x18] sm:$0xff]
      %v532 = vld [vmem:[%s5 + $0x20] sm:$0xff]
      %v533 = vld [vmem:[%s5 + $0x28] sm:$0xff]
      %v534 = vld [vmem:[%s5 + $0x30] sm:$0xff]
      %v535 = vld [vmem:[%s5 + $0x38] sm:$0xff]
      %v536 = vld [vmem:[%s5 + $0x40] sm:$0xff]
      %v537 = vld [vmem:[%s5 + $0x48] sm:$0xff]
      %v538 = vld [vmem:[%s5 + $0x50] sm:$0xff]
      %v539 = vld [vmem:[%s5 + $0x58] sm:$0xff]
      %v540 = vld [vmem:[%s5 + $0x60] sm:$0xff]
      %v541 = vld [vmem:[%s5 + $0x68] sm:$0xff]
      %v542 = vld [vmem:[%s5 + $0x70] sm:$0xff]
      %v543 = vld [vmem:[%s5 + $0x78] sm:$0xff]
      %v544 = vld [vmem:[%s6] sm:$0x3]
      %v546 = vlaneseq
      %v547 = vshrl.u32 %v546, 7
      %v548 = vsub.s32 0, %v547
      %v549 = vrot.slane %v544, %v548
      %v550 = vlaneseq
      %v551 = vshrl.u32 %v550, 7
      %v552 = vsub.s32 1, %v551
      %v553 = vrot.slane %v544, %v552
      %v572 = vunpack.c.l.b16 %v528
      %v573 = vunpack.c.h.b16 %v528
      %v574 = vunpack.c.l.b16 %v529
      %v575 = vunpack.c.h.b16 %v529
      %v576 = vunpack.c.l.b16 %v530
      %v577 = vunpack.c.h.b16 %v530
      %v578 = vunpack.c.l.b16 %v531
      %v579 = vunpack.c.h.b16 %v531
      %v580 = vunpack.c.l.b16 %v532
      %v581 = vunpack.c.h.b16 %v532
      %v582 = vunpack.c.l.b16 %v533
      %v583 = vunpack.c.h.b16 %v533
      %v584 = vunpack.c.l.b16 %v534
      %v585 = vunpack.c.h.b16 %v534
      %v586 = vunpack.c.l.b16 %v535
      %v587 = vunpack.c.h.b16 %v535
      %v588 = vunpack.c.l.b16 %v536
      %v589 = vunpack.c.h.b16 %v536
      %v590 = vunpack.c.l.b16 %v537
      %v591 = vunpack.c.h.b16 %v537
      %v592 = vunpack.c.l.b16 %v538
      %v593 = vunpack.c.h.b16 %v538
      %v594 = vunpack.c.l.b16 %v539
      %v595 = vunpack.c.h.b16 %v539
      %v596 = vunpack.c.l.b16 %v540
      %v597 = vunpack.c.h.b16 %v540
      %v598 = vunpack.c.l.b16 %v541
      %v599 = vunpack.c.h.b16 %v541
      %v600 = vunpack.c.l.b16 %v542
      %v601 = vunpack.c.h.b16 %v542
      %v602 = vunpack.c.l.b16 %v543
      %v603 = vunpack.c.h.b16 %v543
      %v604 = vpack.c.b16 %v574, %v572
      %v605 = vpack.c.b16 %v575, %v573
      %v606 = vpack.c.b16 %v578, %v576
      %v607 = vpack.c.b16 %v579, %v577
      %v608 = vpack.c.b16 %v582, %v580
      %v609 = vpack.c.b16 %v583, %v581
      %v610 = vpack.c.b16 %v586, %v584
      %v611 = vpack.c.b16 %v587, %v585
      %v612 = vpack.c.b16 %v590, %v588
      %v613 = vpack.c.b16 %v591, %v589
      %v614 = vpack.c.b16 %v594, %v592
      %v615 = vpack.c.b16 %v595, %v593
      %v616 = vpack.c.b16 %v598, %v596
      %v617 = vpack.c.b16 %v599, %v597
      %v618 = vpack.c.b16 %v602, %v600
      %v619 = vpack.c.b16 %v603, %v601
      %636 = vmatprep.subr.bf16.mxu0 %v605
      %637 = vmatpush1.bf16.msra.mxu0 %v604
      %638 = vmatprep.subr.bf16.mxu0 %v607
      %639 = vmatpush1.bf16.msra.mxu0 %v606
      %640 = vmatprep.subr.bf16.mxu0 %v609
      %641 = vmatpush1.bf16.msra.mxu0 %v608
      %642 = vmatprep.subr.bf16.mxu0 %v611
      %643 = vmatpush1.bf16.msra.mxu0 %v610
      %644 = vmatprep.subr.bf16.mxu0 %v613
      %645 = vmatpush1.bf16.msra.mxu0 %v612
      %646 = vmatprep.subr.bf16.mxu0 %v615
      %647 = vmatpush1.bf16.msra.mxu0 %v614
      %648 = vmatprep.subr.bf16.mxu0 %v617
      %649 = vmatpush1.bf16.msra.mxu0 %v616
      %650 = vmatprep.subr.bf16.mxu0 %v619
      %651 = vmatpush1.bf16.msra.mxu0 %v618
      %652 = vmatprep.subr.bf16.mxu0 0
      %653 = vmatpush1.bf16.msra.mxu0 0
      %654 = vmatprep.subr.bf16.mxu0 0
      %655 = vmatpush1.bf16.msra.mxu0 0
      %656 = vmatprep.subr.bf16.mxu0 0
      %657 = vmatpush1.bf16.msra.mxu0 0
      %658 = vmatprep.subr.bf16.mxu0 0
      %659 = vmatpush1.bf16.msra.mxu0 0
      %660 = vmatprep.subr.bf16.mxu0 0
      %661 = vmatpush1.bf16.msra.mxu0 0
      %662 = vmatprep.subr.bf16.mxu0 0
      %663 = vmatpush1.bf16.msra.mxu0 0
      %664 = vmatprep.subr.bf16.mxu0 0
      %665 = vmatpush1.bf16.msra.mxu0 0
      %666 = vmatprep.subr.bf16.mxu0 0
      %667 = vmatpush1.bf16.msra.mxu0 0
      %668 = vmatprep.mubr.bf16.mxu0 0
      %669 = vmatmul.mubr.bf16.gmra.mrb[0].mxu0 %v415
      %v670 = vpop.f32.mrb[0].mxu0
      %v671 = vadd.f32 %v549, %v670
      %v672 = vpop.f32.mrb[0].mxu0
      %v673 = vadd.f32 %v553, %v672
      %v674 = vpop.f32.mrb[0].mxu0
      %v675 = vpop.f32.mrb[0].mxu0
      %676 = vdwg.mxu0
      %v677 = vld [vmem:[%s408] sm:$0x1]
      %v678 = vld [vmem:[%s7] sm:$0xf]
      %v679 = vld [vmem:[%s7 + $0x4] sm:$0xf]
      %v680 = vld [vmem:[%s7 + $0x8] sm:$0xf]
      %v681 = vld [vmem:[%s7 + $0xc] sm:$0xf]
      %v682 = vld [vmem:[%s7 + $0x10] sm:$0xf]
      %v683 = vld [vmem:[%s7 + $0x14] sm:$0xf]
      %v684 = vld [vmem:[%s7 + $0x18] sm:$0xf]
      %v685 = vld [vmem:[%s7 + $0x1c] sm:$0xf]
      %v686 = vld [vmem:[%s7 + $0x20] sm:$0xf]
      %v687 = vld [vmem:[%s7 + $0x24] sm:$0xf]
      %v688 = vld [vmem:[%s7 + $0x28] sm:$0xf]
      %v689 = vld [vmem:[%s7 + $0x2c] sm:$0xf]
      %v690 = vld [vmem:[%s7 + $0x30] sm:$0xf]
      %v691 = vld [vmem:[%s7 + $0x34] sm:$0xf]
      %v692 = vld [vmem:[%s7 + $0x38] sm:$0xf]
      %v693 = vld [vmem:[%s7 + $0x3c] sm:$0xf]
      %v694 = vpack.c.bf16 %v527, %v527
      %v695 = vpack.c.bf16 %v671, %v671
      %v696 = vpack.c.bf16 %v673, %v673
      %v698 = vlaneseq
      %v699 = vshrl.u32 %v698, 7
      %v700 = vsub.s32 0, %v699
      %v701 = vrot.slane %v677, %v700
      %vm703 = vcmask 261120
      %v705 = vsel %vm703, %v694, 0
      %v708 = vsel %vm703, %v695, 0
      %710 = vmatprep.subr.bf16.mxu0 0
      %711 = vmatpush1.bf16.xpose.msra.mxu0 %v708
      %712 = vmatprep.subr.bf16.mxu0 0
      %713 = vmatpush1.bf16.xpose.msra.mxu0 0
      %714 = vmatprep.subr.bf16.mxu0 0
      %715 = vmatpush1.bf16.xpose.msra.mxu0 0
      %716 = vmatprep.subr.bf16.mxu0 0
      %717 = vmatpush1.bf16.xpose.msra.mxu0 0
      %718 = vmatprep.subr.bf16.mxu0 0
      %719 = vmatpush1.bf16.xpose.msra.mxu0 0
      %720 = vmatprep.subr.bf16.mxu0 0
      %721 = vmatpush1.bf16.xpose.msra.mxu0 0
      %722 = vmatprep.subr.bf16.mxu0 0
      %723 = vmatpush1.bf16.xpose.msra.mxu0 0
      %724 = vmatprep.subr.bf16.mxu0 0
      %725 = vmatpush1.bf16.xpose.msra.mxu0 0
      %726 = vmatprep.subr.bf16.mxu0 0
      %727 = vmatpush1.bf16.xpose.msra.mxu0 0
      %728 = vmatprep.subr.bf16.mxu0 0
      %729 = vmatpush1.bf16.xpose.msra.mxu0 0
      %730 = vmatprep.subr.bf16.mxu0 0
      %731 = vmatpush1.bf16.xpose.msra.mxu0 0
      %732 = vmatprep.subr.bf16.mxu0 0
      %733 = vmatpush1.bf16.xpose.msra.mxu0 0
      %734 = vmatprep.subr.bf16.mxu0 0
      %735 = vmatpush1.bf16.xpose.msra.mxu0 0
      %736 = vmatprep.subr.bf16.mxu0 0
      %737 = vmatpush1.bf16.xpose.msra.mxu0 0
      %738 = vmatprep.subr.bf16.mxu0 0
      %739 = vmatpush1.bf16.xpose.msra.mxu0 0
      %740 = vmatprep.subr.bf16.mxu0 0
      %741 = vmatpush1.bf16.xpose.msra.mxu0 0
      %742 = vmatprep.mubr.bf16.mxu0 0
      %743 = vmatmul.mubr.bf16.gmra.mrb[0].mxu0 %v705
      %v744 = vpop.f32.mrb[0].mxu0
      %v745 = vadd.f32 %v701, %v744
      %v746 = vpop.f32.mrb[0].mxu0
      %v747 = vpop.f32.mrb[0].mxu0
      %v748 = vpop.f32.mrb[0].mxu0
      %749 = vdwg.mxu0
      %vm750 = vcmask 64512
      %v751 = vsel %vm750, %v745, -inf
      %752 = vmax.xlane.f32.xlu0 %v751
      %v753 = vpop.xlane.xlu0 %752
      %v754 = vsub.f32 %v745, %v753
      %v755 = vmul.f32 %v754, 1.442695
      %v756 = vpow.pop %v755
      %v757 = vsel %vm750, %v756, 0.0
      %758 = vadd.xlane.f32.xlu0 %v757
      %v759 = vpop.xlane.xlu0 %758
      %v760 = vrcp.pop %v759
      %v761 = vmul.f32 %v756, %v760
      %v762 = vpack.c.bf16 %v761, %v761
      %v764 = vsel %vm750, %v762, 0
      %vm766 = vcmask 1043456
      %v768 = vsel %vm766, %v696, 0
      %770 = vmatprep.subr.bf16.mxu0 0
      %771 = vmatpush1.bf16.msra.mxu0 %v768
      %772 = vmatprep.subr.bf16.mxu0 0
      %773 = vmatpush1.bf16.msra.mxu0 0
      %774 = vmatprep.subr.bf16.mxu0 0
      %775 = vmatpush1.bf16.msra.mxu0 0
      %776 = vmatprep.subr.bf16.mxu0 0
      %777 = vmatpush1.bf16.msra.mxu0 0
      %778 = vmatprep.subr.bf16.mxu0 0
      %779 = vmatpush1.bf16.msra.mxu0 0
      %780 = vmatprep.subr.bf16.mxu0 0
      %781 = vmatpush1.bf16.msra.mxu0 0
      %782 = vmatprep.subr.bf16.mxu0 0
      %783 = vmatpush1.bf16.msra.mxu0 0
      %784 = vmatprep.subr.bf16.mxu0 0
      %785 = vmatpush1.bf16.msra.mxu0 0
      %786 = vmatprep.subr.bf16.mxu0 0
      %787 = vmatpush1.bf16.msra.mxu0 0
      %788 = vmatprep.subr.bf16.mxu0 0
      %789 = vmatpush1.bf16.msra.mxu0 0
      %790 = vmatprep.subr.bf16.mxu0 0
      %791 = vmatpush1.bf16.msra.mxu0 0
      %792 = vmatprep.subr.bf16.mxu0 0
      %793 = vmatpush1.bf16.msra.mxu0 0
      %794 = vmatprep.subr.bf16.mxu0 0
      %795 = vmatpush1.bf16.msra.mxu0 0
      %796 = vmatprep.subr.bf16.mxu0 0
      %797 = vmatpush1.bf16.msra.mxu0 0
      %798 = vmatprep.subr.bf16.mxu0 0
      %799 = vmatpush1.bf16.msra.mxu0 0
      %800 = vmatprep.subr.bf16.mxu0 0
      %801 = vmatpush1.bf16.msra.mxu0 0
      %802 = vmatprep.mubr.bf16.mxu0 0
      %803 = vmatmul.mubr.bf16.gmra.mrb[0].mxu0 %v764
      %v804 = vpop.f32.mrb[0].mxu0
      %v805 = vadd.f32 0.0, %v804
      %v806 = vpop.f32.mrb[0].mxu0
      %v807 = vpop.f32.mrb[0].mxu0
      %v808 = vpop.f32.mrb[0].mxu0
      %809 = vdwg.mxu0
      %v810 = vpack.c.bf16 %v805, %v805
      %812 = vrot.lane.b32.xlu0 %v694, 96
      %v813 = vpop.permute.xlu0 %812
      %815 = vrot.lane.b32.xlu0 %v695, 96
      %v816 = vpop.permute.xlu0 %815
      %v818 = vsel %vm703, %v813, 0
      %v821 = vsel %vm703, %v816, 0
      %823 = vmatprep.subr.bf16.mxu0 0
      %824 = vmatpush1.bf16.xpose.msra.mxu0 %v821
      %825 = vmatprep.subr.bf16.mxu0 0
      %826 = vmatpush1.bf16.xpose.msra.mxu0 0
      %827 = vmatprep.subr.bf16.mxu0 0
      %828 = vmatpush1.bf16.xpose.msra.mxu0 0
      %829 = vmatprep.subr.bf16.mxu0 0
      %830 = vmatpush1.bf16.xpose.msra.mxu0 0
      %831 = vmatprep.subr.bf16.mxu0 0
      %832 = vmatpush1.bf16.xpose.msra.mxu0 0
      %833 = vmatprep.subr.bf16.mxu0 0
      %834 = vmatpush1.bf16.xpose.msra.mxu0 0
      %835 = vmatprep.subr.bf16.mxu0 0
      %836 = vmatpush1.bf16.xpose.msra.mxu0 0
      %837 = vmatprep.subr.bf16.mxu0 0
      %838 = vmatpush1.bf16.xpose.msra.mxu0 0
      %839 = vmatprep.subr.bf16.mxu0 0
      %840 = vmatpush1.bf16.xpose.msra.mxu0 0
      %841 = vmatprep.subr.bf16.mxu0 0
      %842 = vmatpush1.bf16.xpose.msra.mxu0 0
      %843 = vmatprep.subr.bf16.mxu0 0
      %844 = vmatpush1.bf16.xpose.msra.mxu0 0
      %845 = vmatprep.subr.bf16.mxu0 0
      %846 = vmatpush1.bf16.xpose.msra.mxu0 0
      %847 = vmatprep.subr.bf16.mxu0 0
      %848 = vmatpush1.bf16.xpose.msra.mxu0 0
      %849 = vmatprep.subr.bf16.mxu0 0
      %850 = vmatpush1.bf16.xpose.msra.mxu0 0
      %851 = vmatprep.subr.bf16.mxu0 0
      %852 = vmatpush1.bf16.xpose.msra.mxu0 0
      %853 = vmatprep.subr.bf16.mxu0 0
      %854 = vmatpush1.bf16.xpose.msra.mxu0 0
      %855 = vmatprep.mubr.bf16.mxu0 0
      %856 = vmatmul.mubr.bf16.gmra.mrb[0].mxu0 %v818
      %v857 = vpop.f32.mrb[0].mxu0
      %v858 = vadd.f32 %v701, %v857
      %v859 = vpop.f32.mrb[0].mxu0
      %v860 = vpop.f32.mrb[0].mxu0
      %v861 = vpop.f32.mrb[0].mxu0
      %862 = vdwg.mxu0
      %v863 = vsel %vm750, %v858, -inf
      %864 = vmax.xlane.f32.xlu0 %v863
      %v865 = vpop.xlane.xlu0 %864
      %v866 = vsub.f32 %v858, %v865
      %v867 = vmul.f32 %v866, 1.442695
      %v868 = vpow.pop %v867
      %v869 = vsel %vm750, %v868, 0.0
      %870 = vadd.xlane.f32.xlu0 %v869
      %v871 = vpop.xlane.xlu0 %870
      %v872 = vrcp.pop %v871
      %v873 = vmul.f32 %v868, %v872
      %v874 = vpack.c.bf16 %v873, %v873
      %876 = vrot.lane.b32.xlu0 %v696, 96
      %v877 = vpop.permute.xlu0 %876
      %v879 = vsel %vm750, %v874, 0
      %v882 = vsel %vm766, %v877, 0
      %884 = vmatprep.subr.bf16.mxu0 0
      %885 = vmatpush1.bf16.msra.mxu0 %v882
      %886 = vmatprep.subr.bf16.mxu0 0
      %887 = vmatpush1.bf16.msra.mxu0 0
      %888 = vmatprep.subr.bf16.mxu0 0
      %889 = vmatpush1.bf16.msra.mxu0 0
      %890 = vmatprep.subr.bf16.mxu0 0
      %891 = vmatpush1.bf16.msra.mxu0 0
      %892 = vmatprep.subr.bf16.mxu0 0
      %893 = vmatpush1.bf16.msra.mxu0 0
      %894 = vmatprep.subr.bf16.mxu0 0
      %895 = vmatpush1.bf16.msra.mxu0 0
      %896 = vmatprep.subr.bf16.mxu0 0
      %897 = vmatpush1.bf16.msra.mxu0 0
      %898 = vmatprep.subr.bf16.mxu0 0
      %899 = vmatpush1.bf16.msra.mxu0 0
      %900 = vmatprep.subr.bf16.mxu0 0
      %901 = vmatpush1.bf16.msra.mxu0 0
      %902 = vmatprep.subr.bf16.mxu0 0
      %903 = vmatpush1.bf16.msra.mxu0 0
      %904 = vmatprep.subr.bf16.mxu0 0
      %905 = vmatpush1.bf16.msra.mxu0 0
      %906 = vmatprep.subr.bf16.mxu0 0
      %907 = vmatpush1.bf16.msra.mxu0 0
      %908 = vmatprep.subr.bf16.mxu0 0
      %909 = vmatpush1.bf16.msra.mxu0 0
      %910 = vmatprep.subr.bf16.mxu0 0
      %911 = vmatpush1.bf16.msra.mxu0 0
      %912 = vmatprep.subr.bf16.mxu0 0
      %913 = vmatpush1.bf16.msra.mxu0 0
      %914 = vmatprep.subr.bf16.mxu0 0
      %915 = vmatpush1.bf16.msra.mxu0 0
      %916 = vmatprep.mubr.bf16.mxu0 0
      %917 = vmatmul.mubr.bf16.gmra.mrb[0].mxu0 %v879
      %v918 = vpop.f32.mrb[0].mxu0
      %v919 = vadd.f32 0.0, %v918
      %v920 = vpop.f32.mrb[0].mxu0
      %v921 = vpop.f32.mrb[0].mxu0
      %v922 = vpop.f32.mrb[0].mxu0
      %923 = vdwg.mxu0
      %v924 = vpack.c.bf16 %v919, %v919
      %v929 = vunpack.c.l.b16 %v682
      %v930 = vunpack.c.l.b16 %v683
      %v931 = vunpack.c.l.b16 %v684
      %v932 = vunpack.c.l.b16 %v685
      %v933 = vpack.c.b16 %v930, %v929
      %v934 = vpack.c.b16 %v932, %v931
      %v938 = vsel %vm703, %v924, 0
      %940 = vmatprep.subr.bf16.mxu0 0
      %941 = vmatpush1.bf16.msra.mxu0 %v933
      %942 = vmatprep.subr.bf16.mxu0 0
      %943 = vmatpush1.bf16.msra.mxu0 %v934
      %944 = vmatprep.subr.bf16.mxu0 0
      %945 = vmatpush1.bf16.msra.mxu0 0
      %946 = vmatprep.subr.bf16.mxu0 0
      %947 = vmatpush1.bf16.msra.mxu0 0
      %948 = vmatprep.subr.bf16.mxu0 0
      %949 = vmatpush1.bf16.msra.mxu0 0
      %950 = vmatprep.subr.bf16.mxu0 0
      %951 = vmatpush1.bf16.msra.mxu0 0
      %952 = vmatprep.subr.bf16.mxu0 0
      %953 = vmatpush1.bf16.msra.mxu0 0
      %954 = vmatprep.subr.bf16.mxu0 0
      %955 = vmatpush1.bf16.msra.mxu0 0
      %956 = vmatprep.subr.bf16.mxu0 0
      %957 = vmatpush1.bf16.msra.mxu0 0
      %958 = vmatprep.subr.bf16.mxu0 0
      %959 = vmatpush1.bf16.msra.mxu0 0
      %960 = vmatprep.subr.bf16.mxu0 0
      %961 = vmatpush1.bf16.msra.mxu0 0
      %962 = vmatprep.subr.bf16.mxu0 0
      %963 = vmatpush1.bf16.msra.mxu0 0
      %964 = vmatprep.subr.bf16.mxu0 0
      %965 = vmatpush1.bf16.msra.mxu0 0
      %966 = vmatprep.subr.bf16.mxu0 0
      %967 = vmatpush1.bf16.msra.mxu0 0
      %968 = vmatprep.subr.bf16.mxu0 0
      %969 = vmatpush1.bf16.msra.mxu0 0
      %970 = vmatprep.subr.bf16.mxu0 0
      %971 = vmatpush1.bf16.msra.mxu0 0
      %972 = vmatprep.mubr.bf16.mxu0 0
      %973 = vmatmul.mubr.bf16.gmra.mrb[0].mxu0 %v938
      %v974 = vpop.f32.mrb[0].mxu0
      %v975 = vadd.f32 0.0, %v974
      %v976 = vpop.f32.mrb[0].mxu0
      %v977 = vpop.f32.mrb[0].mxu0
      %v978 = vpop.f32.mrb[0].mxu0
      %979 = vdwg.mxu0
      %v984 = vunpack.c.l.b16 %v678
      %v985 = vunpack.c.l.b16 %v679
      %v986 = vunpack.c.l.b16 %v680
      %v987 = vunpack.c.l.b16 %v681
      %v988 = vpack.c.b16 %v985, %v984
      %v989 = vpack.c.b16 %v987, %v986
      %v993 = vsel %vm703, %v810, 0
      %995 = vmatprep.subr.bf16.mxu0 0
      %996 = vmatpush1.bf16.msra.mxu0 %v988
      %997 = vmatprep.subr.bf16.mxu0 0
      %998 = vmatpush1.bf16.msra.mxu0 %v989
      %999 = vmatprep.subr.bf16.mxu0 0
      %1000 = vmatpush1.bf16.msra.mxu0 0
      %1001 = vmatprep.subr.bf16.mxu0 0
      %1002 = vmatpush1.bf16.msra.mxu0 0
      %1003 = vmatprep.subr.bf16.mxu0 0
      %1004 = vmatpush1.bf16.msra.mxu0 0
      %1005 = vmatprep.subr.bf16.mxu0 0
      %1006 = vmatpush1.bf16.msra.mxu0 0
      %1007 = vmatprep.subr.bf16.mxu0 0
      %1008 = vmatpush1.bf16.msra.mxu0 0
      %1009 = vmatprep.subr.bf16.mxu0 0
      %1010 = vmatpush1.bf16.msra.mxu0 0
      %1011 = vmatprep.subr.bf16.mxu0 0
      %1012 = vmatpush1.bf16.msra.mxu0 0
      %1013 = vmatprep.subr.bf16.mxu0 0
      %1014 = vmatpush1.bf16.msra.mxu0 0
      %1015 = vmatprep.subr.bf16.mxu0 0
      %1016 = vmatpush1.bf16.msra.mxu0 0
      %1017 = vmatprep.subr.bf16.mxu0 0
      %1018 = vmatpush1.bf16.msra.mxu0 0
      %1019 = vmatprep.subr.bf16.mxu0 0
      %1020 = vmatpush1.bf16.msra.mxu0 0
      %1021 = vmatprep.subr.bf16.mxu0 0
      %1022 = vmatpush1.bf16.msra.mxu0 0
      %1023 = vmatprep.subr.bf16.mxu0 0
      %1024 = vmatpush1.bf16.msra.mxu0 0
      %1025 = vmatprep.subr.bf16.mxu0 0
      %1026 = vmatpush1.bf16.msra.mxu0 0
      %1027 = vmatprep.mubr.bf16.mxu0 0
      %1028 = vmatmul.mubr.bf16.gmra.mrb[0].mxu0 %v993
      %v1029 = vpop.f32.mrb[0].mxu0
      %v1030 = vadd.f32 %v975, %v1029
      %v1031 = vpop.f32.mrb[0].mxu0
      %v1032 = vpop.f32.mrb[0].mxu0
      %v1033 = vpop.f32.mrb[0].mxu0
      %1034 = vdwg.mxu0
      %1035 = vrot.lane.b32.xlu0 %v694, 64
      %v1036 = vpop.permute.xlu0 %1035
      %1037 = vrot.lane.b32.xlu0 %v695, 64
      %v1038 = vpop.permute.xlu0 %1037
      %v1040 = vsel %vm703, %v1036, 0
      %v1043 = vsel %vm703, %v1038, 0
      %1045 = vmatprep.subr.bf16.mxu0 0
      %1046 = vmatpush1.bf16.xpose.msra.mxu0 %v1043
      %1047 = vmatprep.subr.bf16.mxu0 0
      %1048 = vmatpush1.bf16.xpose.msra.mxu0 0
      %1049 = vmatprep.subr.bf16.mxu0 0
      %1050 = vmatpush1.bf16.xpose.msra.mxu0 0
      %1051 = vmatprep.subr.bf16.mxu0 0
      %1052 = vmatpush1.bf16.xpose.msra.mxu0 0
      %1053 = vmatprep.subr.bf16.mxu0 0
      %1054 = vmatpush1.bf16.xpose.msra.mxu0 0
      %1055 = vmatprep.subr.bf16.mxu0 0
      %1056 = vmatpush1.bf16.xpose.msra.mxu0 0
      %1057 = vmatprep.subr.bf16.mxu0 0
      %1058 = vmatpush1.bf16.xpose.msra.mxu0 0
      %1059 = vmatprep.subr.bf16.mxu0 0
      %1060 = vmatpush1.bf16.xpose.msra.mxu0 0
      %1061 = vmatprep.subr.bf16.mxu0 0
      %1062 = vmatpush1.bf16.xpose.msra.mxu0 0
      %1063 = vmatprep.subr.bf16.mxu0 0
      %1064 = vmatpush1.bf16.xpose.msra.mxu0 0
      %1065 = vmatprep.subr.bf16.mxu0 0
      %1066 = vmatpush1.bf16.xpose.msra.mxu0 0
      %1067 = vmatprep.subr.bf16.mxu0 0
      %1068 = vmatpush1.bf16.xpose.msra.mxu0 0
      %1069 = vmatprep.subr.bf16.mxu0 0
      %1070 = vmatpush1.bf16.xpose.msra.mxu0 0
      %1071 = vmatprep.subr.bf16.mxu0 0
      %1072 = vmatpush1.bf16.xpose.msra.mxu0 0
      %1073 = vmatprep.subr.bf16.mxu0 0
      %1074 = vmatpush1.bf16.xpose.msra.mxu0 0
      %1075 = vmatprep.subr.bf16.mxu0 0
      %1076 = vmatpush1.bf16.xpose.msra.mxu0 0
      %1077 = vmatprep.mubr.bf16.mxu0 0
      %1078 = vmatmul.mubr.bf16.gmra.mrb[0].mxu0 %v1040
      %v1079 = vpop.f32.mrb[0].mxu0
      %v1080 = vadd.f32 %v701, %v1079
      %v1081 = vpop.f32.mrb[0].mxu0
      %v1082 = vpop.f32.mrb[0].mxu0
      %v1083 = vpop.f32.mrb[0].mxu0
      %1084 = vdwg.mxu0
      %v1085 = vsel %vm750, %v1080, -inf
      %1086 = vmax.xlane.f32.xlu0 %v1085
      %v1087 = vpop.xlane.xlu0 %1086
      %v1088 = vsub.f32 %v1080, %v1087
      %v1089 = vmul.f32 %v1088, 1.442695
      %v1090 = vpow.pop %v1089
      %v1091 = vsel %vm750, %v1090, 0.0
      %1092 = vadd.xlane.f32.xlu0 %v1091
      %v1093 = vpop.xlane.xlu0 %1092
      %v1094 = vrcp.pop %v1093
      %v1095 = vmul.f32 %v1090, %v1094
      %v1096 = vpack.c.bf16 %v1095, %v1095
      %1097 = vrot.lane.b32.xlu0 %v696, 64
      %v1098 = vpop.permute.xlu0 %1097
      %v1100 = vsel %vm750, %v1096, 0
      %v1103 = vsel %vm766, %v1098, 0
      %1105 = vmatprep.subr.bf16.mxu0 0
      %1106 = vmatpush1.bf16.msra.mxu0 %v1103
      %1107 = vmatprep.subr.bf16.mxu0 0
      %1108 = vmatpush1.bf16.msra.mxu0 0
      %1109 = vmatprep.subr.bf16.mxu0 0
      %1110 = vmatpush1.bf16.msra.mxu0 0
      %1111 = vmatprep.subr.bf16.mxu0 0
      %1112 = vmatpush1.bf16.msra.mxu0 0
      %1113 = vmatprep.subr.bf16.mxu0 0
      %1114 = vmatpush1.bf16.msra.mxu0 0
      %1115 = vmatprep.subr.bf16.mxu0 0
      %1116 = vmatpush1.bf16.msra.mxu0 0
      %1117 = vmatprep.subr.bf16.mxu0 0
      %1118 = vmatpush1.bf16.msra.mxu0 0
      %1119 = vmatprep.subr.bf16.mxu0 0
      %1120 = vmatpush1.bf16.msra.mxu0 0
      %1121 = vmatprep.subr.bf16.mxu0 0
      %1122 = vmatpush1.bf16.msra.mxu0 0
      %1123 = vmatprep.subr.bf16.mxu0 0
      %1124 = vmatpush1.bf16.msra.mxu0 0
      %1125 = vmatprep.subr.bf16.mxu0 0
      %1126 = vmatpush1.bf16.msra.mxu0 0
      %1127 = vmatprep.subr.bf16.mxu0 0
      %1128 = vmatpush1.bf16.msra.mxu0 0
      %1129 = vmatprep.subr.bf16.mxu0 0
      %1130 = vmatpush1.bf16.msra.mxu0 0
      %1131 = vmatprep.subr.bf16.mxu0 0
      %1132 = vmatpush1.bf16.msra.mxu0 0
      %1133 = vmatprep.subr.bf16.mxu0 0
      %1134 = vmatpush1.bf16.msra.mxu0 0
      %1135 = vmatprep.subr.bf16.mxu0 0
      %1136 = vmatpush1.bf16.msra.mxu0 0
      %1137 = vmatprep.mubr.bf16.mxu0 0
      %1138 = vmatmul.mubr.bf16.gmra.mrb[0].mxu0 %v1100
      %v1139 = vpop.f32.mrb[0].mxu0
      %v1140 = vadd.f32 0.0, %v1139
      %v1141 = vpop.f32.mrb[0].mxu0
      %v1142 = vpop.f32.mrb[0].mxu0
      %v1143 = vpop.f32.mrb[0].mxu0
      %1144 = vdwg.mxu0
      %v1145 = vpack.c.bf16 %v1140, %v1140
      %v1150 = vunpack.c.l.b16 %v686
      %v1151 = vunpack.c.l.b16 %v687
      %v1152 = vunpack.c.l.b16 %v688
      %v1153 = vunpack.c.l.b16 %v689
      %v1154 = vpack.c.b16 %v1151, %v1150
      %v1155 = vpack.c.b16 %v1153, %v1152
      %v1159 = vsel %vm703, %v1145, 0
      %1161 = vmatprep.subr.bf16.mxu0 0
      %1162 = vmatpush1.bf16.msra.mxu0 %v1154
      %1163 = vmatprep.subr.bf16.mxu0 0
      %1164 = vmatpush1.bf16.msra.mxu0 %v1155
      %1165 = vmatprep.subr.bf16.mxu0 0
      %1166 = vmatpush1.bf16.msra.mxu0 0
      %1167 = vmatprep.subr.bf16.mxu0 0
      %1168 = vmatpush1.bf16.msra.mxu0 0
      %1169 = vmatprep.subr.bf16.mxu0 0
      %1170 = vmatpush1.bf16.msra.mxu0 0
      %1171 = vmatprep.subr.bf16.mxu0 0
      %1172 = vmatpush1.bf16.msra.mxu0 0
      %1173 = vmatprep.subr.bf16.mxu0 0
      %1174 = vmatpush1.bf16.msra.mxu0 0
      %1175 = vmatprep.subr.bf16.mxu0 0
      %1176 = vmatpush1.bf16.msra.mxu0 0
      %1177 = vmatprep.subr.bf16.mxu0 0
      %1178 = vmatpush1.bf16.msra.mxu0 0
      %1179 = vmatprep.subr.bf16.mxu0 0
      %1180 = vmatpush1.bf16.msra.mxu0 0
      %1181 = vmatprep.subr.bf16.mxu0 0
      %1182 = vmatpush1.bf16.msra.mxu0 0
      %1183 = vmatprep.subr.bf16.mxu0 0
      %1184 = vmatpush1.bf16.msra.mxu0 0
      %1185 = vmatprep.subr.bf16.mxu0 0
      %1186 = vmatpush1.bf16.msra.mxu0 0
      %1187 = vmatprep.subr.bf16.mxu0 0
      %1188 = vmatpush1.bf16.msra.mxu0 0
      %1189 = vmatprep.subr.bf16.mxu0 0
      %1190 = vmatpush1.bf16.msra.mxu0 0
      %1191 = vmatprep.subr.bf16.mxu0 0
      %1192 = vmatpush1.bf16.msra.mxu0 0
      %1193 = vmatprep.mubr.bf16.mxu0 0
      %1194 = vmatmul.mubr.bf16.gmra.mrb[0].mxu0 %v1159
      %v1195 = vpop.f32.mrb[0].mxu0
      %v1196 = vadd.f32 0.0, %v1195
      %v1197 = vpop.f32.mrb[0].mxu0
      %v1198 = vpop.f32.mrb[0].mxu0
      %v1199 = vpop.f32.mrb[0].mxu0
      %1200 = vdwg.mxu0
      %v1201 = vadd.f32 %v1030, %v1196
      %1202 = vrot.lane.b32.xlu0 %v694, 32
      %v1203 = vpop.permute.xlu0 %1202
      %1204 = vrot.lane.b32.xlu0 %v695, 32
      %v1205 = vpop.permute.xlu0 %1204
      %v1207 = vsel %vm703, %v1203, 0
      %v1210 = vsel %vm703, %v1205, 0
      %1212 = vmatprep.subr.bf16.mxu0 0
      %1213 = vmatpush1.bf16.xpose.msra.mxu0 %v1210
      %1214 = vmatprep.subr.bf16.mxu0 0
      %1215 = vmatpush1.bf16.xpose.msra.mxu0 0
      %1216 = vmatprep.subr.bf16.mxu0 0
      %1217 = vmatpush1.bf16.xpose.msra.mxu0 0
      %1218 = vmatprep.subr.bf16.mxu0 0
      %1219 = vmatpush1.bf16.xpose.msra.mxu0 0
      %1220 = vmatprep.subr.bf16.mxu0 0
      %1221 = vmatpush1.bf16.xpose.msra.mxu0 0
      %1222 = vmatprep.subr.bf16.mxu0 0
      %1223 = vmatpush1.bf16.xpose.msra.mxu0 0
      %1224 = vmatprep.subr.bf16.mxu0 0
      %1225 = vmatpush1.bf16.xpose.msra.mxu0 0
      %1226 = vmatprep.subr.bf16.mxu0 0
      %1227 = vmatpush1.bf16.xpose.msra.mxu0 0
      %1228 = vmatprep.subr.bf16.mxu0 0
      %1229 = vmatpush1.bf16.xpose.msra.mxu0 0
      %1230 = vmatprep.subr.bf16.mxu0 0
      %1231 = vmatpush1.bf16.xpose.msra.mxu0 0
      %1232 = vmatprep.subr.bf16.mxu0 0
      %1233 = vmatpush1.bf16.xpose.msra.mxu0 0
      %1234 = vmatprep.subr.bf16.mxu0 0
      %1235 = vmatpush1.bf16.xpose.msra.mxu0 0
      %1236 = vmatprep.subr.bf16.mxu0 0
      %1237 = vmatpush1.bf16.xpose.msra.mxu0 0
      %1238 = vmatprep.subr.bf16.mxu0 0
      %1239 = vmatpush1.bf16.xpose.msra.mxu0 0
      %1240 = vmatprep.subr.bf16.mxu0 0
      %1241 = vmatpush1.bf16.xpose.msra.mxu0 0
      %1242 = vmatprep.subr.bf16.mxu0 0
      %1243 = vmatpush1.bf16.xpose.msra.mxu0 0
      %1244 = vmatprep.mubr.bf16.mxu0 0
      %1245 = vmatmul.mubr.bf16.gmra.mrb[0].mxu0 %v1207
      %v1246 = vpop.f32.mrb[0].mxu0
      %v1247 = vadd.f32 %v701, %v1246
      %v1248 = vpop.f32.mrb[0].mxu0
      %v1249 = vpop.f32.mrb[0].mxu0
      %v1250 = vpop.f32.mrb[0].mxu0
      %1251 = vdwg.mxu0
      %v1252 = vsel %vm750, %v1247, -inf
      %1253 = vmax.xlane.f32.xlu0 %v1252
      %v1254 = vpop.xlane.xlu0 %1253
      %v1255 = vsub.f32 %v1247, %v1254
      %v1256 = vmul.f32 %v1255, 1.442695
      %v1257 = vpow.pop %v1256
      %v1258 = vsel %vm750, %v1257, 0.0
      %1259 = vadd.xlane.f32.xlu0 %v1258
      %v1260 = vpop.xlane.xlu0 %1259
      %v1261 = vrcp.pop %v1260
      %v1262 = vmul.f32 %v1257, %v1261
      %v1263 = vpack.c.bf16 %v1262, %v1262
      %1264 = vrot.lane.b32.xlu0 %v696, 32
      %v1265 = vpop.permute.xlu0 %1264
      %v1267 = vsel %vm750, %v1263, 0
      %v1270 = vsel %vm766, %v1265, 0
      %1272 = vmatprep.subr.bf16.mxu0 0
      %1273 = vmatpush1.bf16.msra.mxu0 %v1270
      %1274 = vmatprep.subr.bf16.mxu0 0
      %1275 = vmatpush1.bf16.msra.mxu0 0
      %1276 = vmatprep.subr.bf16.mxu0 0
      %1277 = vmatpush1.bf16.msra.mxu0 0
      %1278 = vmatprep.subr.bf16.mxu0 0
      %1279 = vmatpush1.bf16.msra.mxu0 0
      %1280 = vmatprep.subr.bf16.mxu0 0
      %1281 = vmatpush1.bf16.msra.mxu0 0
      %1282 = vmatprep.subr.bf16.mxu0 0
      %1283 = vmatpush1.bf16.msra.mxu0 0
      %1284 = vmatprep.subr.bf16.mxu0 0
      %1285 = vmatpush1.bf16.msra.mxu0 0
      %1286 = vmatprep.subr.bf16.mxu0 0
      %1287 = vmatpush1.bf16.msra.mxu0 0
      %1288 = vmatprep.subr.bf16.mxu0 0
      %1289 = vmatpush1.bf16.msra.mxu0 0
      %1290 = vmatprep.subr.bf16.mxu0 0
      %1291 = vmatpush1.bf16.msra.mxu0 0
      %1292 = vmatprep.subr.bf16.mxu0 0
      %1293 = vmatpush1.bf16.msra.mxu0 0
      %1294 = vmatprep.subr.bf16.mxu0 0
      %1295 = vmatpush1.bf16.msra.mxu0 0
      %1296 = vmatprep.subr.bf16.mxu0 0
      %1297 = vmatpush1.bf16.msra.mxu0 0
      %1298 = vmatprep.subr.bf16.mxu0 0
      %1299 = vmatpush1.bf16.msra.mxu0 0
      %1300 = vmatprep.subr.bf16.mxu0 0
      %1301 = vmatpush1.bf16.msra.mxu0 0
      %1302 = vmatprep.subr.bf16.mxu0 0
      %1303 = vmatpush1.bf16.msra.mxu0 0
      %1304 = vmatprep.mubr.bf16.mxu0 0
      %1305 = vmatmul.mubr.bf16.gmra.mrb[0].mxu0 %v1267
      %v1306 = vpop.f32.mrb[0].mxu0
      %v1307 = vadd.f32 0.0, %v1306
      %v1308 = vpop.f32.mrb[0].mxu0
      %v1309 = vpop.f32.mrb[0].mxu0
      %v1310 = vpop.f32.mrb[0].mxu0
      %1311 = vdwg.mxu0
      %v1312 = vpack.c.bf16 %v1307, %v1307
      %v1317 = vunpack.c.l.b16 %v690
      %v1318 = vunpack.c.l.b16 %v691
      %v1319 = vunpack.c.l.b16 %v692
      %v1320 = vunpack.c.l.b16 %v693
      %v1321 = vpack.c.b16 %v1318, %v1317
      %v1322 = vpack.c.b16 %v1320, %v1319
      %v1326 = vsel %vm703, %v1312, 0
      %1328 = vmatprep.subr.bf16.mxu0 0
      %1329 = vmatpush1.bf16.msra.mxu0 %v1321
      %1330 = vmatprep.subr.bf16.mxu0 0
      %1331 = vmatpush1.bf16.msra.mxu0 %v1322
      %1332 = vmatprep.subr.bf16.mxu0 0
      %1333 = vmatpush1.bf16.msra.mxu0 0
      %1334 = vmatprep.subr.bf16.mxu0 0
      %1335 = vmatpush1.bf16.msra.mxu0 0
      %1336 = vmatprep.subr.bf16.mxu0 0
      %1337 = vmatpush1.bf16.msra.mxu0 0
      %1338 = vmatprep.subr.bf16.mxu0 0
      %1339 = vmatpush1.bf16.msra.mxu0 0
      %1340 = vmatprep.subr.bf16.mxu0 0
      %1341 = vmatpush1.bf16.msra.mxu0 0
      %1342 = vmatprep.subr.bf16.mxu0 0
      %1343 = vmatpush1.bf16.msra.mxu0 0
      %1344 = vmatprep.subr.bf16.mxu0 0
      %1345 = vmatpush1.bf16.msra.mxu0 0
      %1346 = vmatprep.subr.bf16.mxu0 0
      %1347 = vmatpush1.bf16.msra.mxu0 0
      %1348 = vmatprep.subr.bf16.mxu0 0
      %1349 = vmatpush1.bf16.msra.mxu0 0
      %1350 = vmatprep.subr.bf16.mxu0 0
      %1351 = vmatpush1.bf16.msra.mxu0 0
      %1352 = vmatprep.subr.bf16.mxu0 0
      %1353 = vmatpush1.bf16.msra.mxu0 0
      %1354 = vmatprep.subr.bf16.mxu0 0
      %1355 = vmatpush1.bf16.msra.mxu0 0
      %1356 = vmatprep.subr.bf16.mxu0 0
      %1357 = vmatpush1.bf16.msra.mxu0 0
      %1358 = vmatprep.subr.bf16.mxu0 0
      %1359 = vmatpush1.bf16.msra.mxu0 0
      %1360 = vmatprep.mubr.bf16.mxu0 0
      %1361 = vmatmul.mubr.bf16.gmra.mrb[0].mxu0 %v1326
      %v1362 = vpop.f32.mrb[0].mxu0
      %v1363 = vadd.f32 0.0, %v1362
      %v1364 = vpop.f32.mrb[0].mxu0
      %v1365 = vpop.f32.mrb[0].mxu0
      %v1366 = vpop.f32.mrb[0].mxu0
      %1367 = vdwg.mxu0
      %v1368 = vadd.f32 %v1201, %v1363
      %v1369 = vld [vmem:[%s8] sm:$0x1]
      %v1371 = vlaneseq
      %v1372 = vshrl.u32 %v1371, 7
      %v1373 = vsub.s32 0, %v1372
      %v1374 = vrot.slane %v1369, %v1373
      %v1376 = vadd.f32 %v1368, %v1374
      %v1377 = vunpack.c.l.bf16 %v414
      %v1378 = vadd.f32 %v1376, %v1377
      %1379 = vadd.xlane.f32.xlu0 %v1378
      %v1380 = vpop.xlane.xlu0 %1379
      %v1381 = vrcp.pop 128.0
      %v1382 = vmul.f32 %v1380, %v1381
      %v1383 = vsub.f32 %v1378, %v1382
      %v1384 = vmul.f32 %v1383, %v1383
      %1385 = vadd.xlane.f32.xlu0 %v1384
      %v1386 = vpop.xlane.xlu0 %1385
      %v1387 = vmul.f32 %v1386, %v1381
      %v1388 = vadd.f32 %v1387, 1e-05
      %v1389 = vrsqrt.pop %v1388
      %v1390 = vmul.f32 %v1383, %v1389
      %v1391 = vld [vmem:[%s9] sm:$0x1]
      %v1393 = vlaneseq
      %v1394 = vshrl.u32 %v1393, 7
      %v1395 = vsub.s32 0, %v1394
      %v1396 = vrot.slane %v1391, %v1395
      %v1398 = vmul.f32 %v1390, %v1396
      %v1399 = vld [vmem:[%s10] sm:$0x1]
      %v1401 = vlaneseq
      %v1402 = vshrl.u32 %v1401, 7
      %v1403 = vsub.s32 0, %v1402
      %v1404 = vrot.slane %v1399, %v1403
      %v1406 = vadd.f32 %v1398, %v1404
      %v1407 = vpack.c.bf16 %v1406, %v1406
      %1408 = vst [vmem:[%s412] sm:$0xf] %v1407
      %p1409 = scmp.lt.s32.totalorder %s22, 1
      %s1410 = scalar_select %p1409, %s22, 1
      %s1411 = smul.addr %s1410, 4
      %s1412 = scalar_lea.vmem %s11, %s1411
      // Predicated region
      $region65: #{transformer_forward.11} parent=63 // pred_check
        %p1413 = pneg %p286
      $region66: #{transformer_forward.11} parent=63 // pred_check_branch
        %1415 = sbr.rel (%p1413) target = $region68
      $region67: #{transformer_forward.11} parent=63 // pred_region
        _
      $region68: #{transformer_forward.11} parent=63 // pred_fallthru
        _
    $region64: #{transformer_forward.11} parent=5 // pred_fallthru
      _
    %p1416 = scmp.le.s32.totalorder 2, %s17
    // Predicated region
    $region69: #{transformer_forward.11} parent=5 // pred_check
      %p1417 = pneg %p1416
    $region70: #{transformer_forward.11} parent=5 // pred_check_branch
      %1419 = sbr.rel (%p1417) target = $region72
    $region71: #{transformer_forward.11} parent=5 // pred_region
      %s1420 = ssub.s32 %s17, 2
      // Predicated region
      $region73: #{transformer_forward.11} parent=71 // pred_check
        %p1421 = pneg %p292
      $region74: #{transformer_forward.11} parent=71 // pred_check_branch
        %1423 = sbr.rel (%p1421) target = $region76
      $region75: #{transformer_forward.11} parent=71 // pred_region
        %p1424 = scmp.lt.s32.totalorder %s23, 1
        %s1425 = scalar_select %p1424, %s23, 1
        %s1426 = smul.addr %s1425, 4
        %s1427 = scalar_lea.vmem %s11, %s1426
      $region76: #{transformer_forward.11} parent=71 // pred_fallthru
        _
    $region72: #{transformer_forward.11} parent=5 // pred_fallthru
      _
  $region6: #{transformer_forward.11} parent=0 // loop_footer
    %s21 = sadd.s32 1, %s17
  $region7: #{transformer_forward.11} parent=0 // loop_footer_branch
    %16 = sbr.rel target = $region3
  $region8: #{transformer_forward.11} parent=0 // loop_exit
    _

// kernel: transformer_forward.15
$region0: #{transformer_forward.15}
  #allocation0 [shape = 'u32[]', space=smem, size = 0x4, offset = 0x4, fixed_abs, tag = 'smem constant byte address 0x4 - core index']
  #allocation1 [shape = 'u32[144,128]{1,0:T(1,128)}', space=vmem, size = 0x12000, scoped, tag = 'internal scratch']
  %s0 = inlined_call_operand.vmem [shape: bf16[2,8,128], index: 0, kind: input, shape index: {}, may-alias: {0,1}]
  %s1 = inlined_call_operand.vmem [shape: bf16[2,8,128], index: 1, kind: input, shape index: {}, may-alias: {0,1}]
  %s2 = inlined_call_operand.vmem [shape: f32[2,1,8], index: 2, kind: input, shape index: {}]
  %s3 = inlined_call_operand.vmem [shape: bf16[128,128], index: 3, kind: input, shape index: {}]
  %s4 = inlined_call_operand.vmem [shape: f32[1,128], index: 4, kind: input, shape index: {}]
  %s5 = inlined_call_operand.vmem [shape: bf16[128,256], index: 5, kind: input, shape index: {}]
  %s6 = inlined_call_operand.vmem [shape: f32[1,256], index: 6, kind: input, shape index: {}]
  %s7 = inlined_call_operand.vmem [shape: bf16[128,128], index: 7, kind: input, shape index: {}]
  %s8 = inlined_call_operand.vmem [shape: f32[1,128], index: 8, kind: input, shape index: {}]
  %s9 = inlined_call_operand.vmem [shape: f32[1,128], index: 9, kind: input, shape index: {}]
  %s10 = inlined_call_operand.vmem [shape: f32[1,128], index: 10, kind: input, shape index: {}]
  %s11 = inlined_call_operand.vmem [shape: bf16[2,8,128], index: 11, kind: output, shape index: {}]
  %s12 = sld [smem:[#allocation0]]
  $region77: #{transformer_forward.15} parent=0
    _
  %s14 = ssub.s32 1, %s12
  %s15 = scalar_select 0, %s14, %s12
  loop: start=0, step=1, limit=4
  $region2: #{transformer_forward.15} parent=0 // loop_pre_header
    _
  $region3: #{transformer_forward.15} parent=0 // loop_header
    %s17 = sphi 0, %s21
    %p18 = scmp.ge.s32.totalorder %s17, 4
    %s27 = sphi 0, %s29
    %s30 = sphi 0, %s27
    %s31 = sphi 0, %s30
    %s47 = sphi 0, %s31
    %s53 = sphi 0, %s55
    %s56 = sphi 0, %s53
    %s57 = sphi 0, %s56
    %s73 = sphi 0, %s57
    %s79 = sphi 0, %s81
    %s82 = sphi 0, %s79
    %s83 = sphi 0, %s82
    %s99 = sphi 0, %s83
    %s103 = sphi 0, %s103
    %s105 = sphi 0, %s103
    %s106 = sphi 0, %s105
    %s120 = sphi 0, %s106
    %s124 = sphi 0, %s124
    %s126 = sphi 0, %s124
    %s127 = sphi 0, %s126
    %s141 = sphi 0, %s127
    %s145 = sphi 0, %s145
    %s147 = sphi 0, %s145
    %s148 = sphi 0, %s147
    %s162 = sphi 0, %s148
    %s166 = sphi 0, %s166
    %s168 = sphi 0, %s166
    %s169 = sphi 0, %s168
    %s183 = sphi 0, %s169
    %s187 = sphi 0, %s187
    %s189 = sphi 0, %s187
    %s190 = sphi 0, %s189
    %s204 = sphi 0, %s190
    %s208 = sphi 0, %s208
    %s210 = sphi 0, %s208
    %s211 = sphi 0, %s210
    %s225 = sphi 0, %s211
    %s229 = sphi 0, %s229
    %s231 = sphi 0, %s229
    %s232 = sphi 0, %s231
    %s246 = sphi 0, %s232
    %s250 = sphi 0, %s250
    %s252 = sphi 0, %s250
    %s253 = sphi 0, %s252
    %s267 = sphi 0, %s253
    %s273 = sphi 0, %s275
    %s276 = sphi 0, %s273
    %s277 = sphi 0, %s276
    %s293 = sphi 0, %s277
  $region4: #{transformer_forward.15} parent=0 // loop_header_branch
    %20 = sbr.rel (%p18) target = $region8
  $region5: #{transformer_forward.15} parent=0 // loop_body
    %s22 = ssub.s32 %s17, 1
    %s23 = ssub.s32 %s17, 2
    %s24 = sadd.s32 %s17, 1
    %s25 = ssub.s32 %s17, %s24
    %p26 = scmp.eq.s32.totalorder %s25, 0
    %s28 = sadd.s32 %s27, 1
    %s29 = scalar_select %p26, %s27, %s28
    %p32 = pneg %p26
    %p33 = scmp.eq.s32.totalorder %s17, 1
    %p34 = por %p32, %p33
    %p35 = scmp.ne.s32.totalorder %s27, %s30
    %p36 = scmp.eq.s32.totalorder %s17, 0
    %p37 = por %p35, %p36
    %p38 = scmp.ne.s32.totalorder %s27, %s30
    %p39 = scmp.eq.s32.totalorder %s22, 1
    %p40 = por %p38, %p39
    %p41 = scmp.ne.s32.totalorder %s30, %s31
    %p42 = scmp.eq.s32.totalorder %s22, 0
    %p43 = por %p41, %p42
    %p44 = scmp.ne.s32.totalorder %s30, %s31
    %p45 = scmp.eq.s32.totalorder %s23, 1
    %p46 = por %p44, %p45
    %p48 = scmp.ne.s32.totalorder %s31, %s47
    %p49 = scmp.eq.s32.totalorder %s23, 0
    %p50 = por %p48, %p49
    %s51 = ssub.s32 %s17, %s24
    %p52 = scmp.eq.s32.totalorder %s51, 0
    %s54 = sadd.s32 %s53, 1
    %s55 = scalar_select %p52, %s53, %s54
    %p58 = pneg %p52
    %p59 = scmp.eq.s32.totalorder %s17, 1
    %p60 = por %p58, %p59
    %p61 = scmp.ne.s32.totalorder %s53, %s56
    %p62 = scmp.eq.s32.totalorder %s17, 0
    %p63 = por %p61, %p62
    %p64 = scmp.ne.s32.totalorder %s53, %s56
    %p65 = scmp.eq.s32.totalorder %s22, 1
    %p66 = por %p64, %p65
    %p67 = scmp.ne.s32.totalorder %s56, %s57
    %p68 = scmp.eq.s32.totalorder %s22, 0
    %p69 = por %p67, %p68
    %p70 = scmp.ne.s32.totalorder %s56, %s57
    %p71 = scmp.eq.s32.totalorder %s23, 1
    %p72 = por %p70, %p71
    %p74 = scmp.ne.s32.totalorder %s57, %s73
    %p75 = scmp.eq.s32.totalorder %s23, 0
    %p76 = por %p74, %p75
    %s77 = ssub.s32 %s17, %s24
    %p78 = scmp.eq.s32.totalorder %s77, 0
    %s80 = sadd.s32 %s79, 1
    %s81 = scalar_select %p78, %s79, %s80
    %p84 = pneg %p78
    %p85 = scmp.eq.s32.totalorder %s17, 1
    %p86 = por %p84, %p85
    %p87 = scmp.ne.s32.totalorder %s79, %s82
    %p88 = scmp.eq.s32.totalorder %s17, 0
    %p89 = por %p87, %p88
    %p90 = scmp.ne.s32.totalorder %s79, %s82
    %p91 = scmp.eq.s32.totalorder %s22, 1
    %p92 = por %p90, %p91
    %p93 = scmp.ne.s32.totalorder %s82, %s83
    %p94 = scmp.eq.s32.totalorder %s22, 0
    %p95 = por %p93, %p94
    %p96 = scmp.ne.s32.totalorder %s82, %s83
    %p97 = scmp.eq.s32.totalorder %s23, 1
    %p98 = por %p96, %p97
    %p100 = scmp.ne.s32.totalorder %s83, %s99
    %p101 = scmp.eq.s32.totalorder %s23, 0
    %p102 = por %p100, %p101
    %s104 = sadd.s32 %s103, 1
    %p107 = scmp.eq.s32.totalorder %s17, 1
    %p108 = scmp.ne.s32.totalorder %s103, %s105
    %p109 = scmp.eq.s32.totalorder %s17, 0
    %p110 = por %p108, %p109
    %p111 = scmp.ne.s32.totalorder %s103, %s105
    %p112 = scmp.eq.s32.totalorder %s22, 1
    %p113 = por %p111, %p112
    %p114 = scmp.ne.s32.totalorder %s105, %s106
    %p115 = scmp.eq.s32.totalorder %s22, 0
    %p116 = por %p114, %p115
    %p117 = scmp.ne.s32.totalorder %s105, %s106
    %p118 = scmp.eq.s32.totalorder %s23, 1
    %p119 = por %p117, %p118
    %p121 = scmp.ne.s32.totalorder %s106, %s120
    %p122 = scmp.eq.s32.totalorder %s23, 0
    %p123 = por %p121, %p122
    %s125 = sadd.s32 %s124, 1
    %p128 = scmp.eq.s32.totalorder %s17, 1
    %p129 = scmp.ne.s32.totalorder %s124, %s126
    %p130 = scmp.eq.s32.totalorder %s17, 0
    %p131 = por %p129, %p130
    %p132 = scmp.ne.s32.totalorder %s124, %s126
    %p133 = scmp.eq.s32.totalorder %s22, 1
    %p134 = por %p132, %p133
    %p135 = scmp.ne.s32.totalorder %s126, %s127
    %p136 = scmp.eq.s32.totalorder %s22, 0
    %p137 = por %p135, %p136
    %p138 = scmp.ne.s32.totalorder %s126, %s127
    %p139 = scmp.eq.s32.totalorder %s23, 1
    %p140 = por %p138, %p139
    %p142 = scmp.ne.s32.totalorder %s127, %s141
    %p143 = scmp.eq.s32.totalorder %s23, 0
    %p144 = por %p142, %p143
    %s146 = sadd.s32 %s145, 1
    %p149 = scmp.eq.s32.totalorder %s17, 1
    %p150 = scmp.ne.s32.totalorder %s145, %s147
    %p151 = scmp.eq.s32.totalorder %s17, 0
    %p152 = por %p150, %p151
    %p153 = scmp.ne.s32.totalorder %s145, %s147
    %p154 = scmp.eq.s32.totalorder %s22, 1
    %p155 = por %p153, %p154
    %p156 = scmp.ne.s32.totalorder %s147, %s148
    %p157 = scmp.eq.s32.totalorder %s22, 0
    %p158 = por %p156, %p157
    %p159 = scmp.ne.s32.totalorder %s147, %s148
    %p160 = scmp.eq.s32.totalorder %s23, 1
    %p161 = por %p159, %p160
    %p163 = scmp.ne.s32.totalorder %s148, %s162
    %p164 = scmp.eq.s32.totalorder %s23, 0
    %p165 = por %p163, %p164
    %s167 = sadd.s32 %s166, 1
    %p170 = scmp.eq.s32.totalorder %s17, 1
    %p171 = scmp.ne.s32.totalorder %s166, %s168
    %p172 = scmp.eq.s32.totalorder %s17, 0
    %p173 = por %p171, %p172
    %p174 = scmp.ne.s32.totalorder %s166, %s168
    %p175 = scmp.eq.s32.totalorder %s22, 1
    %p176 = por %p174, %p175
    %p177 = scmp.ne.s32.totalorder %s168, %s169
    %p178 = scmp.eq.s32.totalorder %s22, 0
    %p179 = por %p177, %p178
    %p180 = scmp.ne.s32.totalorder %s168, %s169
    %p181 = scmp.eq.s32.totalorder %s23, 1
    %p182 = por %p180, %p181
    %p184 = scmp.ne.s32.totalorder %s169, %s183
    %p185 = scmp.eq.s32.totalorder %s23, 0
    %p186 = por %p184, %p185
    %s188 = sadd.s32 %s187, 1
    %p191 = scmp.eq.s32.totalorder %s17, 1
    %p192 = scmp.ne.s32.totalorder %s187, %s189
    %p193 = scmp.eq.s32.totalorder %s17, 0
    %p194 = por %p192, %p193
    %p195 = scmp.ne.s32.totalorder %s187, %s189
    %p196 = scmp.eq.s32.totalorder %s22, 1
    %p197 = por %p195, %p196
    %p198 = scmp.ne.s32.totalorder %s189, %s190
    %p199 = scmp.eq.s32.totalorder %s22, 0
    %p200 = por %p198, %p199
    %p201 = scmp.ne.s32.totalorder %s189, %s190
    %p202 = scmp.eq.s32.totalorder %s23, 1
    %p203 = por %p201, %p202
    %p205 = scmp.ne.s32.totalorder %s190, %s204
    %p206 = scmp.eq.s32.totalorder %s23, 0
    %p207 = por %p205, %p206
    %s209 = sadd.s32 %s208, 1
    %p212 = scmp.eq.s32.totalorder %s17, 1
    %p213 = scmp.ne.s32.totalorder %s208, %s210
    %p214 = scmp.eq.s32.totalorder %s17, 0
    %p215 = por %p213, %p214
    %p216 = scmp.ne.s32.totalorder %s208, %s210
    %p217 = scmp.eq.s32.totalorder %s22, 1
    %p218 = por %p216, %p217
    %p219 = scmp.ne.s32.totalorder %s210, %s211
    %p220 = scmp.eq.s32.totalorder %s22, 0
    %p221 = por %p219, %p220
    %p222 = scmp.ne.s32.totalorder %s210, %s211
    %p223 = scmp.eq.s32.totalorder %s23, 1
    %p224 = por %p222, %p223
    %p226 = scmp.ne.s32.totalorder %s211, %s225
    %p227 = scmp.eq.s32.totalorder %s23, 0
    %p228 = por %p226, %p227
    %s230 = sadd.s32 %s229, 1
    %p233 = scmp.eq.s32.totalorder %s17, 1
    %p234 = scmp.ne.s32.totalorder %s229, %s231
    %p235 = scmp.eq.s32.totalorder %s17, 0
    %p236 = por %p234, %p235
    %p237 = scmp.ne.s32.totalorder %s229, %s231
    %p238 = scmp.eq.s32.totalorder %s22, 1
    %p239 = por %p237, %p238
    %p240 = scmp.ne.s32.totalorder %s231, %s232
    %p241 = scmp.eq.s32.totalorder %s22, 0
    %p242 = por %p240, %p241
    %p243 = scmp.ne.s32.totalorder %s231, %s232
    %p244 = scmp.eq.s32.totalorder %s23, 1
    %p245 = por %p243, %p244
    %p247 = scmp.ne.s32.totalorder %s232, %s246
    %p248 = scmp.eq.s32.totalorder %s23, 0
    %p249 = por %p247, %p248
    %s251 = sadd.s32 %s250, 1
    %p254 = scmp.eq.s32.totalorder %s17, 1
    %p255 = scmp.ne.s32.totalorder %s250, %s252
    %p256 = scmp.eq.s32.totalorder %s17, 0
    %p257 = por %p255, %p256
    %p258 = scmp.ne.s32.totalorder %s250, %s252
    %p259 = scmp.eq.s32.totalorder %s22, 1
    %p260 = por %p258, %p259
    %p261 = scmp.ne.s32.totalorder %s252, %s253
    %p262 = scmp.eq.s32.totalorder %s22, 0
    %p263 = por %p261, %p262
    %p264 = scmp.ne.s32.totalorder %s252, %s253
    %p265 = scmp.eq.s32.totalorder %s23, 1
    %p266 = por %p264, %p265
    %p268 = scmp.ne.s32.totalorder %s253, %s267
    %p269 = scmp.eq.s32.totalorder %s23, 0
    %p270 = por %p268, %p269
    %s271 = ssub.s32 %s17, %s24
    %p272 = scmp.eq.s32.totalorder %s271, 0
    %s274 = sadd.s32 %s273, 1
    %s275 = scalar_select %p272, %s273, %s274
    %p278 = pneg %p272
    %p279 = scmp.eq.s32.totalorder %s17, 1
    %p280 = por %p278, %p279
    %p281 = scmp.ne.s32.totalorder %s273, %s276
    %p282 = scmp.eq.s32.totalorder %s17, 0
    %p283 = por %p281, %p282
    %p284 = scmp.ne.s32.totalorder %s273, %s276
    %p285 = scmp.eq.s32.totalorder %s22, 1
    %p286 = por %p284, %p285
    %p287 = scmp.ne.s32.totalorder %s276, %s277
    %p288 = scmp.eq.s32.totalorder %s22, 0
    %p289 = por %p287, %p288
    %p290 = scmp.ne.s32.totalorder %s276, %s277
    %p291 = scmp.eq.s32.totalorder %s23, 1
    %p292 = por %p290, %p291
    %p294 = scmp.ne.s32.totalorder %s277, %s293
    %p295 = scmp.eq.s32.totalorder %s23, 0
    %p296 = por %p294, %p295
    %p297 = scmp.le.s32.totalorder 1, %s17
    %p298 = scmp.lt.s32.totalorder %s17, 3
    %p299 = pnand %p297, %p298
    %p300 = pneg %p299
    // Predicated region
    $region9: #{transformer_forward.15} parent=5 // pred_check
      _
    $region10: #{transformer_forward.15} parent=5 // pred_check_branch
      %302 = sbr.rel (%p299) target = $region12
    $region11: #{transformer_forward.15} parent=5 // pred_region
      %s303 = ssub.s32 %s17, 1
      // Predicated region
      $region13: #{transformer_forward.15} parent=11 // pred_check
        %p304 = pneg %p116
      $region14: #{transformer_forward.15} parent=11 // pred_check_branch
        %306 = sbr.rel (%p304) target = $region16
      $region15: #{transformer_forward.15} parent=11 // pred_region
        _
      $region16: #{transformer_forward.15} parent=11 // pred_fallthru
        _
      // Predicated region
      $region17: #{transformer_forward.15} parent=11 // pred_check
        %p307 = pneg %p137
      $region18: #{transformer_forward.15} parent=11 // pred_check_branch
        %309 = sbr.rel (%p307) target = $region20
      $region19: #{transformer_forward.15} parent=11 // pred_region
        _
      $region20: #{transformer_forward.15} parent=11 // pred_fallthru
        _
      // Predicated region
      $region21: #{transformer_forward.15} parent=11 // pred_check
        %p310 = pneg %p158
      $region22: #{transformer_forward.15} parent=11 // pred_check_branch
        %312 = sbr.rel (%p310) target = $region24
      $region23: #{transformer_forward.15} parent=11 // pred_region
        _
      $region24: #{transformer_forward.15} parent=11 // pred_fallthru
        _
      // Predicated region
      $region25: #{transformer_forward.15} parent=11 // pred_check
        %p313 = pneg %p179
      $region26: #{transformer_forward.15} parent=11 // pred_check_branch
        %315 = sbr.rel (%p313) target = $region28
      $region27: #{transformer_forward.15} parent=11 // pred_region
        _
      $region28: #{transformer_forward.15} parent=11 // pred_fallthru
        _
      // Predicated region
      $region29: #{transformer_forward.15} parent=11 // pred_check
        %p316 = pneg %p200
      $region30: #{transformer_forward.15} parent=11 // pred_check_branch
        %318 = sbr.rel (%p316) target = $region32
      $region31: #{transformer_forward.15} parent=11 // pred_region
        _
      $region32: #{transformer_forward.15} parent=11 // pred_fallthru
        _
      // Predicated region
      $region33: #{transformer_forward.15} parent=11 // pred_check
        %p319 = pneg %p221
      $region34: #{transformer_forward.15} parent=11 // pred_check_branch
        %321 = sbr.rel (%p319) target = $region36
      $region35: #{transformer_forward.15} parent=11 // pred_region
        _
      $region36: #{transformer_forward.15} parent=11 // pred_fallthru
        _
      // Predicated region
      $region37: #{transformer_forward.15} parent=11 // pred_check
        %p322 = pneg %p242
      $region38: #{transformer_forward.15} parent=11 // pred_check_branch
        %324 = sbr.rel (%p322) target = $region40
      $region39: #{transformer_forward.15} parent=11 // pred_region
        _
      $region40: #{transformer_forward.15} parent=11 // pred_fallthru
        _
      // Predicated region
      $region41: #{transformer_forward.15} parent=11 // pred_check
        %p325 = pneg %p263
      $region42: #{transformer_forward.15} parent=11 // pred_check_branch
        %327 = sbr.rel (%p325) target = $region44
      $region43: #{transformer_forward.15} parent=11 // pred_region
        _
      $region44: #{transformer_forward.15} parent=11 // pred_fallthru
        _
    $region12: #{transformer_forward.15} parent=5 // pred_fallthru
      _
    %p328 = scmp.lt.s32.totalorder %s17, 2
    // Predicated region
    $region45: #{transformer_forward.15} parent=5 // pred_check
      %p329 = pneg %p328
    $region46: #{transformer_forward.15} parent=5 // pred_check_branch
      %331 = sbr.rel (%p329) target = $region48
    $region47: #{transformer_forward.15} parent=5 // pred_region
      // Predicated region
      $region49: #{transformer_forward.15} parent=47 // pred_check
        %p332 = pneg %p37
      $region50: #{transformer_forward.15} parent=47 // pred_check_branch
        %334 = sbr.rel (%p332) target = $region52
      $region51: #{transformer_forward.15} parent=47 // pred_region
        %p335 = scmp.lt.s32.totalorder %s17, 1
        %s336 = scalar_select %p335, %s17, 1
        %s337 = smul.addr %s336, 4
        %s338 = scalar_lea.vmem %s0, %s337
      $region52: #{transformer_forward.15} parent=47 // pred_fallthru
        _
      // Predicated region
      $region53: #{transformer_forward.15} parent=47 // pred_check
        %p339 = pneg %p63
      $region54: #{transformer_forward.15} parent=47 // pred_check_branch
        %341 = sbr.rel (%p339) target = $region56
      $region55: #{transformer_forward.15} parent=47 // pred_region
        %p342 = scmp.lt.s32.totalorder %s17, 1
        %s343 = scalar_select %p342, %s17, 1
        %s344 = smul.addr %s343, 4
        %s345 = scalar_lea.vmem %s1, %s344
      $region56: #{transformer_forward.15} parent=47 // pred_fallthru
        _
      // Predicated region
      $region57: #{transformer_forward.15} parent=47 // pred_check
        %p346 = pneg %p89
      $region58: #{transformer_forward.15} parent=47 // pred_check_branch
        %348 = sbr.rel (%p346) target = $region60
      $region59: #{transformer_forward.15} parent=47 // pred_region
        %p349 = scmp.lt.s32.totalorder %s17, 1
        %s350 = scalar_select %p349, %s17, 1
        %s351 = scalar_lea.vmem %s2, %s350
      $region60: #{transformer_forward.15} parent=47 // pred_fallthru
        _
    $region48: #{transformer_forward.15} parent=5 // pred_fallthru
      _
    %p352 = scmp.le.s32.totalorder 1, %s17
    %p353 = scmp.lt.s32.totalorder %s17, 3
    %p354 = pnand %p352, %p353
    %p355 = pneg %p354
    // Predicated region
    $region61: #{transformer_forward.15} parent=5 // pred_check
      _
    $region62: #{transformer_forward.15} parent=5 // pred_check_branch
      %357 = sbr.rel (%p354) target = $region64
    $region63: #{transformer_forward.15} parent=5 // pred_region
      %s358 = ssub.s32 %s17, 1
      %p359 = scmp.lt.s32.totalorder %s22, 1
      %s360 = scalar_select %p359, %s22, 1
      %s361 = smul.addr %s360, 4
      %s362 = scalar_lea.vmem %s0, %s361
      %p363 = pneg %p43
      %p364 = pneg %p40
      %p365 = scmp.lt.s32.totalorder %s22, 1
      %s366 = scalar_select %p365, %s22, 1
      %s367 = smul.addr %s366, 4
      %s368 = scalar_lea.vmem %s1, %s367
      %p369 = pneg %p69
      %p370 = pneg %p66
      %p371 = scmp.lt.s32.totalorder %s22, 1
      %s372 = scalar_select %p371, %s22, 1
      %s373 = scalar_lea.vmem %s2, %s372
      %p374 = pneg %p95
      %p375 = pneg %p92
      %p376 = pneg %p116
      %p377 = pneg %p113
      %p378 = pneg %p137
      %p379 = pneg %p134
      %p380 = pneg %p158
      %p381 = pneg %p155
      %p382 = pneg %p179
      %p383 = pneg %p176
      %p384 = pneg %p200
      %p385 = pneg %p197
      %p386 = pneg %p221
      %p387 = pneg %p218
      %p388 = pneg %p242
      %p389 = pneg %p239
      %p390 = pneg %p263
      %p391 = pneg %p260
      %p392 = pneg %p289
      %p393 = pneg %p286
      %p394 = scmp.lt.s32.totalorder %s22, 1
      %s395 = scalar_select %p394, %s22, 1
      %s396 = smul.addr %s395, 4
      %s397 = scalar_lea.vmem %s11, %s396
      %p398 = scmp.lt.s32.totalorder %s22, 1
      %s399 = scalar_select %p398, %s22, 1
      %s400 = smul.addr %s399, 4
      %s401 = scalar_lea.vmem %s0, %s400
      %p402 = scmp.lt.s32.totalorder %s22, 1
      %s403 = scalar_select %p402, %s22, 1
      %s404 = smul.addr %s403, 4
      %s405 = scalar_lea.vmem %s1, %s404
      %p406 = scmp.lt.s32.totalorder %s22, 1
      %s407 = scalar_select %p406, %s22, 1
      %s408 = scalar_lea.vmem %s2, %s407
      %p409 = scmp.lt.s32.totalorder %s22, 1
      %s410 = scalar_select %p409, %s22, 1
      %s411 = smul.addr %s410, 4
      %s412 = scalar_lea.vmem %s11, %s411
      %v414 = vld [vmem:[%s401] sm:$0xf]
      %v415 = vld [vmem:[%s405] sm:$0xf]
      %v416 = vld [vmem:[%s3] sm:$0xf]
      %v417 = vld [vmem:[%s3 + $0x4] sm:$0xf]
      %v418 = vld [vmem:[%s3 + $0x8] sm:$0xf]
      %v419 = vld [vmem:[%s3 + $0xc] sm:$0xf]
      %v420 = vld [vmem:[%s3 + $0x10] sm:$0xf]
      %v421 = vld [vmem:[%s3 + $0x14] sm:$0xf]
      %v422 = vld [vmem:[%s3 + $0x18] sm:$0xf]
      %v423 = vld [vmem:[%s3 + $0x1c] sm:$0xf]
      %v424 = vld [vmem:[%s3 + $0x20] sm:$0xf]
      %v425 = vld [vmem:[%s3 + $0x24] sm:$0xf]
      %v426 = vld [vmem:[%s3 + $0x28] sm:$0xf]
      %v427 = vld [vmem:[%s3 + $0x2c] sm:$0xf]
      %v428 = vld [vmem:[%s3 + $0x30] sm:$0xf]
      %v429 = vld [vmem:[%s3 + $0x34] sm:$0xf]
      %v430 = vld [vmem:[%s3 + $0x38] sm:$0xf]
      %v431 = vld [vmem:[%s3 + $0x3c] sm:$0xf]
      %v432 = vld [vmem:[%s4] sm:$0x1]
      %v434 = vlaneseq
      %v435 = vshrl.u32 %v434, 7
      %v436 = vsub.s32 0, %v435
      %v437 = vrot.slane %v432, %v436
      %v455 = vunpack.c.l.b16 %v416
      %v456 = vunpack.c.l.b16 %v417
      %v457 = vunpack.c.l.b16 %v418
      %v458 = vunpack.c.l.b16 %v419
      %v459 = vunpack.c.l.b16 %v420
      %v460 = vunpack.c.l.b16 %v421
      %v461 = vunpack.c.l.b16 %v422
      %v462 = vunpack.c.l.b16 %v423
      %v463 = vunpack.c.l.b16 %v424
      %v464 = vunpack.c.l.b16 %v425
      %v465 = vunpack.c.l.b16 %v426
      %v466 = vunpack.c.l.b16 %v427
      %v467 = vunpack.c.l.b16 %v428
      %v468 = vunpack.c.l.b16 %v429
      %v469 = vunpack.c.l.b16 %v430
      %v470 = vunpack.c.l.b16 %v431
      %v471 = vpack.c.b16 %v456, %v455
      %v472 = vpack.c.b16 %v458, %v457
      %v473 = vpack.c.b16 %v460, %v459
      %v474 = vpack.c.b16 %v462, %v461
      %v475 = vpack.c.b16 %v464, %v463
      %v476 = vpack.c.b16 %v466, %v465
      %v477 = vpack.c.b16 %v468, %v467
      %v478 = vpack.c.b16 %v470, %v469
      %487 = vmatprep.subr.bf16.mxu0 0
      %488 = vmatpush1.bf16.msra.mxu0 %v471
      %489 = vmatprep.subr.bf16.mxu0 0
      %490 = vmatpush1.bf16.msra.mxu0 %v472
      %491 = vmatprep.subr.bf16.mxu0 0
      %492 = vmatpush1.bf16.msra.mxu0 %v473
      %493 = vmatprep.subr.bf16.mxu0 0
      %494 = vmatpush1.bf16.msra.mxu0 %v474
      %495 = vmatprep.subr.bf16.mxu0 0
      %496 = vmatpush1.bf16.msra.mxu0 %v475
      %497 = vmatprep.subr.bf16.mxu0 0
      %498 = vmatpush1.bf16.msra.mxu0 %v476
      %499 = vmatprep.subr.bf16.mxu0 0
      %500 = vmatpush1.bf16.msra.mxu0 %v477
      %501 = vmatprep.subr.bf16.mxu0 0
      %502 = vmatpush1.bf16.msra.mxu0 %v478
      %503 = vmatprep.subr.bf16.mxu0 0
      %504 = vmatpush1.bf16.msra.mxu0 0
      %505 = vmatprep.subr.bf16.mxu0 0
      %506 = vmatpush1.bf16.msra.mxu0 0
      %507 = vmatprep.subr.bf16.mxu0 0
      %508 = vmatpush1.bf16.msra.mxu0 0
      %509 = vmatprep.subr.bf16.mxu0 0
      %510 = vmatpush1.bf16.msra.mxu0 0
      %511 = vmatprep.subr.bf16.mxu0 0
      %512 = vmatpush1.bf16.msra.mxu0 0
      %513 = vmatprep.subr.bf16.mxu0 0
      %514 = vmatpush1.bf16.msra.mxu0 0
      %515 = vmatprep.subr.bf16.mxu0 0
      %516 = vmatpush1.bf16.msra.mxu0 0
      %517 = vmatprep.subr.bf16.mxu0 0
      %518 = vmatpush1.bf16.msra.mxu0 0
      %519 = vmatprep.mubr.bf16.mxu0 0
      %520 = vmatmul.mubr.bf16.gmra.mrb[0].mxu0 %v414
      %v521 = vpop.f32.mrb[0].mxu0
      %v522 = vadd.f32 %v437, %v521
      %v523 = vpop.f32.mrb[0].mxu0
      %v524 = vpop.f32.mrb[0].mxu0
      %v525 = vpop.f32.mrb[0].mxu0
      %526 = vdwg.mxu0
      %v527 = vmul.f32 %v522, 0.17677669
      %v528 = vld [vmem:[%s5] sm:$0xff]
      %v529 = vld [vmem:[%s5 + $0x8] sm:$0xff]
      %v530 = vld [vmem:[%s5 + $0x10] sm:$0xff]
      %v531 = vld [vmem:[%s5 + $0x18] sm:$0xff]
      %v532 = vld [vmem:[%s5 + $0x20] sm:$0xff]
      %v533 = vld [vmem:[%s5 + $0x28] sm:$0xff]
      %v534 = vld [vmem:[%s5 + $0x30] sm:$0xff]
      %v535 = vld [vmem:[%s5 + $0x38] sm:$0xff]
      %v536 = vld [vmem:[%s5 + $0x40] sm:$0xff]
      %v537 = vld [vmem:[%s5 + $0x48] sm:$0xff]
      %v538 = vld [vmem:[%s5 + $0x50] sm:$0xff]
      %v539 = vld [vmem:[%s5 + $0x58] sm:$0xff]
      %v540 = vld [vmem:[%s5 + $0x60] sm:$0xff]
      %v541 = vld [vmem:[%s5 + $0x68] sm:$0xff]
      %v542 = vld [vmem:[%s5 + $0x70] sm:$0xff]
      %v543 = vld [vmem:[%s5 + $0x78] sm:$0xff]
      %v544 = vld [vmem:[%s6] sm:$0x3]
      %v546 = vlaneseq
      %v547 = vshrl.u32 %v546, 7
      %v548 = vsub.s32 0, %v547
      %v549 = vrot.slane %v544, %v548
      %v550 = vlaneseq
      %v551 = vshrl.u32 %v550, 7
      %v552 = vsub.s32 1, %v551
      %v553 = vrot.slane %v544, %v552
      %v572 = vunpack.c.l.b16 %v528
      %v573 = vunpack.c.h.b16 %v528
      %v574 = vunpack.c.l.b16 %v529
      %v575 = vunpack.c.h.b16 %v529
      %v576 = vunpack.c.l.b16 %v530
      %v577 = vunpack.c.h.b16 %v530
      %v578 = vunpack.c.l.b16 %v531
      %v579 = vunpack.c.h.b16 %v531
      %v580 = vunpack.c.l.b16 %v532
      %v581 = vunpack.c.h.b16 %v532
      %v582 = vunpack.c.l.b16 %v533
      %v583 = vunpack.c.h.b16 %v533
      %v584 = vunpack.c.l.b16 %v534
      %v585 = vunpack.c.h.b16 %v534
      %v586 = vunpack.c.l.b16 %v535
      %v587 = vunpack.c.h.b16 %v535
      %v588 = vunpack.c.l.b16 %v536
      %v589 = vunpack.c.h.b16 %v536
      %v590 = vunpack.c.l.b16 %v537
      %v591 = vunpack.c.h.b16 %v537
      %v592 = vunpack.c.l.b16 %v538
      %v593 = vunpack.c.h.b16 %v538
      %v594 = vunpack.c.l.b16 %v539
      %v595 = vunpack.c.h.b16 %v539
      %v596 = vunpack.c.l.b16 %v540
      %v597 = vunpack.c.h.b16 %v540
      %v598 = vunpack.c.l.b16 %v541
      %v599 = vunpack.c.h.b16 %v541
      %v600 = vunpack.c.l.b16 %v542
      %v601 = vunpack.c.h.b16 %v542
      %v602 = vunpack.c.l.b16 %v543
      %v603 = vunpack.c.h.b16 %v543
      %v604 = vpack.c.b16 %v574, %v572
      %v605 = vpack.c.b16 %v575, %v573
      %v606 = vpack.c.b16 %v578, %v576
      %v607 = vpack.c.b16 %v579, %v577
      %v608 = vpack.c.b16 %v582, %v580
      %v609 = vpack.c.b16 %v583, %v581
      %v610 = vpack.c.b16 %v586, %v584
      %v611 = vpack.c.b16 %v587, %v585
      %v612 = vpack.c.b16 %v590, %v588
      %v613 = vpack.c.b16 %v591, %v589
      %v614 = vpack.c.b16 %v594, %v592
      %v615 = vpack.c.b16 %v595, %v593
      %v616 = vpack.c.b16 %v598, %v596
      %v617 = vpack.c.b16 %v599, %v597
      %v618 = vpack.c.b16 %v602, %v600
      %v619 = vpack.c.b16 %v603, %v601
      %636 = vmatprep.subr.bf16.mxu0 %v605
      %637 = vmatpush1.bf16.msra.mxu0 %v604
      %638 = vmatprep.subr.bf16.mxu0 %v607
      %639 = vmatpush1.bf16.msra.mxu0 %v606
      %640 = vmatprep.subr.bf16.mxu0 %v609
      %641 = vmatpush1.bf16.msra.mxu0 %v608
      %642 = vmatprep.subr.bf16.mxu0 %v611
      %643 = vmatpush1.bf16.msra.mxu0 %v610
      %644 = vmatprep.subr.bf16.mxu0 %v613
      %645 = vmatpush1.bf16.msra.mxu0 %v612
      %646 = vmatprep.subr.bf16.mxu0 %v615
      %647 = vmatpush1.bf16.msra.mxu0 %v614
      %648 = vmatprep.subr.bf16.mxu0 %v617
      %649 = vmatpush1.bf16.msra.mxu0 %v616
      %650 = vmatprep.subr.bf16.mxu0 %v619
      %651 = vmatpush1.bf16.msra.mxu0 %v618
      %652 = vmatprep.subr.bf16.mxu0 0
      %653 = vmatpush1.bf16.msra.mxu0 0
      %654 = vmatprep.subr.bf16.mxu0 0
      %655 = vmatpush1.bf16.msra.mxu0 0
      %656 = vmatprep.subr.bf16.mxu0 0
      %657 = vmatpush1.bf16.msra.mxu0 0
      %658 = vmatprep.subr.bf16.mxu0 0
      %659 = vmatpush1.bf16.msra.mxu0 0
      %660 = vmatprep.subr.bf16.mxu0 0
      %661 = vmatpush1.bf16.msra.mxu0 0
      %662 = vmatprep.subr.bf16.mxu0 0
      %663 = vmatpush1.bf16.msra.mxu0 0
      %664 = vmatprep.subr.bf16.mxu0 0
      %665 = vmatpush1.bf16.msra.mxu0 0
      %666 = vmatprep.subr.bf16.mxu0 0
      %667 = vmatpush1.bf16.msra.mxu0 0
      %668 = vmatprep.mubr.bf16.mxu0 0
      %669 = vmatmul.mubr.bf16.gmra.mrb[0].mxu0 %v415
      %v670 = vpop.f32.mrb[0].mxu0
      %v671 = vadd.f32 %v549, %v670
      %v672 = vpop.f32.mrb[0].mxu0
      %v673 = vadd.f32 %v553, %v672
      %v674 = vpop.f32.mrb[0].mxu0
      %v675 = vpop.f32.mrb[0].mxu0
      %676 = vdwg.mxu0
      %v677 = vld [vmem:[%s408] sm:$0x1]
      %v678 = vlaneseq
      %v679 = vshrl.u32 %v678, 7
      %v680 = vlaneseq
      %v681 = vand.u32 %v680, 127
      %vm682 = vcmp.gt.s32.totalorder %v681, %v679
      %v683 = vld [vmem:[%s7] sm:$0xf]
      %v684 = vld [vmem:[%s7 + $0x4] sm:$0xf]
      %v685 = vld [vmem:[%s7 + $0x8] sm:$0xf]
      %v686 = vld [vmem:[%s7 + $0xc] sm:$0xf]
      %v687 = vld [vmem:[%s7 + $0x10] sm:$0xf]
      %v688 = vld [vmem:[%s7 + $0x14] sm:$0xf]
      %v689 = vld [vmem:[%s7 + $0x18] sm:$0xf]
      %v690 = vld [vmem:[%s7 + $0x1c] sm:$0xf]
      %v691 = vld [vmem:[%s7 + $0x20] sm:$0xf]
      %v692 = vld [vmem:[%s7 + $0x24] sm:$0xf]
      %v693 = vld [vmem:[%s7 + $0x28] sm:$0xf]
      %v694 = vld [vmem:[%s7 + $0x2c] sm:$0xf]
      %v695 = vld [vmem:[%s7 + $0x30] sm:$0xf]
      %v696 = vld [vmem:[%s7 + $0x34] sm:$0xf]
      %v697 = vld [vmem:[%s7 + $0x38] sm:$0xf]
      %v698 = vld [vmem:[%s7 + $0x3c] sm:$0xf]
      %v699 = vpack.c.bf16 %v527, %v527
      %v700 = vpack.c.bf16 %v671, %v671
      %v701 = vpack.c.bf16 %v673, %v673
      %v703 = vlaneseq
      %v704 = vshrl.u32 %v703, 7
      %v705 = vsub.s32 0, %v704
      %v706 = vrot.slane %v677, %v705
      %vm708 = vcmask 261120
      %v710 = vsel %vm708, %v699, 0
      %v713 = vsel %vm708, %v700, 0
      %715 = vmatprep.subr.bf16.mxu0 0
      %716 = vmatpush1.bf16.xpose.msra.mxu0 %v713
      %717 = vmatprep.subr.bf16.mxu0 0
      %718 = vmatpush1.bf16.xpose.msra.mxu0 0
      %719 = vmatprep.subr.bf16.mxu0 0
      %720 = vmatpush1.bf16.xpose.msra.mxu0 0
      %721 = vmatprep.subr.bf16.mxu0 0
      %722 = vmatpush1.bf16.xpose.msra.mxu0 0
      %723 = vmatprep.subr.bf16.mxu0 0
      %724 = vmatpush1.bf16.xpose.msra.mxu0 0
      %725 = vmatprep.subr.bf16.mxu0 0
      %726 = vmatpush1.bf16.xpose.msra.mxu0 0
      %727 = vmatprep.subr.bf16.mxu0 0
      %728 = vmatpush1.bf16.xpose.msra.mxu0 0
      %729 = vmatprep.subr.bf16.mxu0 0
      %730 = vmatpush1.bf16.xpose.msra.mxu0 0
      %731 = vmatprep.subr.bf16.mxu0 0
      %732 = vmatpush1.bf16.xpose.msra.mxu0 0
      %733 = vmatprep.subr.bf16.mxu0 0
      %734 = vmatpush1.bf16.xpose.msra.mxu0 0
      %735 = vmatprep.subr.bf16.mxu0 0
      %736 = vmatpush1.bf16.xpose.msra.mxu0 0
      %737 = vmatprep.subr.bf16.mxu0 0
      %738 = vmatpush1.bf16.xpose.msra.mxu0 0
      %739 = vmatprep.subr.bf16.mxu0 0
      %740 = vmatpush1.bf16.xpose.msra.mxu0 0
      %741 = vmatprep.subr.bf16.mxu0 0
      %742 = vmatpush1.bf16.xpose.msra.mxu0 0
      %743 = vmatprep.subr.bf16.mxu0 0
      %744 = vmatpush1.bf16.xpose.msra.mxu0 0
      %745 = vmatprep.subr.bf16.mxu0 0
      %746 = vmatpush1.bf16.xpose.msra.mxu0 0
      %747 = vmatprep.mubr.bf16.mxu0 0
      %748 = vmatmul.mubr.bf16.gmra.mrb[0].mxu0 %v710
      %v749 = vpop.f32.mrb[0].mxu0
      %v750 = vadd.f32 %v706, %v749
      %v751 = vpop.f32.mrb[0].mxu0
      %v752 = vpop.f32.mrb[0].mxu0
      %v753 = vpop.f32.mrb[0].mxu0
      %754 = vdwg.mxu0
      %v755 = vsel %vm682, -1e+09, %v750
      %vm756 = vcmask 64512
      %v757 = vsel %vm756, %v755, -inf
      %758 = vmax.xlane.f32.xlu0 %v757
      %v759 = vpop.xlane.xlu0 %758
      %v760 = vsub.f32 %v755, %v759
      %v761 = vmul.f32 %v760, 1.442695
      %v762 = vpow.pop %v761
      %v763 = vsel %vm756, %v762, 0.0
      %764 = vadd.xlane.f32.xlu0 %v763
      %v765 = vpop.xlane.xlu0 %764
      %v766 = vrcp.pop %v765
      %v767 = vmul.f32 %v762, %v766
      %v768 = vpack.c.bf16 %v767, %v767
      %v770 = vsel %vm756, %v768, 0
      %vm772 = vcmask 1043456
      %v774 = vsel %vm772, %v701, 0
      %776 = vmatprep.subr.bf16.mxu0 0
      %777 = vmatpush1.bf16.msra.mxu0 %v774
      %778 = vmatprep.subr.bf16.mxu0 0
      %779 = vmatpush1.bf16.msra.mxu0 0
      %780 = vmatprep.subr.bf16.mxu0 0
      %781 = vmatpush1.bf16.msra.mxu0 0
      %782 = vmatprep.subr.bf16.mxu0 0
      %783 = vmatpush1.bf16.msra.mxu0 0
      %784 = vmatprep.subr.bf16.mxu0 0
      %785 = vmatpush1.bf16.msra.mxu0 0
      %786 = vmatprep.subr.bf16.mxu0 0
      %787 = vmatpush1.bf16.msra.mxu0 0
      %788 = vmatprep.subr.bf16.mxu0 0
      %789 = vmatpush1.bf16.msra.mxu0 0
      %790 = vmatprep.subr.bf16.mxu0 0
      %791 = vmatpush1.bf16.msra.mxu0 0
      %792 = vmatprep.subr.bf16.mxu0 0
      %793 = vmatpush1.bf16.msra.mxu0 0
      %794 = vmatprep.subr.bf16.mxu0 0
      %795 = vmatpush1.bf16.msra.mxu0 0
      %796 = vmatprep.subr.bf16.mxu0 0
      %797 = vmatpush1.bf16.msra.mxu0 0
      %798 = vmatprep.subr.bf16.mxu0 0
      %799 = vmatpush1.bf16.msra.mxu0 0
      %800 = vmatprep.subr.bf16.mxu0 0
      %801 = vmatpush1.bf16.msra.mxu0 0
      %802 = vmatprep.subr.bf16.mxu0 0
      %803 = vmatpush1.bf16.msra.mxu0 0
      %804 = vmatprep.subr.bf16.mxu0 0
      %805 = vmatpush1.bf16.msra.mxu0 0
      %806 = vmatprep.subr.bf16.mxu0 0
      %807 = vmatpush1.bf16.msra.mxu0 0
      %808 = vmatprep.mubr.bf16.mxu0 0
      %809 = vmatmul.mubr.bf16.gmra.mrb[0].mxu0 %v770
      %v810 = vpop.f32.mrb[0].mxu0
      %v811 = vadd.f32 0.0, %v810
      %v812 = vpop.f32.mrb[0].mxu0
      %v813 = vpop.f32.mrb[0].mxu0
      %v814 = vpop.f32.mrb[0].mxu0
      %815 = vdwg.mxu0
      %v816 = vpack.c.bf16 %v811, %v811
      %818 = vrot.lane.b32.xlu0 %v699, 96
      %v819 = vpop.permute.xlu0 %818
      %821 = vrot.lane.b32.xlu0 %v700, 96
      %v822 = vpop.permute.xlu0 %821
      %v824 = vsel %vm708, %v819, 0
      %v827 = vsel %vm708, %v822, 0
      %829 = vmatprep.subr.bf16.mxu0 0
      %830 = vmatpush1.bf16.xpose.msra.mxu0 %v827
      %831 = vmatprep.subr.bf16.mxu0 0
      %832 = vmatpush1.bf16.xpose.msra.mxu0 0
      %833 = vmatprep.subr.bf16.mxu0 0
      %834 = vmatpush1.bf16.xpose.msra.mxu0 0
      %835 = vmatprep.subr.bf16.mxu0 0
      %836 = vmatpush1.bf16.xpose.msra.mxu0 0
      %837 = vmatprep.subr.bf16.mxu0 0
      %838 = vmatpush1.bf16.xpose.msra.mxu0 0
      %839 = vmatprep.subr.bf16.mxu0 0
      %840 = vmatpush1.bf16.xpose.msra.mxu0 0
      %841 = vmatprep.subr.bf16.mxu0 0
      %842 = vmatpush1.bf16.xpose.msra.mxu0 0
      %843 = vmatprep.subr.bf16.mxu0 0
      %844 = vmatpush1.bf16.xpose.msra.mxu0 0
      %845 = vmatprep.subr.bf16.mxu0 0
      %846 = vmatpush1.bf16.xpose.msra.mxu0 0
      %847 = vmatprep.subr.bf16.mxu0 0
      %848 = vmatpush1.bf16.xpose.msra.mxu0 0
      %849 = vmatprep.subr.bf16.mxu0 0
      %850 = vmatpush1.bf16.xpose.msra.mxu0 0
      %851 = vmatprep.subr.bf16.mxu0 0
      %852 = vmatpush1.bf16.xpose.msra.mxu0 0
      %853 = vmatprep.subr.bf16.mxu0 0
      %854 = vmatpush1.bf16.xpose.msra.mxu0 0
      %855 = vmatprep.subr.bf16.mxu0 0
      %856 = vmatpush1.bf16.xpose.msra.mxu0 0
      %857 = vmatprep.subr.bf16.mxu0 0
      %858 = vmatpush1.bf16.xpose.msra.mxu0 0
      %859 = vmatprep.subr.bf16.mxu0 0
      %860 = vmatpush1.bf16.xpose.msra.mxu0 0
      %861 = vmatprep.mubr.bf16.mxu0 0
      %862 = vmatmul.mubr.bf16.gmra.mrb[0].mxu0 %v824
      %v863 = vpop.f32.mrb[0].mxu0
      %v864 = vadd.f32 %v706, %v863
      %v865 = vpop.f32.mrb[0].mxu0
      %v866 = vpop.f32.mrb[0].mxu0
      %v867 = vpop.f32.mrb[0].mxu0
      %868 = vdwg.mxu0
      %v869 = vsel %vm682, -1e+09, %v864
      %v870 = vsel %vm756, %v869, -inf
      %871 = vmax.xlane.f32.xlu0 %v870
      %v872 = vpop.xlane.xlu0 %871
      %v873 = vsub.f32 %v869, %v872
      %v874 = vmul.f32 %v873, 1.442695
      %v875 = vpow.pop %v874
      %v876 = vsel %vm756, %v875, 0.0
      %877 = vadd.xlane.f32.xlu0 %v876
      %v878 = vpop.xlane.xlu0 %877
      %v879 = vrcp.pop %v878
      %v880 = vmul.f32 %v875, %v879
      %v881 = vpack.c.bf16 %v880, %v880
      %883 = vrot.lane.b32.xlu0 %v701, 96
      %v884 = vpop.permute.xlu0 %883
      %v886 = vsel %vm756, %v881, 0
      %v889 = vsel %vm772, %v884, 0
      %891 = vmatprep.subr.bf16.mxu0 0
      %892 = vmatpush1.bf16.msra.mxu0 %v889
      %893 = vmatprep.subr.bf16.mxu0 0
      %894 = vmatpush1.bf16.msra.mxu0 0
      %895 = vmatprep.subr.bf16.mxu0 0
      %896 = vmatpush1.bf16.msra.mxu0 0
      %897 = vmatprep.subr.bf16.mxu0 0
      %898 = vmatpush1.bf16.msra.mxu0 0
      %899 = vmatprep.subr.bf16.mxu0 0
      %900 = vmatpush1.bf16.msra.mxu0 0
      %901 = vmatprep.subr.bf16.mxu0 0
      %902 = vmatpush1.bf16.msra.mxu0 0
      %903 = vmatprep.subr.bf16.mxu0 0
      %904 = vmatpush1.bf16.msra.mxu0 0
      %905 = vmatprep.subr.bf16.mxu0 0
      %906 = vmatpush1.bf16.msra.mxu0 0
      %907 = vmatprep.subr.bf16.mxu0 0
      %908 = vmatpush1.bf16.msra.mxu0 0
      %909 = vmatprep.subr.bf16.mxu0 0
      %910 = vmatpush1.bf16.msra.mxu0 0
      %911 = vmatprep.subr.bf16.mxu0 0
      %912 = vmatpush1.bf16.msra.mxu0 0
      %913 = vmatprep.subr.bf16.mxu0 0
      %914 = vmatpush1.bf16.msra.mxu0 0
      %915 = vmatprep.subr.bf16.mxu0 0
      %916 = vmatpush1.bf16.msra.mxu0 0
      %917 = vmatprep.subr.bf16.mxu0 0
      %918 = vmatpush1.bf16.msra.mxu0 0
      %919 = vmatprep.subr.bf16.mxu0 0
      %920 = vmatpush1.bf16.msra.mxu0 0
      %921 = vmatprep.subr.bf16.mxu0 0
      %922 = vmatpush1.bf16.msra.mxu0 0
      %923 = vmatprep.mubr.bf16.mxu0 0
      %924 = vmatmul.mubr.bf16.gmra.mrb[0].mxu0 %v886
      %v925 = vpop.f32.mrb[0].mxu0
      %v926 = vadd.f32 0.0, %v925
      %v927 = vpop.f32.mrb[0].mxu0
      %v928 = vpop.f32.mrb[0].mxu0
      %v929 = vpop.f32.mrb[0].mxu0
      %930 = vdwg.mxu0
      %v931 = vpack.c.bf16 %v926, %v926
      %v936 = vunpack.c.l.b16 %v687
      %v937 = vunpack.c.l.b16 %v688
      %v938 = vunpack.c.l.b16 %v689
      %v939 = vunpack.c.l.b16 %v690
      %v940 = vpack.c.b16 %v937, %v936
      %v941 = vpack.c.b16 %v939, %v938
      %v945 = vsel %vm708, %v931, 0
      %947 = vmatprep.subr.bf16.mxu0 0
      %948 = vmatpush1.bf16.msra.mxu0 %v940
      %949 = vmatprep.subr.bf16.mxu0 0
      %950 = vmatpush1.bf16.msra.mxu0 %v941
      %951 = vmatprep.subr.bf16.mxu0 0
      %952 = vmatpush1.bf16.msra.mxu0 0
      %953 = vmatprep.subr.bf16.mxu0 0
      %954 = vmatpush1.bf16.msra.mxu0 0
      %955 = vmatprep.subr.bf16.mxu0 0
      %956 = vmatpush1.bf16.msra.mxu0 0
      %957 = vmatprep.subr.bf16.mxu0 0
      %958 = vmatpush1.bf16.msra.mxu0 0
      %959 = vmatprep.subr.bf16.mxu0 0
      %960 = vmatpush1.bf16.msra.mxu0 0
      %961 = vmatprep.subr.bf16.mxu0 0
      %962 = vmatpush1.bf16.msra.mxu0 0
      %963 = vmatprep.subr.bf16.mxu0 0
      %964 = vmatpush1.bf16.msra.mxu0 0
      %965 = vmatprep.subr.bf16.mxu0 0
      %966 = vmatpush1.bf16.msra.mxu0 0
      %967 = vmatprep.subr.bf16.mxu0 0
      %968 = vmatpush1.bf16.msra.mxu0 0
      %969 = vmatprep.subr.bf16.mxu0 0
      %970 = vmatpush1.bf16.msra.mxu0 0
      %971 = vmatprep.subr.bf16.mxu0 0
      %972 = vmatpush1.bf16.msra.mxu0 0
      %973 = vmatprep.subr.bf16.mxu0 0
      %974 = vmatpush1.bf16.msra.mxu0 0
      %975 = vmatprep.subr.bf16.mxu0 0
      %976 = vmatpush1.bf16.msra.mxu0 0
      %977 = vmatprep.subr.bf16.mxu0 0
      %978 = vmatpush1.bf16.msra.mxu0 0
      %979 = vmatprep.mubr.bf16.mxu0 0
      %980 = vmatmul.mubr.bf16.gmra.mrb[0].mxu0 %v945
      %v981 = vpop.f32.mrb[0].mxu0
      %v982 = vadd.f32 0.0, %v981
      %v983 = vpop.f32.mrb[0].mxu0
      %v984 = vpop.f32.mrb[0].mxu0
      %v985 = vpop.f32.mrb[0].mxu0
      %986 = vdwg.mxu0
      %v991 = vunpack.c.l.b16 %v683
      %v992 = vunpack.c.l.b16 %v684
      %v993 = vunpack.c.l.b16 %v685
      %v994 = vunpack.c.l.b16 %v686
      %v995 = vpack.c.b16 %v992, %v991
      %v996 = vpack.c.b16 %v994, %v993
      %v1000 = vsel %vm708, %v816, 0
      %1002 = vmatprep.subr.bf16.mxu0 0
      %1003 = vmatpush1.bf16.msra.mxu0 %v995
      %1004 = vmatprep.subr.bf16.mxu0 0
      %1005 = vmatpush1.bf16.msra.mxu0 %v996
      %1006 = vmatprep.subr.bf16.mxu0 0
      %1007 = vmatpush1.bf16.msra.mxu0 0
      %1008 = vmatprep.subr.bf16.mxu0 0
      %1009 = vmatpush1.bf16.msra.mxu0 0
      %1010 = vmatprep.subr.bf16.mxu0 0
      %1011 = vmatpush1.bf16.msra.mxu0 0
      %1012 = vmatprep.subr.bf16.mxu0 0
      %1013 = vmatpush1.bf16.msra.mxu0 0
      %1014 = vmatprep.subr.bf16.mxu0 0
      %1015 = vmatpush1.bf16.msra.mxu0 0
      %1016 = vmatprep.subr.bf16.mxu0 0
      %1017 = vmatpush1.bf16.msra.mxu0 0
      %1018 = vmatprep.subr.bf16.mxu0 0
      %1019 = vmatpush1.bf16.msra.mxu0 0
      %1020 = vmatprep.subr.bf16.mxu0 0
      %1021 = vmatpush1.bf16.msra.mxu0 0
      %1022 = vmatprep.subr.bf16.mxu0 0
      %1023 = vmatpush1.bf16.msra.mxu0 0
      %1024 = vmatprep.subr.bf16.mxu0 0
      %1025 = vmatpush1.bf16.msra.mxu0 0
      %1026 = vmatprep.subr.bf16.mxu0 0
      %1027 = vmatpush1.bf16.msra.mxu0 0
      %1028 = vmatprep.subr.bf16.mxu0 0
      %1029 = vmatpush1.bf16.msra.mxu0 0
      %1030 = vmatprep.subr.bf16.mxu0 0
      %1031 = vmatpush1.bf16.msra.mxu0 0
      %1032 = vmatprep.subr.bf16.mxu0 0
      %1033 = vmatpush1.bf16.msra.mxu0 0
      %1034 = vmatprep.mubr.bf16.mxu0 0
      %1035 = vmatmul.mubr.bf16.gmra.mrb[0].mxu0 %v1000
      %v1036 = vpop.f32.mrb[0].mxu0
      %v1037 = vadd.f32 %v982, %v1036
      %v1038 = vpop.f32.mrb[0].mxu0
      %v1039 = vpop.f32.mrb[0].mxu0
      %v1040 = vpop.f32.mrb[0].mxu0
      %1041 = vdwg.mxu0
      %1042 = vrot.lane.b32.xlu0 %v699, 64
      %v1043 = vpop.permute.xlu0 %1042
      %1044 = vrot.lane.b32.xlu0 %v700, 64
      %v1045 = vpop.permute.xlu0 %1044
      %v1047 = vsel %vm708, %v1043, 0
      %v1050 = vsel %vm708, %v1045, 0
      %1052 = vmatprep.subr.bf16.mxu0 0
      %1053 = vmatpush1.bf16.xpose.msra.mxu0 %v1050
      %1054 = vmatprep.subr.bf16.mxu0 0
      %1055 = vmatpush1.bf16.xpose.msra.mxu0 0
      %1056 = vmatprep.subr.bf16.mxu0 0
      %1057 = vmatpush1.bf16.xpose.msra.mxu0 0
      %1058 = vmatprep.subr.bf16.mxu0 0
      %1059 = vmatpush1.bf16.xpose.msra.mxu0 0
      %1060 = vmatprep.subr.bf16.mxu0 0
      %1061 = vmatpush1.bf16.xpose.msra.mxu0 0
      %1062 = vmatprep.subr.bf16.mxu0 0
      %1063 = vmatpush1.bf16.xpose.msra.mxu0 0
      %1064 = vmatprep.subr.bf16.mxu0 0
      %1065 = vmatpush1.bf16.xpose.msra.mxu0 0
      %1066 = vmatprep.subr.bf16.mxu0 0
      %1067 = vmatpush1.bf16.xpose.msra.mxu0 0
      %1068 = vmatprep.subr.bf16.mxu0 0
      %1069 = vmatpush1.bf16.xpose.msra.mxu0 0
      %1070 = vmatprep.subr.bf16.mxu0 0
      %1071 = vmatpush1.bf16.xpose.msra.mxu0 0
      %1072 = vmatprep.subr.bf16.mxu0 0
      %1073 = vmatpush1.bf16.xpose.msra.mxu0 0
      %1074 = vmatprep.subr.bf16.mxu0 0
      %1075 = vmatpush1.bf16.xpose.msra.mxu0 0
      %1076 = vmatprep.subr.bf16.mxu0 0
      %1077 = vmatpush1.bf16.xpose.msra.mxu0 0
      %1078 = vmatprep.subr.bf16.mxu0 0
      %1079 = vmatpush1.bf16.xpose.msra.mxu0 0
      %1080 = vmatprep.subr.bf16.mxu0 0
      %1081 = vmatpush1.bf16.xpose.msra.mxu0 0
      %1082 = vmatprep.subr.bf16.mxu0 0
      %1083 = vmatpush1.bf16.xpose.msra.mxu0 0
      %1084 = vmatprep.mubr.bf16.mxu0 0
      %1085 = vmatmul.mubr.bf16.gmra.mrb[0].mxu0 %v1047
      %v1086 = vpop.f32.mrb[0].mxu0
      %v1087 = vadd.f32 %v706, %v1086
      %v1088 = vpop.f32.mrb[0].mxu0
      %v1089 = vpop.f32.mrb[0].mxu0
      %v1090 = vpop.f32.mrb[0].mxu0
      %1091 = vdwg.mxu0
      %v1092 = vsel %vm682, -1e+09, %v1087
      %v1093 = vsel %vm756, %v1092, -inf
      %1094 = vmax.xlane.f32.xlu0 %v1093
      %v1095 = vpop.xlane.xlu0 %1094
      %v1096 = vsub.f32 %v1092, %v1095
      %v1097 = vmul.f32 %v1096, 1.442695
      %v1098 = vpow.pop %v1097
      %v1099 = vsel %vm756, %v1098, 0.0
      %1100 = vadd.xlane.f32.xlu0 %v1099
      %v1101 = vpop.xlane.xlu0 %1100
      %v1102 = vrcp.pop %v1101
      %v1103 = vmul.f32 %v1098, %v1102
      %v1104 = vpack.c.bf16 %v1103, %v1103
      %1105 = vrot.lane.b32.xlu0 %v701, 64
      %v1106 = vpop.permute.xlu0 %1105
      %v1108 = vsel %vm756, %v1104, 0
      %v1111 = vsel %vm772, %v1106, 0
      %1113 = vmatprep.subr.bf16.mxu0 0
      %1114 = vmatpush1.bf16.msra.mxu0 %v1111
      %1115 = vmatprep.subr.bf16.mxu0 0
      %1116 = vmatpush1.bf16.msra.mxu0 0
      %1117 = vmatprep.subr.bf16.mxu0 0
      %1118 = vmatpush1.bf16.msra.mxu0 0
      %1119 = vmatprep.subr.bf16.mxu0 0
      %1120 = vmatpush1.bf16.msra.mxu0 0
      %1121 = vmatprep.subr.bf16.mxu0 0
      %1122 = vmatpush1.bf16.msra.mxu0 0
      %1123 = vmatprep.subr.bf16.mxu0 0
      %1124 = vmatpush1.bf16.msra.mxu0 0
      %1125 = vmatprep.subr.bf16.mxu0 0
      %1126 = vmatpush1.bf16.msra.mxu0 0
      %1127 = vmatprep.subr.bf16.mxu0 0
      %1128 = vmatpush1.bf16.msra.mxu0 0
      %1129 = vmatprep.subr.bf16.mxu0 0
      %1130 = vmatpush1.bf16.msra.mxu0 0
      %1131 = vmatprep.subr.bf16.mxu0 0
      %1132 = vmatpush1.bf16.msra.mxu0 0
      %1133 = vmatprep.subr.bf16.mxu0 0
      %1134 = vmatpush1.bf16.msra.mxu0 0
      %1135 = vmatprep.subr.bf16.mxu0 0
      %1136 = vmatpush1.bf16.msra.mxu0 0
      %1137 = vmatprep.subr.bf16.mxu0 0
      %1138 = vmatpush1.bf16.msra.mxu0 0
      %1139 = vmatprep.subr.bf16.mxu0 0
      %1140 = vmatpush1.bf16.msra.mxu0 0
      %1141 = vmatprep.subr.bf16.mxu0 0
      %1142 = vmatpush1.bf16.msra.mxu0 0
      %1143 = vmatprep.subr.bf16.mxu0 0
      %1144 = vmatpush1.bf16.msra.mxu0 0
      %1145 = vmatprep.mubr.bf16.mxu0 0
      %1146 = vmatmul.mubr.bf16.gmra.mrb[0].mxu0 %v1108
      %v1147 = vpop.f32.mrb[0].mxu0
      %v1148 = vadd.f32 0.0, %v1147
      %v1149 = vpop.f32.mrb[0].mxu0
      %v1150 = vpop.f32.mrb[0].mxu0
      %v1151 = vpop.f32.mrb[0].mxu0
      %1152 = vdwg.mxu0
      %v1153 = vpack.c.bf16 %v1148, %v1148
      %v1158 = vunpack.c.l.b16 %v691
      %v1159 = vunpack.c.l.b16 %v692
      %v1160 = vunpack.c.l.b16 %v693
      %v1161 = vunpack.c.l.b16 %v694
      %v1162 = vpack.c.b16 %v1159, %v1158
      %v1163 = vpack.c.b16 %v1161, %v1160
      %v1167 = vsel %vm708, %v1153, 0
      %1169 = vmatprep.subr.bf16.mxu0 0
      %1170 = vmatpush1.bf16.msra.mxu0 %v1162
      %1171 = vmatprep.subr.bf16.mxu0 0
      %1172 = vmatpush1.bf16.msra.mxu0 %v1163
      %1173 = vmatprep.subr.bf16.mxu0 0
      %1174 = vmatpush1.bf16.msra.mxu0 0
      %1175 = vmatprep.subr.bf16.mxu0 0
      %1176 = vmatpush1.bf16.msra.mxu0 0
      %1177 = vmatprep.subr.bf16.mxu0 0
      %1178 = vmatpush1.bf16.msra.mxu0 0
      %1179 = vmatprep.subr.bf16.mxu0 0
      %1180 = vmatpush1.bf16.msra.mxu0 0
      %1181 = vmatprep.subr.bf16.mxu0 0
      %1182 = vmatpush1.bf16.msra.mxu0 0
      %1183 = vmatprep.subr.bf16.mxu0 0
      %1184 = vmatpush1.bf16.msra.mxu0 0
      %1185 = vmatprep.subr.bf16.mxu0 0
      %1186 = vmatpush1.bf16.msra.mxu0 0
      %1187 = vmatprep.subr.bf16.mxu0 0
      %1188 = vmatpush1.bf16.msra.mxu0 0
      %1189 = vmatprep.subr.bf16.mxu0 0
      %1190 = vmatpush1.bf16.msra.mxu0 0
      %1191 = vmatprep.subr.bf16.mxu0 0
      %1192 = vmatpush1.bf16.msra.mxu0 0
      %1193 = vmatprep.subr.bf16.mxu0 0
      %1194 = vmatpush1.bf16.msra.mxu0 0
      %1195 = vmatprep.subr.bf16.mxu0 0
      %1196 = vmatpush1.bf16.msra.mxu0 0
      %1197 = vmatprep.subr.bf16.mxu0 0
      %1198 = vmatpush1.bf16.msra.mxu0 0
      %1199 = vmatprep.subr.bf16.mxu0 0
      %1200 = vmatpush1.bf16.msra.mxu0 0
      %1201 = vmatprep.mubr.bf16.mxu0 0
      %1202 = vmatmul.mubr.bf16.gmra.mrb[0].mxu0 %v1167
      %v1203 = vpop.f32.mrb[0].mxu0
      %v1204 = vadd.f32 0.0, %v1203
      %v1205 = vpop.f32.mrb[0].mxu0
      %v1206 = vpop.f32.mrb[0].mxu0
      %v1207 = vpop.f32.mrb[0].mxu0
      %1208 = vdwg.mxu0
      %v1209 = vadd.f32 %v1037, %v1204
      %1210 = vrot.lane.b32.xlu0 %v699, 32
      %v1211 = vpop.permute.xlu0 %1210
      %1212 = vrot.lane.b32.xlu0 %v700, 32
      %v1213 = vpop.permute.xlu0 %1212
      %v1215 = vsel %vm708, %v1211, 0
      %v1218 = vsel %vm708, %v1213, 0
      %1220 = vmatprep.subr.bf16.mxu0 0
      %1221 = vmatpush1.bf16.xpose.msra.mxu0 %v1218
      %1222 = vmatprep.subr.bf16.mxu0 0
      %1223 = vmatpush1.bf16.xpose.msra.mxu0 0
      %1224 = vmatprep.subr.bf16.mxu0 0
      %1225 = vmatpush1.bf16.xpose.msra.mxu0 0
      %1226 = vmatprep.subr.bf16.mxu0 0
      %1227 = vmatpush1.bf16.xpose.msra.mxu0 0
      %1228 = vmatprep.subr.bf16.mxu0 0
      %1229 = vmatpush1.bf16.xpose.msra.mxu0 0
      %1230 = vmatprep.subr.bf16.mxu0 0
      %1231 = vmatpush1.bf16.xpose.msra.mxu0 0
      %1232 = vmatprep.subr.bf16.mxu0 0
      %1233 = vmatpush1.bf16.xpose.msra.mxu0 0
      %1234 = vmatprep.subr.bf16.mxu0 0
      %1235 = vmatpush1.bf16.xpose.msra.mxu0 0
      %1236 = vmatprep.subr.bf16.mxu0 0
      %1237 = vmatpush1.bf16.xpose.msra.mxu0 0
      %1238 = vmatprep.subr.bf16.mxu0 0
      %1239 = vmatpush1.bf16.xpose.msra.mxu0 0
      %1240 = vmatprep.subr.bf16.mxu0 0
      %1241 = vmatpush1.bf16.xpose.msra.mxu0 0
      %1242 = vmatprep.subr.bf16.mxu0 0
      %1243 = vmatpush1.bf16.xpose.msra.mxu0 0
      %1244 = vmatprep.subr.bf16.mxu0 0
      %1245 = vmatpush1.bf16.xpose.msra.mxu0 0
      %1246 = vmatprep.subr.bf16.mxu0 0
      %1247 = vmatpush1.bf16.xpose.msra.mxu0 0
      %1248 = vmatprep.subr.bf16.mxu0 0
      %1249 = vmatpush1.bf16.xpose.msra.mxu0 0
      %1250 = vmatprep.subr.bf16.mxu0 0
      %1251 = vmatpush1.bf16.xpose.msra.mxu0 0
      %1252 = vmatprep.mubr.bf16.mxu0 0
      %1253 = vmatmul.mubr.bf16.gmra.mrb[0].mxu0 %v1215
      %v1254 = vpop.f32.mrb[0].mxu0
      %v1255 = vadd.f32 %v706, %v1254
      %v1256 = vpop.f32.mrb[0].mxu0
      %v1257 = vpop.f32.mrb[0].mxu0
      %v1258 = vpop.f32.mrb[0].mxu0
      %1259 = vdwg.mxu0
      %v1260 = vsel %vm682, -1e+09, %v1255
      %v1261 = vsel %vm756, %v1260, -inf
      %1262 = vmax.xlane.f32.xlu0 %v1261
      %v1263 = vpop.xlane.xlu0 %1262
      %v1264 = vsub.f32 %v1260, %v1263
      %v1265 = vmul.f32 %v1264, 1.442695
      %v1266 = vpow.pop %v1265
      %v1267 = vsel %vm756, %v1266, 0.0
      %1268 = vadd.xlane.f32.xlu0 %v1267
      %v1269 = vpop.xlane.xlu0 %1268
      %v1270 = vrcp.pop %v1269
      %v1271 = vmul.f32 %v1266, %v1270
      %v1272 = vpack.c.bf16 %v1271, %v1271
      %1273 = vrot.lane.b32.xlu0 %v701, 32
      %v1274 = vpop.permute.xlu0 %1273
      %v1276 = vsel %vm756, %v1272, 0
      %v1279 = vsel %vm772, %v1274, 0
      %1281 = vmatprep.subr.bf16.mxu0 0
      %1282 = vmatpush1.bf16.msra.mxu0 %v1279
      %1283 = vmatprep.subr.bf16.mxu0 0
      %1284 = vmatpush1.bf16.msra.mxu0 0
      %1285 = vmatprep.subr.bf16.mxu0 0
      %1286 = vmatpush1.bf16.msra.mxu0 0
      %1287 = vmatprep.subr.bf16.mxu0 0
      %1288 = vmatpush1.bf16.msra.mxu0 0
      %1289 = vmatprep.subr.bf16.mxu0 0
      %1290 = vmatpush1.bf16.msra.mxu0 0
      %1291 = vmatprep.subr.bf16.mxu0 0
      %1292 = vmatpush1.bf16.msra.mxu0 0
      %1293 = vmatprep.subr.bf16.mxu0 0
      %1294 = vmatpush1.bf16.msra.mxu0 0
      %1295 = vmatprep.subr.bf16.mxu0 0
      %1296 = vmatpush1.bf16.msra.mxu0 0
      %1297 = vmatprep.subr.bf16.mxu0 0
      %1298 = vmatpush1.bf16.msra.mxu0 0
      %1299 = vmatprep.subr.bf16.mxu0 0
      %1300 = vmatpush1.bf16.msra.mxu0 0
      %1301 = vmatprep.subr.bf16.mxu0 0
      %1302 = vmatpush1.bf16.msra.mxu0 0
      %1303 = vmatprep.subr.bf16.mxu0 0
      %1304 = vmatpush1.bf16.msra.mxu0 0
      %1305 = vmatprep.subr.bf16.mxu0 0
      %1306 = vmatpush1.bf16.msra.mxu0 0
      %1307 = vmatprep.subr.bf16.mxu0 0
      %1308 = vmatpush1.bf16.msra.mxu0 0
      %1309 = vmatprep.subr.bf16.mxu0 0
      %1310 = vmatpush1.bf16.msra.mxu0 0
      %1311 = vmatprep.subr.bf16.mxu0 0
      %1312 = vmatpush1.bf16.msra.mxu0 0
      %1313 = vmatprep.mubr.bf16.mxu0 0
      %1314 = vmatmul.mubr.bf16.gmra.mrb[0].mxu0 %v1276
      %v1315 = vpop.f32.mrb[0].mxu0
      %v1316 = vadd.f32 0.0, %v1315
      %v1317 = vpop.f32.mrb[0].mxu0
      %v1318 = vpop.f32.mrb[0].mxu0
      %v1319 = vpop.f32.mrb[0].mxu0
      %1320 = vdwg.mxu0
      %v1321 = vpack.c.bf16 %v1316, %v1316
      %v1326 = vunpack.c.l.b16 %v695
      %v1327 = vunpack.c.l.b16 %v696
      %v1328 = vunpack.c.l.b16 %v697
      %v1329 = vunpack.c.l.b16 %v698
      %v1330 = vpack.c.b16 %v1327, %v1326
      %v1331 = vpack.c.b16 %v1329, %v1328
      %v1335 = vsel %vm708, %v1321, 0
      %1337 = vmatprep.subr.bf16.mxu0 0
      %1338 = vmatpush1.bf16.msra.mxu0 %v1330
      %1339 = vmatprep.subr.bf16.mxu0 0
      %1340 = vmatpush1.bf16.msra.mxu0 %v1331
      %1341 = vmatprep.subr.bf16.mxu0 0
      %1342 = vmatpush1.bf16.msra.mxu0 0
      %1343 = vmatprep.subr.bf16.mxu0 0
      %1344 = vmatpush1.bf16.msra.mxu0 0
      %1345 = vmatprep.subr.bf16.mxu0 0
      %1346 = vmatpush1.bf16.msra.mxu0 0
      %1347 = vmatprep.subr.bf16.mxu0 0
      %1348 = vmatpush1.bf16.msra.mxu0 0
      %1349 = vmatprep.subr.bf16.mxu0 0
      %1350 = vmatpush1.bf16.msra.mxu0 0
      %1351 = vmatprep.subr.bf16.mxu0 0
      %1352 = vmatpush1.bf16.msra.mxu0 0
      %1353 = vmatprep.subr.bf16.mxu0 0
      %1354 = vmatpush1.bf16.msra.mxu0 0
      %1355 = vmatprep.subr.bf16.mxu0 0
      %1356 = vmatpush1.bf16.msra.mxu0 0
      %1357 = vmatprep.subr.bf16.mxu0 0
      %1358 = vmatpush1.bf16.msra.mxu0 0
      %1359 = vmatprep.subr.bf16.mxu0 0
      %1360 = vmatpush1.bf16.msra.mxu0 0
      %1361 = vmatprep.subr.bf16.mxu0 0
      %1362 = vmatpush1.bf16.msra.mxu0 0
      %1363 = vmatprep.subr.bf16.mxu0 0
      %1364 = vmatpush1.bf16.msra.mxu0 0
      %1365 = vmatprep.subr.bf16.mxu0 0
      %1366 = vmatpush1.bf16.msra.mxu0 0
      %1367 = vmatprep.subr.bf16.mxu0 0
      %1368 = vmatpush1.bf16.msra.mxu0 0
      %1369 = vmatprep.mubr.bf16.mxu0 0
      %1370 = vmatmul.mubr.bf16.gmra.mrb[0].mxu0 %v1335
      %v1371 = vpop.f32.mrb[0].mxu0
      %v1372 = vadd.f32 0.0, %v1371
      %v1373 = vpop.f32.mrb[0].mxu0
      %v1374 = vpop.f32.mrb[0].mxu0
      %v1375 = vpop.f32.mrb[0].mxu0
      %1376 = vdwg.mxu0
      %v1377 = vadd.f32 %v1209, %v1372
      %v1378 = vld [vmem:[%s8] sm:$0x1]
      %v1380 = vlaneseq
      %v1381 = vshrl.u32 %v1380, 7
      %v1382 = vsub.s32 0, %v1381
      %v1383 = vrot.slane %v1378, %v1382
      %v1385 = vadd.f32 %v1377, %v1383
      %v1386 = vunpack.c.l.bf16 %v414
      %v1387 = vadd.f32 %v1385, %v1386
      %1388 = vadd.xlane.f32.xlu0 %v1387
      %v1389 = vpop.xlane.xlu0 %1388
      %v1390 = vrcp.pop 128.0
      %v1391 = vmul.f32 %v1389, %v1390
      %v1392 = vsub.f32 %v1387, %v1391
      %v1393 = vmul.f32 %v1392, %v1392
      %1394 = vadd.xlane.f32.xlu0 %v1393
      %v1395 = vpop.xlane.xlu0 %1394
      %v1396 = vmul.f32 %v1395, %v1390
      %v1397 = vadd.f32 %v1396, 1e-05
      %v1398 = vrsqrt.pop %v1397
      %v1399 = vmul.f32 %v1392, %v1398
      %v1400 = vld [vmem:[%s9] sm:$0x1]
      %v1402 = vlaneseq
      %v1403 = vshrl.u32 %v1402, 7
      %v1404 = vsub.s32 0, %v1403
      %v1405 = vrot.slane %v1400, %v1404
      %v1407 = vmul.f32 %v1399, %v1405
      %v1408 = vld [vmem:[%s10] sm:$0x1]
      %v1410 = vlaneseq
      %v1411 = vshrl.u32 %v1410, 7
      %v1412 = vsub.s32 0, %v1411
      %v1413 = vrot.slane %v1408, %v1412
      %v1415 = vadd.f32 %v1407, %v1413
      %v1416 = vpack.c.bf16 %v1415, %v1415
      %1417 = vst [vmem:[%s412] sm:$0xf] %v1416
      %p1418 = scmp.lt.s32.totalorder %s22, 1
      %s1419 = scalar_select %p1418, %s22, 1
      %s1420 = smul.addr %s1419, 4
      %s1421 = scalar_lea.vmem %s11, %s1420
      // Predicated region
      $region65: #{transformer_forward.15} parent=63 // pred_check
        %p1422 = pneg %p286
      $region66: #{transformer_forward.15} parent=63 // pred_check_branch
        %1424 = sbr.rel (%p1422) target = $region68
      $region67: #{transformer_forward.15} parent=63 // pred_region
        _
      $region68: #{transformer_forward.15} parent=63 // pred_fallthru
        _
    $region64: #{transformer_forward.15} parent=5 // pred_fallthru
      _
    %p1425 = scmp.le.s32.totalorder 2, %s17
    // Predicated region
    $region69: #{transformer_forward.15} parent=5 // pred_check
      %p1426 = pneg %p1425
    $region70: #{transformer_forward.15} parent=5 // pred_check_branch
      %1428 = sbr.rel (%p1426) target = $region72
    $region71: #{transformer_forward.15} parent=5 // pred_region
      %s1429 = ssub.s32 %s17, 2
      // Predicated region
      $region73: #{transformer_forward.15} parent=71 // pred_check
        %p1430 = pneg %p292
      $region74: #{transformer_forward.15} parent=71 // pred_check_branch
        %1432 = sbr.rel (%p1430) target = $region76
      $region75: #{transformer_forward.15} parent=71 // pred_region
        %p1433 = scmp.lt.s32.totalorder %s23, 1
        %s1434 = scalar_select %p1433, %s23, 1
        %s1435 = smul.addr %s1434, 4
        %s1436 = scalar_lea.vmem %s11, %s1435
      $region76: #{transformer_forward.15} parent=71 // pred_fallthru
        _
    $region72: #{transformer_forward.15} parent=5 // pred_fallthru
      _
  $region6: #{transformer_forward.15} parent=0 // loop_footer
    %s21 = sadd.s32 1, %s17
  $region7: #{transformer_forward.15} parent=0 // loop_footer_branch
    %16 = sbr.rel target = $region3
  $region8: #{transformer_forward.15} parent=0 // loop_exit
    _

</llo_original>
